<compile_context>
chip_gen: v6e
topology: v6e:2x2x1
jax: 0.10.0
libtpu: 0.0.40
codegen_flags: <defaults>
</compile_context>

<pallas_src>
import functools
import math

import jax
import jax.numpy as jnp
from jax.experimental import pallas as pl
from jax.experimental.pallas import tpu as pltpu

_MXU_DTYPE = jnp.bfloat16      # matmul operand dtype; accumulation is always f32
_LN_EPS = 1e-6


def _pick_tile(dim, target, align):
    """Largest tile <= target that divides `dim` and is a multiple of `align`;
    falls back to the full dimension (full-extent blocks are always legal)."""
    if dim <= target:
        return dim
    t = (target // align) * align
    while t >= align:
        if dim % t == 0:
            return t
        t -= align
    # TODO(synk): pad awkward dims to a tile multiple instead of one huge block.
    return dim


def _vmem_limit(block_bytes, scratch_bytes=0):
    """Scoped-VMEM limit sized from the (double-buffered) block footprint."""
    est = 2 * int(block_bytes) + int(scratch_bytes) + (2 << 20)
    return int(min(max(est, 32 << 20), 64 << 20))


def _isize(dtype):
    return jnp.dtype(dtype).itemsize


# ----------------------------- Pallas kernels -----------------------------

def _ln_matmul_kernel(x_ref, a_ref, b_ref, w_ref, bias_ref, o_ref, xn_ref,
                      *, eps, activation):
    """Fused LayerNorm (prologue) + matmul + bias (+ ReLU).

    K is kept whole per block so the per-row LN statistics are exact.  The
    normalized, bf16-cast row block is cached in `xn_ref` and only recomputed
    when the N-tile index (fastest grid axis) is 0; later N tiles feed the MXU
    straight from the scratch."""
    @pl.when(pl.program_id(1) == 0)
    def _():
        x = x_ref[...].astype(jnp.float32)                  # [tm, K]
        d = x.shape[-1]
        mean = jnp.mean(x, axis=-1, keepdims=True)
        diff = x - mean
        # torch.Tensor.std() is unbiased (divide by D-1); eps is added to std.
        var = jnp.sum(diff * diff, axis=-1, keepdims=True) * (1.0 / (d - 1))
        inv = 1.0 / (jnp.sqrt(var) + eps)                   # exact (correctness)
        xn_ref[...] = (a_ref[...] * diff * inv + b_ref[...]).astype(xn_ref.dtype)

    y = jnp.dot(xn_ref[...], w_ref[...],
                preferred_element_type=jnp.float32) + bias_ref[...]
    if activation == "relu":
        y = jnp.maximum(y, 0.0)
    o_ref[...] = y.astype(o_ref.dtype)


def _matmul_residual_kernel(x_ref, w_ref, bias_ref, res_ref, o_ref, acc_ref):
    """K-tiled matmul with f32 accumulator; bias + residual fused in epilogue."""
    k = pl.program_id(2)

    @pl.when(k == 0)
    def _():
        acc_ref[...] = jnp.zeros_like(acc_ref)

    acc_ref[...] += jnp.dot(x_ref[...].astype(w_ref.dtype), w_ref[...],
                            preferred_element_type=jnp.float32)

    @pl.when(k == pl.num_programs(2) - 1)
    def _():
        y = acc_ref[...] + bias_ref[...] + res_ref[...].astype(jnp.float32)
        o_ref[...] = y.astype(o_ref.dtype)


def _attention_kernel(q_ref, k_ref, v_ref, bias_ref, o_ref,
                      m_sc, l_sc, acc_sc, *, num_heads):
    """Flash-style attention: grid = (batch, q_tile, kv_tile).  All heads are
    processed per step; the 1/sqrt(dh) scale is pre-folded into Wq, the mask is
    an additive bias hoisted out of the head loop, and the output is written
    once as a lane-dense [tq, H*Dh] slab."""
    kv = pl.program_id(2)

    @pl.when(kv == 0)
    def _():
        m_sc[...] = jnp.full(m_sc.shape, -1e30, jnp.float32)
        l_sc[...] = jnp.zeros(l_sc.shape, jnp.float32)
        acc_sc[...] = jnp.zeros(acc_sc.shape, jnp.float32)

    d_model = q_ref.shape[2]
    dh = d_model // num_heads

    qb = q_ref[0]                                  # [tq,  D] bf16
    kb = k_ref[0]                                  # [tkv, D] bf16
    vb = v_ref[0]                                  # [tkv, D] bf16
    mbias = bias_ref[0].astype(jnp.float32)        # [tq, tkv] additive mask bias

    # TODO(synk): for num_heads >> 8 move heads onto the grid (or a fori_loop)
    # instead of fully unrolling; fine for small head counts.
    for h in range(num_heads):
        sl = slice(h * dh, (h + 1) * dh)
        s = jax.lax.dot_general(qb[:, sl], kb[:, sl],
                                (((1,), (1,)), ((), ())),
                                preferred_element_type=jnp.float32)
        s = s + mbias                               # masked_fill(-1e9) semantics
        m_prev = m_sc[h]                            # [tq, 1]
        m_new = jnp.maximum(m_prev, jnp.max(s, axis=-1, keepdims=True))
        alpha = jnp.exp(m_prev - m_new)
        p = jnp.exp(s - m_new)                      # [tq, tkv]
        l_sc[h] = alpha * l_sc[h] + jnp.sum(p, axis=-1, keepdims=True)
        acc_sc[h] = alpha * acc_sc[h] + jnp.dot(
            p.astype(_MXU_DTYPE), vb[:, sl], preferred_element_type=jnp.float32)
        m_sc[h] = m_new

    @pl.when(kv == pl.num_programs(2) - 1)
    def _():
        outs = [acc_sc[h] * pl.reciprocal(l_sc[h], approx=True)
                for h in range(num_heads)]
        o_ref[0] = jnp.concatenate(outs, axis=-1).astype(o_ref.dtype)


def _layernorm_kernel(x_ref, a_ref, b_ref, o_ref, *, eps):
    x = x_ref[...].astype(jnp.float32)
    d = x.shape[-1]
    mean = jnp.mean(x, axis=-1, keepdims=True)
    diff = x - mean
    var = jnp.sum(diff * diff, axis=-1, keepdims=True) * (1.0 / (d - 1))
    inv = 1.0 / (jnp.sqrt(var) + eps)               # exact (correctness)
    o_ref[...] = (a_ref[...] * diff * inv + b_ref[...]).astype(o_ref.dtype)


# ----------------------------- wrappers -----------------------------------

def ln_matmul(x2d, a, b, w, bias, activation=None, out_dtype=None):
    """LayerNorm(x) @ w + bias (+ReLU), tiled over (M, N); LN cached per row tile."""
    M, K = x2d.shape
    _, N = w.shape
    out_dtype = out_dtype if out_dtype is not None else x2d.dtype
    tm = _pick_tile(M, 256, 8)
    tn = _pick_tile(N, 512, 128)

    block_bytes = (tm * K * _isize(x2d.dtype) + 2 * K * 4
                   + K * tn * _isize(w.dtype) + tn * 4
                   + tm * tn * _isize(out_dtype))
    scratch_bytes = tm * K * _isize(_MXU_DTYPE)
    cost = pl.CostEstimate(
        flops=2 * M * N * K + 7 * M * K,
        transcendentals=M,
        bytes_accessed=(M * K * _isize(x2d.dtype) + K * N * _isize(w.dtype)
                        + M * N * _isize(out_dtype)))

    return pl.pallas_call(
        functools.partial(_ln_matmul_kernel, eps=_LN_EPS, activation=activation),
        out_shape=jax.ShapeDtypeStruct((M, N), out_dtype),
        grid=(M // tm, N // tn),
        in_specs=[
            pl.BlockSpec((tm, K), lambda i, j: (i, 0)),
            pl.BlockSpec((1, K), lambda i, j: (0, 0)),
            pl.BlockSpec((1, K), lambda i, j: (0, 0)),
            pl.BlockSpec((K, tn), lambda i, j: (0, j)),
            pl.BlockSpec((1, tn), lambda i, j: (0, j)),
        ],
        out_specs=pl.BlockSpec((tm, tn), lambda i, j: (i, j)),
        scratch_shapes=[pltpu.VMEM((tm, K), _MXU_DTYPE)],   # cached LN'd LHS
        compiler_params=pltpu.CompilerParams(
            # N axis must iterate sequentially so the LN scratch carry is valid.
            dimension_semantics=("parallel", "arbitrary"),
            vmem_limit_bytes=_vmem_limit(block_bytes, scratch_bytes)),
        cost_estimate=cost,
    )(x2d, a.reshape(1, K), b.reshape(1, K), w, bias.reshape(1, N))


def matmul_residual(x2d, w, bias, res2d):
    """res + x @ w + bias, K-tiled with a VMEM f32 accumulator."""
    M, K = x2d.shape
    _, N = w.shape
    out_dtype = res2d.dtype                       # residual stream stays f32
    tm = _pick_tile(M, 256, 8)
    tn = _pick_tile(N, 512, 128)
    tk = _pick_tile(K, 512, 128)

    block_bytes = (tm * tk * _isize(x2d.dtype) + tk * tn * _isize(w.dtype)
                   + tn * 4 + tm * tn * _isize(res2d.dtype)
                   + tm * tn * _isize(out_dtype))
    scratch_bytes = tm * tn * 4
    cost = pl.CostEstimate(
        flops=2 * M * N * K + 2 * M * N,
        transcendentals=0,
        bytes_accessed=(M * K * _isize(x2d.dtype) + K * N * _isize(w.dtype)
                        + 2 * M * N * _isize(out_dtype)))

    return pl.pallas_call(
        _matmul_residual_kernel,
        out_shape=jax.ShapeDtypeStruct((M, N), out_dtype),
        grid=(M // tm, N // tn, K // tk),
        in_specs=[
            pl.BlockSpec((tm, tk), lambda i, j, k: (i, k)),
            pl.BlockSpec((tk, tn), lambda i, j, k: (k, j)),
            pl.BlockSpec((1, tn), lambda i, j, k: (0, j)),
            pl.BlockSpec((tm, tn), lambda i, j, k: (i, j)),
        ],
        out_specs=pl.BlockSpec((tm, tn), lambda i, j, k: (i, j)),
        scratch_shapes=[pltpu.VMEM((tm, tn), jnp.float32)],
        compiler_params=pltpu.CompilerParams(
            dimension_semantics=("parallel", "parallel", "arbitrary"),
            vmem_limit_bytes=_vmem_limit(block_bytes, scratch_bytes)),
        cost_estimate=cost,
    )(x2d, w, bias.reshape(1, N), res2d)


def attention(qkv, mbias, num_heads):
    """Multi-head self-attention.  qkv: [B, S, 3*D] (fused projection output,
    bf16, scale pre-folded into Wq), mbias: [B, S, S] additive mask bias (bf16).
    Returns [B, S, D] bf16 (heads packed)."""
    B, S, D3 = qkv.shape
    D = D3 // 3
    dh = D // num_heads
    tq = _pick_tile(S, 256, 16)
    tkv = _pick_tile(S, 512, 128)
    grid = (B, S // tq, S // tkv)

    if D % 128 == 0:
        # Split Q/K/V straight out of the fused projection via BlockSpec
        # index_maps — no host-side slice/transpose copies at all.
        q_in = k_in = v_in = qkv
        q_spec = pl.BlockSpec((1, tq, D), lambda b, qi, kv: (b, qi, 0))
        k_spec = pl.BlockSpec((1, tkv, D), lambda b, qi, kv: (b, kv, 1))
        v_spec = pl.BlockSpec((1, tkv, D), lambda b, qi, kv: (b, kv, 2))
    else:
        # Fallback for head dims that cannot form a lane-aligned sub-block.
        q_in, k_in, v_in = jnp.split(qkv, 3, axis=-1)
        q_spec = pl.BlockSpec((1, tq, D), lambda b, qi, kv: (b, qi, 0))
        k_spec = pl.BlockSpec((1, tkv, D), lambda b, qi, kv: (b, kv, 0))
        v_spec = pl.BlockSpec((1, tkv, D), lambda b, qi, kv: (b, kv, 0))

    ebytes = _isize(qkv.dtype)
    block_bytes = (tq * D * ebytes + 2 * tkv * D * ebytes
                   + tq * tkv * _isize(mbias.dtype) + tq * D * ebytes)
    scratch_bytes = num_heads * tq * (2 + dh) * 4
    cost = pl.CostEstimate(
        flops=4 * B * S * S * D,
        transcendentals=B * num_heads * S * S,
        bytes_accessed=4 * B * S * D * ebytes + B * S * S * _isize(mbias.dtype))

    return pl.pallas_call(
        functools.partial(_attention_kernel, num_heads=num_heads),
        out_shape=jax.ShapeDtypeStruct((B, S, D), _MXU_DTYPE),
        grid=grid,
        in_specs=[q_spec, k_spec, v_spec,
                  pl.BlockSpec((1, tq, tkv), lambda b, qi, kv: (b, qi, kv))],
        out_specs=pl.BlockSpec((1, tq, D), lambda b, qi, kv: (b, qi, 0)),
        scratch_shapes=[
            pltpu.VMEM((num_heads, tq, 1), jnp.float32),    # running max
            pltpu.VMEM((num_heads, tq, 1), jnp.float32),    # running denom
            pltpu.VMEM((num_heads, tq, dh), jnp.float32),   # running numerator
        ],
        compiler_params=pltpu.CompilerParams(
            dimension_semantics=("parallel", "parallel", "arbitrary"),
            vmem_limit_bytes=_vmem_limit(block_bytes, scratch_bytes)),
        cost_estimate=cost,
    )(q_in, k_in, v_in, mbias)


def layernorm(x2d, a, b):
    M, D = x2d.shape
    tm = _pick_tile(M, 512, 8)
    block_bytes = tm * D * _isize(x2d.dtype) * 2 + 2 * D * 4
    cost = pl.CostEstimate(flops=7 * M * D, transcendentals=M,
                           bytes_accessed=2 * M * D * _isize(x2d.dtype))
    return pl.pallas_call(
        functools.partial(_layernorm_kernel, eps=_LN_EPS),
        out_shape=jax.ShapeDtypeStruct((M, D), x2d.dtype),
        grid=(M // tm,),
        in_specs=[
            pl.BlockSpec((tm, D), lambda i: (i, 0)),
            pl.BlockSpec((1, D), lambda i: (0, 0)),
            pl.BlockSpec((1, D), lambda i: (0, 0)),
        ],
        out_specs=pl.BlockSpec((tm, D), lambda i: (i, 0)),
        compiler_params=pltpu.CompilerParams(
            dimension_semantics=("parallel",),
            vmem_limit_bytes=_vmem_limit(block_bytes)),
        cost_estimate=cost,
    )(x2d, a.reshape(1, D), b.reshape(1, D))


# ----------------------------- model --------------------------------------

def init_params(key, n_layers, d_model, n_heads, d_ff):
    wdtype = _MXU_DTYPE   # weights stored in bf16: halves HBM weight traffic
    dh = d_model // n_heads
    q_scale = 1.0 / math.sqrt(dh)

    def dense(k, din, dout, scale=1.0):
        w = jax.random.normal(k, (din, dout), jnp.float32) * 0.02
        return (w * scale).astype(wdtype)

    layers = []
    for _ in range(n_layers):
        key, *ks = jax.random.split(key, 7)
        # Fold the 1/sqrt(dh) attention-score scale into Wq (f32, pre-cast).
        wq = dense(ks[0], d_model, d_model, scale=q_scale)
        wk = dense(ks[1], d_model, d_model)
        wv = dense(ks[2], d_model, d_model)
        bqkv = jnp.zeros((3 * d_model,), jnp.float32)       # q-part scale fold is a no-op on zeros
        layers.append(dict(
            ln1_a=jnp.ones((d_model,), jnp.float32),
            ln1_b=jnp.zeros((d_model,), jnp.float32),
            ln2_a=jnp.ones((d_model,), jnp.float32),
            ln2_b=jnp.zeros((d_model,), jnp.float32),
            wqkv=jnp.concatenate([wq, wk, wv], axis=1),     # fused [D, 3D]
            bqkv=bqkv,
            wo=dense(ks[3], d_model, d_model), bo=jnp.zeros((d_model,), jnp.float32),
            w1=dense(ks[4], d_model, d_ff),    b1=jnp.zeros((d_ff,), jnp.float32),
            w2=dense(ks[5], d_ff, d_model),    b2=jnp.zeros((d_model,), jnp.float32),
        ))
    return dict(
        layers=layers,
        norm_a=jnp.ones((d_model,), jnp.float32),
        norm_b=jnp.zeros((d_model,), jnp.float32),
    )


def transformer_forward(x, mask, params, *, num_heads):
    # x: [B, S, D]; mask: [B, 1, S, S] (1 = attend, 0 = masked)
    B, S, D = x.shape
    M = B * S
    mask3 = jnp.broadcast_to(mask, (B, 1, S, S))[:, 0]
    # Additive mask bias (hoisted out of the attention inner loop), bf16.
    mbias = jnp.where(mask3 == 0, jnp.float32(-1e9),
                      jnp.float32(0.0)).astype(_MXU_DTYPE)  # [B, S, S]

    h2 = x.reshape(M, D).astype(jnp.float32)                # f32 residual stream
    for lp in params["layers"]:
        # --- sublayer 1: LN1 fused into the fused-QKV projection (bf16 out) ---
        qkv = ln_matmul(h2, lp["ln1_a"], lp["ln1_b"], lp["wqkv"], lp["bqkv"],
                        out_dtype=_MXU_DTYPE)               # [M, 3D] bf16
        a = attention(qkv.reshape(B, S, 3 * D), mbias, num_heads).reshape(M, D)
        # output projection with residual add fused in the epilogue (f32 out)
        h2 = matmul_residual(a, lp["wo"], lp["bo"], h2)

        # --- sublayer 2: LN2 fused into FFN1 (+ReLU, bf16 out); FFN2 fuses residual ---
        f = ln_matmul(h2, lp["ln2_a"], lp["ln2_b"], lp["w1"], lp["b1"],
                      activation="relu", out_dtype=_MXU_DTYPE)   # [M, d_ff] bf16
        h2 = matmul_residual(f, lp["w2"], lp["b2"], h2)

    out = layernorm(h2, params["norm_a"], params["norm_b"])
    return out.reshape(B, S, D).astype(x.dtype)


# TODO(synk): the encoder-layer definition is not included in the reference
# snippet; the canonical Annotated-Transformer EncoderLayer (pre-norm, dropout
# = identity in eval mode) is used.

if __name__ == "__main__":
    B, S, D, H, DFF, NLAYERS = 2, 8, 128, 4, 256, 2

    key = jax.random.PRNGKey(0)
    kx, kp = jax.random.split(key)
    x = jax.random.normal(kx, (B, S, D), jnp.float32)

    # padding-style mask: batch 0 attends everywhere, batch 1 masks last 2 keys
    mask = jnp.ones((B, 1, S, S), jnp.float32)
    mask = mask.at[1, :, :, S - 2:].set(0.0)

    params = init_params(kp, NLAYERS, D, H, DFF)

    fwd = jax.jit(functools.partial(transformer_forward, num_heads=H))
    out = fwd(x, mask, params)
    out = jax.block_until_ready(out)
    assert out.shape == (B, S, D)
    assert bool(jnp.all(jnp.isfinite(out)))
    print("KERNEL_OK")
</pallas_src>

<mosaic_0001>
module attributes {stable_mosaic.version = 11 : i64} {
  func.func @_ln_matmul_kernel(%arg0: i32, %arg1: i32, %arg2: memref<16x128xf32, #tpu.memory_space<vmem>>, %arg3: memref<1x128xf32, #tpu.memory_space<vmem>>, %arg4: memref<1x128xf32, #tpu.memory_space<vmem>>, %arg5: memref<128x384xbf16, #tpu.memory_space<vmem>>, %arg6: memref<1x384xf32, #tpu.memory_space<vmem>>, %arg7: memref<16x384xbf16, #tpu.memory_space<vmem>>, %arg8: memref<16x128xbf16, #tpu.memory_space<vmem>>) attributes {dimension_semantics = [#tpu.dimension_semantics<parallel>, #tpu.dimension_semantics<arbitrary>], iteration_bounds = array<i64: 1, 1>, scalar_prefetch = 0 : i64, scratch_operands = 1 : i64, tpu.core_type = #tpu.core_type<tc>, window_params = [{transform_indices = @transform_0, window_bounds = array<i64: 16, 128>}, {pipeline_mode = #tpu.pipeline_mode<synchronous>, transform_indices = @transform_1, window_bounds = array<i64: 1, 128>}, {pipeline_mode = #tpu.pipeline_mode<synchronous>, transform_indices = @transform_2, window_bounds = array<i64: 1, 128>}, {transform_indices = @transform_3, window_bounds = array<i64: 128, 384>}, {transform_indices = @transform_4, window_bounds = array<i64: 1, 384>}, {transform_indices = @transform_5, window_bounds = array<i64: 16, 384>}]} {
    %c0_i32 = arith.constant 0 : i32
    %0 = arith.cmpi eq, %arg1, %c0_i32 : i32
    %1 = arith.extui %0 : i1 to i32
    %c0_i32_0 = arith.constant 0 : i32
    %2 = arith.cmpi ne, %1, %c0_i32_0 : i32
    scf.if %2 {
      %c0_8 = arith.constant 0 : index
      %c0_9 = arith.constant 0 : index
      %11 = vector.load %arg2[%c0_8, %c0_9] : memref<16x128xf32, #tpu.memory_space<vmem>>, vector<16x128xf32>
      %cst_10 = arith.constant dense<0.000000e+00> : vector<16xf32>
      %12 = vector.multi_reduction <add>, %11, %cst_10 [1] : vector<16x128xf32> to vector<16xf32>
      %13 = vector.shape_cast %12 : vector<16xf32> to vector<16x1xf32>
      %cst_11 = arith.constant 1.280000e+02 : f32
      %14 = vector.broadcast %cst_11 : f32 to vector<16x1xf32>
      %15 = arith.divf %13, %14 : vector<16x1xf32>
      %16 = vector.broadcast %15 : vector<16x1xf32> to vector<16x128xf32>
      %17 = arith.subf %11, %16 : vector<16x128xf32>
      %18 = arith.mulf %17, %17 : vector<16x128xf32>
      %cst_12 = arith.constant dense<0.000000e+00> : vector<16xf32>
      %19 = vector.multi_reduction <add>, %18, %cst_12 [1] : vector<16x128xf32> to vector<16xf32>
      %20 = vector.shape_cast %19 : vector<16xf32> to vector<16x1xf32>
      %cst_13 = arith.constant 0.00787401571 : f32
      %21 = vector.broadcast %cst_13 : f32 to vector<16x1xf32>
      %22 = arith.mulf %20, %21 : vector<16x1xf32>
      %23 = math.sqrt %22 : vector<16x1xf32>
      %cst_14 = arith.constant 9.99999997E-7 : f32
      %24 = vector.broadcast %cst_14 : f32 to vector<16x1xf32>
      %25 = arith.addf %23, %24 : vector<16x1xf32>
      %cst_15 = arith.constant 1.000000e+00 : f32
      %26 = vector.broadcast %cst_15 : f32 to vector<16x1xf32>
      %27 = arith.divf %26, %25 : vector<16x1xf32>
      %c0_16 = arith.constant 0 : index
      %c0_17 = arith.constant 0 : index
      %28 = vector.load %arg3[%c0_16, %c0_17] : memref<1x128xf32, #tpu.memory_space<vmem>>, vector<1x128xf32>
      %29 = vector.broadcast %28 : vector<1x128xf32> to vector<16x128xf32>
      %30 = arith.mulf %29, %17 : vector<16x128xf32>
      %31 = vector.broadcast %27 : vector<16x1xf32> to vector<16x128xf32>
      %32 = arith.mulf %30, %31 : vector<16x128xf32>
      %c0_18 = arith.constant 0 : index
      %c0_19 = arith.constant 0 : index
      %33 = vector.load %arg4[%c0_18, %c0_19] : memref<1x128xf32, #tpu.memory_space<vmem>>, vector<1x128xf32>
      %34 = vector.broadcast %33 : vector<1x128xf32> to vector<16x128xf32>
      %35 = arith.addf %32, %34 : vector<16x128xf32>
      %36 = arith.truncf %35 : vector<16x128xf32> to vector<16x128xbf16>
      %c0_20 = arith.constant 0 : index
      %c0_21 = arith.constant 0 : index
      %37 = vector.load %arg8[%c0_20, %c0_21] : memref<16x128xbf16, #tpu.memory_space<vmem>>, vector<16x128xbf16>
      tpu.vector_store %arg8[%c0_20, %c0_21], %36 {strides = array<i32>} : memref<16x128xbf16, #tpu.memory_space<vmem>>, vector<16x128xbf16>,
    } else {
    }
    %c0 = arith.constant 0 : index
    %c0_1 = arith.constant 0 : index
    %3 = vector.load %arg8[%c0, %c0_1] : memref<16x128xbf16, #tpu.memory_space<vmem>>, vector<16x128xbf16>
    %c0_2 = arith.constant 0 : index
    %c0_3 = arith.constant 0 : index
    %4 = vector.load %arg5[%c0_2, %c0_3] : memref<128x384xbf16, #tpu.memory_space<vmem>>, vector<128x384xbf16>
    %cst = arith.constant dense<0.000000e+00> : vector<16x384xf32>
    %5 = tpu.matmul %3, %4, %cst {dimension_numbers = #tpu.dot_dimension_numbers<[1], [0], [0], [1], [0, 0, 1, 1], [], []>} : vector<16x128xbf16>, vector<128x384xbf16>, vector<16x384xf32> -> vector<16x384xf32>
    %c0_4 = arith.constant 0 : index
    %c0_5 = arith.constant 0 : index
    %6 = vector.load %arg6[%c0_4, %c0_5] : memref<1x384xf32, #tpu.memory_space<vmem>>, vector<1x384xf32>
    %7 = vector.broadcast %6 : vector<1x384xf32> to vector<16x384xf32>
    %8 = arith.addf %5, %7 : vector<16x384xf32>
    %9 = arith.truncf %8 : vector<16x384xf32> to vector<16x384xbf16>
    %c0_6 = arith.constant 0 : index
    %c0_7 = arith.constant 0 : index
    %10 = vector.load %arg7[%c0_6, %c0_7] : memref<16x384xbf16, #tpu.memory_space<vmem>>, vector<16x384xbf16>
    tpu.vector_store %arg7[%c0_6, %c0_7], %9 {strides = array<i32>} : memref<16x384xbf16, #tpu.memory_space<vmem>>, vector<16x384xbf16>,
    return
  }
  func.func @transform_0(%arg0: i32, %arg1: i32) -> (i32, i32) {
    %c0_i32 = arith.constant 0 : i32
    %c0_i32_0 = arith.constant 0 : i32
    return %arg0, %c0_i32 : i32, i32
  }
  func.func @transform_1(%arg0: i32, %arg1: i32) -> (i32, i32) {
    %c0_i32 = arith.constant 0 : i32
    %c0_i32_0 = arith.constant 0 : i32
    %c0_i32_1 = arith.constant 0 : i32
    return %c0_i32, %c0_i32_0 : i32, i32
  }
  func.func @transform_2(%arg0: i32, %arg1: i32) -> (i32, i32) {
    %c0_i32 = arith.constant 0 : i32
    %c0_i32_0 = arith.constant 0 : i32
    %c0_i32_1 = arith.constant 0 : i32
    return %c0_i32, %c0_i32_0 : i32, i32
  }
  func.func @transform_3(%arg0: i32, %arg1: i32) -> (i32, i32) {
    %c0_i32 = arith.constant 0 : i32
    %c0_i32_0 = arith.constant 0 : i32
    return %c0_i32, %arg1 : i32, i32
  }
  func.func @transform_4(%arg0: i32, %arg1: i32) -> (i32, i32) {
    %c0_i32 = arith.constant 0 : i32
    %c0_i32_0 = arith.constant 0 : i32
    return %c0_i32, %arg1 : i32, i32
  }
  func.func @transform_5(%arg0: i32, %arg1: i32) -> (i32, i32) {
    %c0_i32 = arith.constant 0 : i32
    return %arg0, %arg1 : i32, i32
  }
}

module attributes {stable_mosaic.version = 11 : i64} {
  func.func @_matmul_residual_kernel(%arg0: i32, %arg1: i32, %arg2: i32, %arg3: memref<16x128xbf16, #tpu.memory_space<vmem>>, %arg4: memref<128x128xbf16, #tpu.memory_space<vmem>>, %arg5: memref<1x128xf32, #tpu.memory_space<vmem>>, %arg6: memref<16x128xf32, #tpu.memory_space<vmem>>, %arg7: memref<16x128xf32, #tpu.memory_space<vmem>>, %arg8: memref<16x128xf32, #tpu.memory_space<vmem>>) attributes {dimension_semantics = [#tpu.dimension_semantics<parallel>, #tpu.dimension_semantics<parallel>, #tpu.dimension_semantics<arbitrary>], iteration_bounds = array<i64: 1, 1, 1>, scalar_prefetch = 0 : i64, scratch_operands = 1 : i64, tpu.core_type = #tpu.core_type<tc>, window_params = [{transform_indices = @transform_0, window_bounds = array<i64: 16, 128>}, {transform_indices = @transform_1, window_bounds = array<i64: 128, 128>}, {transform_indices = @transform_2, window_bounds = array<i64: 1, 128>}, {transform_indices = @transform_3, window_bounds = array<i64: 16, 128>}, {transform_indices = @transform_4, window_bounds = array<i64: 16, 128>}]} {
    %c0_i32 = arith.constant 0 : i32
    %0 = arith.cmpi eq, %arg2, %c0_i32 : i32
    %1 = arith.extui %0 : i1 to i32
    %c0_i32_0 = arith.constant 0 : i32
    %2 = arith.cmpi ne, %1, %c0_i32_0 : i32
    scf.if %2 {
      %cst_10 = arith.constant 0.000000e+00 : f32
      %12 = vector.broadcast %cst_10 : f32 to vector<16x128xf32>
      %c0_11 = arith.constant 0 : index
      %c0_12 = arith.constant 0 : index
      %13 = vector.load %arg8[%c0_11, %c0_12] : memref<16x128xf32, #tpu.memory_space<vmem>>, vector<16x128xf32>
      tpu.vector_store %arg8[%c0_11, %c0_12], %12 {strides = array<i32>} : memref<16x128xf32, #tpu.memory_space<vmem>>, vector<16x128xf32>,
    } else {
    }
    %c0 = arith.constant 0 : index
    %c0_1 = arith.constant 0 : index
    %3 = vector.load %arg8[%c0, %c0_1] : memref<16x128xf32, #tpu.memory_space<vmem>>, vector<16x128xf32>
    %c0_2 = arith.constant 0 : index
    %c0_3 = arith.constant 0 : index
    %4 = vector.load %arg3[%c0_2, %c0_3] : memref<16x128xbf16, #tpu.memory_space<vmem>>, vector<16x128xbf16>
    %c0_4 = arith.constant 0 : index
    %c0_5 = arith.constant 0 : index
    %5 = vector.load %arg4[%c0_4, %c0_5] : memref<128x128xbf16, #tpu.memory_space<vmem>>, vector<128x128xbf16>
    %cst = arith.constant dense<0.000000e+00> : vector<16x128xf32>
    %6 = tpu.matmul %4, %5, %cst {dimension_numbers = #tpu.dot_dimension_numbers<[1], [0], [0], [1], [0, 0, 1, 1], [], []>} : vector<16x128xbf16>, vector<128x128xbf16>, vector<16x128xf32> -> vector<16x128xf32>
    %7 = arith.addf %3, %6 : vector<16x128xf32>
    %c0_6 = arith.constant 0 : index
    %c0_7 = arith.constant 0 : index
    %8 = vector.load %arg8[%c0_6, %c0_7] : memref<16x128xf32, #tpu.memory_space<vmem>>, vector<16x128xf32>
    tpu.vector_store %arg8[%c0_6, %c0_7], %7 {strides = array<i32>} : memref<16x128xf32, #tpu.memory_space<vmem>>, vector<16x128xf32>,
    %c0_i32_8 = arith.constant 0 : i32
    %9 = arith.cmpi eq, %arg2, %c0_i32_8 : i32
    %10 = arith.extui %9 : i1 to i32
    %c0_i32_9 = arith.constant 0 : i32
    %11 = arith.cmpi ne, %10, %c0_i32_9 : i32
    scf.if %11 {
      %c0_10 = arith.constant 0 : index
      %c0_11 = arith.constant 0 : index
      %12 = vector.load %arg8[%c0_10, %c0_11] : memref<16x128xf32, #tpu.memory_space<vmem>>, vector<16x128xf32>
      %c0_12 = arith.constant 0 : index
      %c0_13 = arith.constant 0 : index
      %13 = vector.load %arg5[%c0_12, %c0_13] : memref<1x128xf32, #tpu.memory_space<vmem>>, vector<1x128xf32>
      %14 = vector.broadcast %13 : vector<1x128xf32> to vector<16x128xf32>
      %15 = arith.addf %12, %14 : vector<16x128xf32>
      %c0_14 = arith.constant 0 : index
      %c0_15 = arith.constant 0 : index
      %16 = vector.load %arg6[%c0_14, %c0_15] : memref<16x128xf32, #tpu.memory_space<vmem>>, vector<16x128xf32>
      %17 = arith.addf %15, %16 : vector<16x128xf32>
      %c0_16 = arith.constant 0 : index
      %c0_17 = arith.constant 0 : index
      %18 = vector.load %arg7[%c0_16, %c0_17] : memref<16x128xf32, #tpu.memory_space<vmem>>, vector<16x128xf32>
      tpu.vector_store %arg7[%c0_16, %c0_17], %17 {strides = array<i32>} : memref<16x128xf32, #tpu.memory_space<vmem>>, vector<16x128xf32>,
    } else {
    }
    return
  }
  func.func @transform_0(%arg0: i32, %arg1: i32, %arg2: i32) -> (i32, i32) {
    %c0_i32 = arith.constant 0 : i32
    return %arg0, %arg2 : i32, i32
  }
  func.func @transform_1(%arg0: i32, %arg1: i32, %arg2: i32) -> (i32, i32) {
    %c0_i32 = arith.constant 0 : i32
    return %arg2, %arg1 : i32, i32
  }
  func.func @transform_2(%arg0: i32, %arg1: i32, %arg2: i32) -> (i32, i32) {
    %c0_i32 = arith.constant 0 : i32
    %c0_i32_0 = arith.constant 0 : i32
    return %c0_i32, %arg1 : i32, i32
  }
  func.func @transform_3(%arg0: i32, %arg1: i32, %arg2: i32) -> (i32, i32) {
    %c0_i32 = arith.constant 0 : i32
    return %arg0, %arg1 : i32, i32
  }
  func.func @transform_4(%arg0: i32, %arg1: i32, %arg2: i32) -> (i32, i32) {
    %c0_i32 = arith.constant 0 : i32
    return %arg0, %arg1 : i32, i32
  }
}

module attributes {stable_mosaic.version = 11 : i64} {
  func.func @_attention_kernel(%arg0: i32, %arg1: i32, %arg2: i32, %arg3: memref<1x8x128xbf16, #tpu.memory_space<vmem>>, %arg4: memref<1x8x128xbf16, #tpu.memory_space<vmem>>, %arg5: memref<1x8x128xbf16, #tpu.memory_space<vmem>>, %arg6: memref<1x8x8xbf16, #tpu.memory_space<vmem>>, %arg7: memref<1x8x128xbf16, #tpu.memory_space<vmem>>, %arg8: memref<4x8x1xf32, #tpu.memory_space<vmem>>, %arg9: memref<4x8x1xf32, #tpu.memory_space<vmem>>, %arg10: memref<4x8x32xf32, #tpu.memory_space<vmem>>) attributes {dimension_semantics = [#tpu.dimension_semantics<parallel>, #tpu.dimension_semantics<parallel>, #tpu.dimension_semantics<arbitrary>], iteration_bounds = array<i64: 2, 1, 1>, scalar_prefetch = 0 : i64, scratch_operands = 3 : i64, tpu.core_type = #tpu.core_type<tc>, window_params = [{transform_indices = @transform_0, window_bounds = array<i64: 1, 8, 128>}, {transform_indices = @transform_1, window_bounds = array<i64: 1, 8, 128>}, {transform_indices = @transform_2, window_bounds = array<i64: 1, 8, 128>}, {transform_indices = @transform_3, window_bounds = array<i64: 1, 8, 8>}, {transform_indices = @transform_4, window_bounds = array<i64: 1, 8, 128>}]} {
    %c0_i32 = arith.constant 0 : i32
    %0 = arith.cmpi eq, %arg2, %c0_i32 : i32
    %1 = arith.extui %0 : i1 to i32
    %c0_i32_0 = arith.constant 0 : i32
    %2 = arith.cmpi ne, %1, %c0_i32_0 : i32
    scf.if %2 {
      %cst_98 = arith.constant -1.000000e+30 : f32
      %163 = vector.broadcast %cst_98 : f32 to vector<4x8x1xf32>
      %c0_99 = arith.constant 0 : index
      %c0_100 = arith.constant 0 : index
      %c0_101 = arith.constant 0 : index
      %164 = vector.load %arg8[%c0_99, %c0_100, %c0_101] : memref<4x8x1xf32, #tpu.memory_space<vmem>>, vector<4x8x1xf32>
      tpu.vector_store %arg8[%c0_99, %c0_100, %c0_101], %163 {strides = array<i32>} : memref<4x8x1xf32, #tpu.memory_space<vmem>>, vector<4x8x1xf32>,
      %cst_102 = arith.constant 0.000000e+00 : f32
      %165 = vector.broadcast %cst_102 : f32 to vector<4x8x1xf32>
      %c0_103 = arith.constant 0 : index
      %c0_104 = arith.constant 0 : index
      %c0_105 = arith.constant 0 : index
      %166 = vector.load %arg9[%c0_103, %c0_104, %c0_105] : memref<4x8x1xf32, #tpu.memory_space<vmem>>, vector<4x8x1xf32>
      tpu.vector_store %arg9[%c0_103, %c0_104, %c0_105], %165 {strides = array<i32>} : memref<4x8x1xf32, #tpu.memory_space<vmem>>, vector<4x8x1xf32>,
      %cst_106 = arith.constant 0.000000e+00 : f32
      %167 = vector.broadcast %cst_106 : f32 to vector<4x8x32xf32>
      %c0_107 = arith.constant 0 : index
      %c0_108 = arith.constant 0 : index
      %c0_109 = arith.constant 0 : index
      %168 = vector.load %arg10[%c0_107, %c0_108, %c0_109] : memref<4x8x32xf32, #tpu.memory_space<vmem>>, vector<4x8x32xf32>
      tpu.vector_store %arg10[%c0_107, %c0_108, %c0_109], %167 {strides = array<i32>} : memref<4x8x32xf32, #tpu.memory_space<vmem>>, vector<4x8x32xf32>,
    } else {
    }
    %c0 = arith.constant 0 : index
    %c0_1 = arith.constant 0 : index
    %c0_2 = arith.constant 0 : index
    %3 = vector.load %arg3[%c0, %c0_1, %c0_2] : memref<1x8x128xbf16, #tpu.memory_space<vmem>>, vector<1x8x128xbf16>
    %4 = vector.shape_cast %3 : vector<1x8x128xbf16> to vector<8x128xbf16>
    %c0_3 = arith.constant 0 : index
    %c0_4 = arith.constant 0 : index
    %c0_5 = arith.constant 0 : index
    %5 = vector.load %arg4[%c0_3, %c0_4, %c0_5] : memref<1x8x128xbf16, #tpu.memory_space<vmem>>, vector<1x8x128xbf16>
    %6 = vector.shape_cast %5 : vector<1x8x128xbf16> to vector<8x128xbf16>
    %c0_6 = arith.constant 0 : index
    %c0_7 = arith.constant 0 : index
    %c0_8 = arith.constant 0 : index
    %7 = vector.load %arg5[%c0_6, %c0_7, %c0_8] : memref<1x8x128xbf16, #tpu.memory_space<vmem>>, vector<1x8x128xbf16>
    %8 = vector.shape_cast %7 : vector<1x8x128xbf16> to vector<8x128xbf16>
    %c0_9 = arith.constant 0 : index
    %c0_10 = arith.constant 0 : index
    %c0_11 = arith.constant 0 : index
    %9 = vector.load %arg6[%c0_9, %c0_10, %c0_11] : memref<1x8x8xbf16, #tpu.memory_space<vmem>>, vector<1x8x8xbf16>
    %10 = vector.shape_cast %9 : vector<1x8x8xbf16> to vector<8x8xbf16>
    %11 = arith.extf %10 : vector<8x8xbf16> to vector<8x8xf32>
    %12 = vector.extract_strided_slice %4 {offsets = [0, 0], sizes = [8, 32], strides = [1, 1]} : vector<8x128xbf16> to vector<8x32xbf16>
    %13 = vector.extract_strided_slice %6 {offsets = [0, 0], sizes = [8, 32], strides = [1, 1]} : vector<8x128xbf16> to vector<8x32xbf16>
    %cst = arith.constant dense<0.000000e+00> : vector<8x8xf32>
    %14 = tpu.matmul %12, %13, %cst {dimension_numbers = #tpu.dot_dimension_numbers<[1], [1], [0], [0], [0, 0, 1, 0], [], []>} : vector<8x32xbf16>, vector<8x32xbf16>, vector<8x8xf32> -> vector<8x8xf32>
    %15 = arith.addf %14, %11 : vector<8x8xf32>
    %c0_12 = arith.constant 0 : index
    %c0_13 = arith.constant 0 : index
    %c0_14 = arith.constant 0 : index
    %16 = vector.load %arg8[%c0_12, %c0_13, %c0_14] : memref<4x8x1xf32, #tpu.memory_space<vmem>>, vector<1x8x1xf32>
    %17 = vector.shape_cast %16 : vector<1x8x1xf32> to vector<8x1xf32>
    %cst_15 = arith.constant dense<0xFF800000> : vector<8xf32>
    %18 = vector.multi_reduction <maximumf>, %15, %cst_15 [1] : vector<8x8xf32> to vector<8xf32>
    %19 = vector.shape_cast %18 : vector<8xf32> to vector<8x1xf32>
    %20 = arith.maximumf %17, %19 : vector<8x1xf32>
    %21 = arith.subf %17, %20 : vector<8x1xf32>
    %22 = math.exp %21 : vector<8x1xf32>
    %23 = vector.broadcast %20 : vector<8x1xf32> to vector<8x8xf32>
    %24 = arith.subf %15, %23 : vector<8x8xf32>
    %25 = math.exp %24 : vector<8x8xf32>
    %c0_16 = arith.constant 0 : index
    %c0_17 = arith.constant 0 : index
    %c0_18 = arith.constant 0 : index
    %26 = vector.load %arg9[%c0_16, %c0_17, %c0_18] : memref<4x8x1xf32, #tpu.memory_space<vmem>>, vector<1x8x1xf32>
    %27 = vector.shape_cast %26 : vector<1x8x1xf32> to vector<8x1xf32>
    %28 = arith.mulf %22, %27 : vector<8x1xf32>
    %cst_19 = arith.constant dense<0.000000e+00> : vector<8xf32>
    %29 = vector.multi_reduction <add>, %25, %cst_19 [1] : vector<8x8xf32> to vector<8xf32>
    %30 = vector.shape_cast %29 : vector<8xf32> to vector<8x1xf32>
    %31 = arith.addf %28, %30 : vector<8x1xf32>
    %c0_20 = arith.constant 0 : index
    %c0_21 = arith.constant 0 : index
    %c0_22 = arith.constant 0 : index
    %32 = vector.load %arg9[%c0_20, %c0_21, %c0_22] : memref<4x8x1xf32, #tpu.memory_space<vmem>>, vector<1x8x1xf32>
    %33 = vector.shape_cast %32 : vector<1x8x1xf32> to vector<8x1xf32>
    %34 = vector.shape_cast %31 : vector<8x1xf32> to vector<1x8x1xf32>
    tpu.vector_store %arg9[%c0_20, %c0_21, %c0_22], %34 {strides = array<i32>} : memref<4x8x1xf32, #tpu.memory_space<vmem>>, vector<1x8x1xf32>,
    %c0_23 = arith.constant 0 : index
    %c0_24 = arith.constant 0 : index
    %c0_25 = arith.constant 0 : index
    %35 = vector.load %arg10[%c0_23, %c0_24, %c0_25] : memref<4x8x32xf32, #tpu.memory_space<vmem>>, vector<1x8x32xf32>
    %36 = vector.shape_cast %35 : vector<1x8x32xf32> to vector<8x32xf32>
    %37 = vector.broadcast %22 : vector<8x1xf32> to vector<8x32xf32>
    %38 = arith.mulf %37, %36 : vector<8x32xf32>
    %39 = arith.truncf %25 : vector<8x8xf32> to vector<8x8xbf16>
    %40 = vector.extract_strided_slice %8 {offsets = [0, 0], sizes = [8, 32], strides = [1, 1]} : vector<8x128xbf16> to vector<8x32xbf16>
    %cst_26 = arith.constant dense<0.000000e+00> : vector<8x32xf32>
    %41 = tpu.matmul %39, %40, %cst_26 {dimension_numbers = #tpu.dot_dimension_numbers<[1], [0], [0], [1], [0, 0, 1, 1], [], []>} : vector<8x8xbf16>, vector<8x32xbf16>, vector<8x32xf32> -> vector<8x32xf32>
    %42 = arith.addf %38, %41 : vector<8x32xf32>
    %c0_27 = arith.constant 0 : index
    %c0_28 = arith.constant 0 : index
    %c0_29 = arith.constant 0 : index
    %43 = vector.load %arg10[%c0_27, %c0_28, %c0_29] : memref<4x8x32xf32, #tpu.memory_space<vmem>>, vector<1x8x32xf32>
    %44 = vector.shape_cast %43 : vector<1x8x32xf32> to vector<8x32xf32>
    %45 = vector.shape_cast %42 : vector<8x32xf32> to vector<1x8x32xf32>
    tpu.vector_store %arg10[%c0_27, %c0_28, %c0_29], %45 {strides = array<i32>} : memref<4x8x32xf32, #tpu.memory_space<vmem>>, vector<1x8x32xf32>,
    %c0_30 = arith.constant 0 : index
    %c0_31 = arith.constant 0 : index
    %c0_32 = arith.constant 0 : index
    %46 = vector.load %arg8[%c0_30, %c0_31, %c0_32] : memref<4x8x1xf32, #tpu.memory_space<vmem>>, vector<1x8x1xf32>
    %47 = vector.shape_cast %46 : vector<1x8x1xf32> to vector<8x1xf32>
    %48 = vector.shape_cast %20 : vector<8x1xf32> to vector<1x8x1xf32>
    tpu.vector_store %arg8[%c0_30, %c0_31, %c0_32], %48 {strides = array<i32>} : memref<4x8x1xf32, #tpu.memory_space<vmem>>, vector<1x8x1xf32>,
    %49 = vector.extract_strided_slice %4 {offsets = [0, 32], sizes = [8, 32], strides = [1, 1]} : vector<8x128xbf16> to vector<8x32xbf16>
    %50 = vector.extract_strided_slice %6 {offsets = [0, 32], sizes = [8, 32], strides = [1, 1]} : vector<8x128xbf16> to vector<8x32xbf16>
    %cst_33 = arith.constant dense<0.000000e+00> : vector<8x8xf32>
    %51 = tpu.matmul %49, %50, %cst_33 {dimension_numbers = #tpu.dot_dimension_numbers<[1], [1], [0], [0], [0, 0, 1, 0], [], []>} : vector<8x32xbf16>, vector<8x32xbf16>, vector<8x8xf32> -> vector<8x8xf32>
    %52 = arith.addf %51, %11 : vector<8x8xf32>
    %c1 = arith.constant 1 : index
    %c0_34 = arith.constant 0 : index
    %c0_35 = arith.constant 0 : index
    %53 = vector.load %arg8[%c1, %c0_34, %c0_35] : memref<4x8x1xf32, #tpu.memory_space<vmem>>, vector<1x8x1xf32>
    %54 = vector.shape_cast %53 : vector<1x8x1xf32> to vector<8x1xf32>
    %cst_36 = arith.constant dense<0xFF800000> : vector<8xf32>
    %55 = vector.multi_reduction <maximumf>, %52, %cst_36 [1] : vector<8x8xf32> to vector<8xf32>
    %56 = vector.shape_cast %55 : vector<8xf32> to vector<8x1xf32>
    %57 = arith.maximumf %54, %56 : vector<8x1xf32>
    %58 = arith.subf %54, %57 : vector<8x1xf32>
    %59 = math.exp %58 : vector<8x1xf32>
    %60 = vector.broadcast %57 : vector<8x1xf32> to vector<8x8xf32>
    %61 = arith.subf %52, %60 : vector<8x8xf32>
    %62 = math.exp %61 : vector<8x8xf32>
    %c1_37 = arith.constant 1 : index
    %c0_38 = arith.constant 0 : index
    %c0_39 = arith.constant 0 : index
    %63 = vector.load %arg9[%c1_37, %c0_38, %c0_39] : memref<4x8x1xf32, #tpu.memory_space<vmem>>, vector<1x8x1xf32>
    %64 = vector.shape_cast %63 : vector<1x8x1xf32> to vector<8x1xf32>
    %65 = arith.mulf %59, %64 : vector<8x1xf32>
    %cst_40 = arith.constant dense<0.000000e+00> : vector<8xf32>
    %66 = vector.multi_reduction <add>, %62, %cst_40 [1] : vector<8x8xf32> to vector<8xf32>
    %67 = vector.shape_cast %66 : vector<8xf32> to vector<8x1xf32>
    %68 = arith.addf %65, %67 : vector<8x1xf32>
    %c1_41 = arith.constant 1 : index
    %c0_42 = arith.constant 0 : index
    %c0_43 = arith.constant 0 : index
    %69 = vector.load %arg9[%c1_41, %c0_42, %c0_43] : memref<4x8x1xf32, #tpu.memory_space<vmem>>, vector<1x8x1xf32>
    %70 = vector.shape_cast %69 : vector<1x8x1xf32> to vector<8x1xf32>
    %71 = vector.shape_cast %68 : vector<8x1xf32> to vector<1x8x1xf32>
    tpu.vector_store %arg9[%c1_41, %c0_42, %c0_43], %71 {strides = array<i32>} : memref<4x8x1xf32, #tpu.memory_space<vmem>>, vector<1x8x1xf32>,
    %c1_44 = arith.constant 1 : index
    %c0_45 = arith.constant 0 : index
    %c0_46 = arith.constant 0 : index
    %72 = vector.load %arg10[%c1_44, %c0_45, %c0_46] : memref<4x8x32xf32, #tpu.memory_space<vmem>>, vector<1x8x32xf32>
    %73 = vector.shape_cast %72 : vector<1x8x32xf32> to vector<8x32xf32>
    %74 = vector.broadcast %59 : vector<8x1xf32> to vector<8x32xf32>
    %75 = arith.mulf %74, %73 : vector<8x32xf32>
    %76 = arith.truncf %62 : vector<8x8xf32> to vector<8x8xbf16>
    %77 = vector.extract_strided_slice %8 {offsets = [0, 32], sizes = [8, 32], strides = [1, 1]} : vector<8x128xbf16> to vector<8x32xbf16>
    %cst_47 = arith.constant dense<0.000000e+00> : vector<8x32xf32>
    %78 = tpu.matmul %76, %77, %cst_47 {dimension_numbers = #tpu.dot_dimension_numbers<[1], [0], [0], [1], [0, 0, 1, 1], [], []>} : vector<8x8xbf16>, vector<8x32xbf16>, vector<8x32xf32> -> vector<8x32xf32>
    %79 = arith.addf %75, %78 : vector<8x32xf32>
    %c1_48 = arith.constant 1 : index
    %c0_49 = arith.constant 0 : index
    %c0_50 = arith.constant 0 : index
    %80 = vector.load %arg10[%c1_48, %c0_49, %c0_50] : memref<4x8x32xf32, #tpu.memory_space<vmem>>, vector<1x8x32xf32>
    %81 = vector.shape_cast %80 : vector<1x8x32xf32> to vector<8x32xf32>
    %82 = vector.shape_cast %79 : vector<8x32xf32> to vector<1x8x32xf32>
    tpu.vector_store %arg10[%c1_48, %c0_49, %c0_50], %82 {strides = array<i32>} : memref<4x8x32xf32, #tpu.memory_space<vmem>>, vector<1x8x32xf32>,
    %c1_51 = arith.constant 1 : index
    %c0_52 = arith.constant 0 : index
    %c0_53 = arith.constant 0 : index
    %83 = vector.load %arg8[%c1_51, %c0_52, %c0_53] : memref<4x8x1xf32, #tpu.memory_space<vmem>>, vector<1x8x1xf32>
    %84 = vector.shape_cast %83 : vector<1x8x1xf32> to vector<8x1xf32>
    %85 = vector.shape_cast %57 : vector<8x1xf32> to vector<1x8x1xf32>
    tpu.vector_store %arg8[%c1_51, %c0_52, %c0_53], %85 {strides = array<i32>} : memref<4x8x1xf32, #tpu.memory_space<vmem>>, vector<1x8x1xf32>,
    %86 = vector.extract_strided_slice %4 {offsets = [0, 64], sizes = [8, 32], strides = [1, 1]} : vector<8x128xbf16> to vector<8x32xbf16>
    %87 = vector.extract_strided_slice %6 {offsets = [0, 64], sizes = [8, 32], strides = [1, 1]} : vector<8x128xbf16> to vector<8x32xbf16>
    %cst_54 = arith.constant dense<0.000000e+00> : vector<8x8xf32>
    %88 = tpu.matmul %86, %87, %cst_54 {dimension_numbers = #tpu.dot_dimension_numbers<[1], [1], [0], [0], [0, 0, 1, 0], [], []>} : vector<8x32xbf16>, vector<8x32xbf16>, vector<8x8xf32> -> vector<8x8xf32>
    %89 = arith.addf %88, %11 : vector<8x8xf32>
    %c2 = arith.constant 2 : index
    %c0_55 = arith.constant 0 : index
    %c0_56 = arith.constant 0 : index
    %90 = vector.load %arg8[%c2, %c0_55, %c0_56] : memref<4x8x1xf32, #tpu.memory_space<vmem>>, vector<1x8x1xf32>
    %91 = vector.shape_cast %90 : vector<1x8x1xf32> to vector<8x1xf32>
    %cst_57 = arith.constant dense<0xFF800000> : vector<8xf32>
    %92 = vector.multi_reduction <maximumf>, %89, %cst_57 [1] : vector<8x8xf32> to vector<8xf32>
    %93 = vector.shape_cast %92 : vector<8xf32> to vector<8x1xf32>
    %94 = arith.maximumf %91, %93 : vector<8x1xf32>
    %95 = arith.subf %91, %94 : vector<8x1xf32>
    %96 = math.exp %95 : vector<8x1xf32>
    %97 = vector.broadcast %94 : vector<8x1xf32> to vector<8x8xf32>
    %98 = arith.subf %89, %97 : vector<8x8xf32>
    %99 = math.exp %98 : vector<8x8xf32>
    %c2_58 = arith.constant 2 : index
    %c0_59 = arith.constant 0 : index
    %c0_60 = arith.constant 0 : index
    %100 = vector.load %arg9[%c2_58, %c0_59, %c0_60] : memref<4x8x1xf32, #tpu.memory_space<vmem>>, vector<1x8x1xf32>
    %101 = vector.shape_cast %100 : vector<1x8x1xf32> to vector<8x1xf32>
    %102 = arith.mulf %96, %101 : vector<8x1xf32>
    %cst_61 = arith.constant dense<0.000000e+00> : vector<8xf32>
    %103 = vector.multi_reduction <add>, %99, %cst_61 [1] : vector<8x8xf32> to vector<8xf32>
    %104 = vector.shape_cast %103 : vector<8xf32> to vector<8x1xf32>
    %105 = arith.addf %102, %104 : vector<8x1xf32>
    %c2_62 = arith.constant 2 : index
    %c0_63 = arith.constant 0 : index
    %c0_64 = arith.constant 0 : index
    %106 = vector.load %arg9[%c2_62, %c0_63, %c0_64] : memref<4x8x1xf32, #tpu.memory_space<vmem>>, vector<1x8x1xf32>
    %107 = vector.shape_cast %106 : vector<1x8x1xf32> to vector<8x1xf32>
    %108 = vector.shape_cast %105 : vector<8x1xf32> to vector<1x8x1xf32>
    tpu.vector_store %arg9[%c2_62, %c0_63, %c0_64], %108 {strides = array<i32>} : memref<4x8x1xf32, #tpu.memory_space<vmem>>, vector<1x8x1xf32>,
    %c2_65 = arith.constant 2 : index
    %c0_66 = arith.constant 0 : index
    %c0_67 = arith.constant 0 : index
    %109 = vector.load %arg10[%c2_65, %c0_66, %c0_67] : memref<4x8x32xf32, #tpu.memory_space<vmem>>, vector<1x8x32xf32>
    %110 = vector.shape_cast %109 : vector<1x8x32xf32> to vector<8x32xf32>
    %111 = vector.broadcast %96 : vector<8x1xf32> to vector<8x32xf32>
    %112 = arith.mulf %111, %110 : vector<8x32xf32>
    %113 = arith.truncf %99 : vector<8x8xf32> to vector<8x8xbf16>
    %114 = vector.extract_strided_slice %8 {offsets = [0, 64], sizes = [8, 32], strides = [1, 1]} : vector<8x128xbf16> to vector<8x32xbf16>
    %cst_68 = arith.constant dense<0.000000e+00> : vector<8x32xf32>
    %115 = tpu.matmul %113, %114, %cst_68 {dimension_numbers = #tpu.dot_dimension_numbers<[1], [0], [0], [1], [0, 0, 1, 1], [], []>} : vector<8x8xbf16>, vector<8x32xbf16>, vector<8x32xf32> -> vector<8x32xf32>
    %116 = arith.addf %112, %115 : vector<8x32xf32>
    %c2_69 = arith.constant 2 : index
    %c0_70 = arith.constant 0 : index
    %c0_71 = arith.constant 0 : index
    %117 = vector.load %arg10[%c2_69, %c0_70, %c0_71] : memref<4x8x32xf32, #tpu.memory_space<vmem>>, vector<1x8x32xf32>
    %118 = vector.shape_cast %117 : vector<1x8x32xf32> to vector<8x32xf32>
    %119 = vector.shape_cast %116 : vector<8x32xf32> to vector<1x8x32xf32>
    tpu.vector_store %arg10[%c2_69, %c0_70, %c0_71], %119 {strides = array<i32>} : memref<4x8x32xf32, #tpu.memory_space<vmem>>, vector<1x8x32xf32>,
    %c2_72 = arith.constant 2 : index
    %c0_73 = arith.constant 0 : index
    %c0_74 = arith.constant 0 : index
    %120 = vector.load %arg8[%c2_72, %c0_73, %c0_74] : memref<4x8x1xf32, #tpu.memory_space<vmem>>, vector<1x8x1xf32>
    %121 = vector.shape_cast %120 : vector<1x8x1xf32> to vector<8x1xf32>
    %122 = vector.shape_cast %94 : vector<8x1xf32> to vector<1x8x1xf32>
    tpu.vector_store %arg8[%c2_72, %c0_73, %c0_74], %122 {strides = array<i32>} : memref<4x8x1xf32, #tpu.memory_space<vmem>>, vector<1x8x1xf32>,
    %123 = vector.extract_strided_slice %4 {offsets = [0, 96], sizes = [8, 32], strides = [1, 1]} : vector<8x128xbf16> to vector<8x32xbf16>
    %124 = vector.extract_strided_slice %6 {offsets = [0, 96], sizes = [8, 32], strides = [1, 1]} : vector<8x128xbf16> to vector<8x32xbf16>
    %cst_75 = arith.constant dense<0.000000e+00> : vector<8x8xf32>
    %125 = tpu.matmul %123, %124, %cst_75 {dimension_numbers = #tpu.dot_dimension_numbers<[1], [1], [0], [0], [0, 0, 1, 0], [], []>} : vector<8x32xbf16>, vector<8x32xbf16>, vector<8x8xf32> -> vector<8x8xf32>
    %126 = arith.addf %125, %11 : vector<8x8xf32>
    %c3 = arith.constant 3 : index
    %c0_76 = arith.constant 0 : index
    %c0_77 = arith.constant 0 : index
    %127 = vector.load %arg8[%c3, %c0_76, %c0_77] : memref<4x8x1xf32, #tpu.memory_space<vmem>>, vector<1x8x1xf32>
    %128 = vector.shape_cast %127 : vector<1x8x1xf32> to vector<8x1xf32>
    %cst_78 = arith.constant dense<0xFF800000> : vector<8xf32>
    %129 = vector.multi_reduction <maximumf>, %126, %cst_78 [1] : vector<8x8xf32> to vector<8xf32>
    %130 = vector.shape_cast %129 : vector<8xf32> to vector<8x1xf32>
    %131 = arith.maximumf %128, %130 : vector<8x1xf32>
    %132 = arith.subf %128, %131 : vector<8x1xf32>
    %133 = math.exp %132 : vector<8x1xf32>
    %134 = vector.broadcast %131 : vector<8x1xf32> to vector<8x8xf32>
    %135 = arith.subf %126, %134 : vector<8x8xf32>
    %136 = math.exp %135 : vector<8x8xf32>
    %c3_79 = arith.constant 3 : index
    %c0_80 = arith.constant 0 : index
    %c0_81 = arith.constant 0 : index
    %137 = vector.load %arg9[%c3_79, %c0_80, %c0_81] : memref<4x8x1xf32, #tpu.memory_space<vmem>>, vector<1x8x1xf32>
    %138 = vector.shape_cast %137 : vector<1x8x1xf32> to vector<8x1xf32>
    %139 = arith.mulf %133, %138 : vector<8x1xf32>
    %cst_82 = arith.constant dense<0.000000e+00> : vector<8xf32>
    %140 = vector.multi_reduction <add>, %136, %cst_82 [1] : vector<8x8xf32> to vector<8xf32>
    %141 = vector.shape_cast %140 : vector<8xf32> to vector<8x1xf32>
    %142 = arith.addf %139, %141 : vector<8x1xf32>
    %c3_83 = arith.constant 3 : index
    %c0_84 = arith.constant 0 : index
    %c0_85 = arith.constant 0 : index
    %143 = vector.load %arg9[%c3_83, %c0_84, %c0_85] : memref<4x8x1xf32, #tpu.memory_space<vmem>>, vector<1x8x1xf32>
    %144 = vector.shape_cast %143 : vector<1x8x1xf32> to vector<8x1xf32>
    %145 = vector.shape_cast %142 : vector<8x1xf32> to vector<1x8x1xf32>
    tpu.vector_store %arg9[%c3_83, %c0_84, %c0_85], %145 {strides = array<i32>} : memref<4x8x1xf32, #tpu.memory_space<vmem>>, vector<1x8x1xf32>,
    %c3_86 = arith.constant 3 : index
    %c0_87 = arith.constant 0 : index
    %c0_88 = arith.constant 0 : index
    %146 = vector.load %arg10[%c3_86, %c0_87, %c0_88] : memref<4x8x32xf32, #tpu.memory_space<vmem>>, vector<1x8x32xf32>
    %147 = vector.shape_cast %146 : vector<1x8x32xf32> to vector<8x32xf32>
    %148 = vector.broadcast %133 : vector<8x1xf32> to vector<8x32xf32>
    %149 = arith.mulf %148, %147 : vector<8x32xf32>
    %150 = arith.truncf %136 : vector<8x8xf32> to vector<8x8xbf16>
    %151 = vector.extract_strided_slice %8 {offsets = [0, 96], sizes = [8, 32], strides = [1, 1]} : vector<8x128xbf16> to vector<8x32xbf16>
    %cst_89 = arith.constant dense<0.000000e+00> : vector<8x32xf32>
    %152 = tpu.matmul %150, %151, %cst_89 {dimension_numbers = #tpu.dot_dimension_numbers<[1], [0], [0], [1], [0, 0, 1, 1], [], []>} : vector<8x8xbf16>, vector<8x32xbf16>, vector<8x32xf32> -> vector<8x32xf32>
    %153 = arith.addf %149, %152 : vector<8x32xf32>
    %c3_90 = arith.constant 3 : index
    %c0_91 = arith.constant 0 : index
    %c0_92 = arith.constant 0 : index
    %154 = vector.load %arg10[%c3_90, %c0_91, %c0_92] : memref<4x8x32xf32, #tpu.memory_space<vmem>>, vector<1x8x32xf32>
    %155 = vector.shape_cast %154 : vector<1x8x32xf32> to vector<8x32xf32>
    %156 = vector.shape_cast %153 : vector<8x32xf32> to vector<1x8x32xf32>
    tpu.vector_store %arg10[%c3_90, %c0_91, %c0_92], %156 {strides = array<i32>} : memref<4x8x32xf32, #tpu.memory_space<vmem>>, vector<1x8x32xf32>,
    %c3_93 = arith.constant 3 : index
    %c0_94 = arith.constant 0 : index
    %c0_95 = arith.constant 0 : index
    %157 = vector.load %arg8[%c3_93, %c0_94, %c0_95] : memref<4x8x1xf32, #tpu.memory_space<vmem>>, vector<1x8x1xf32>
    %158 = vector.shape_cast %157 : vector<1x8x1xf32> to vector<8x1xf32>
    %159 = vector.shape_cast %131 : vector<8x1xf32> to vector<1x8x1xf32>
    tpu.vector_store %arg8[%c3_93, %c0_94, %c0_95], %159 {strides = array<i32>} : memref<4x8x1xf32, #tpu.memory_space<vmem>>, vector<1x8x1xf32>,
    %c0_i32_96 = arith.constant 0 : i32
    %160 = arith.cmpi eq, %arg2, %c0_i32_96 : i32
    %161 = arith.extui %160 : i1 to i32
    %c0_i32_97 = arith.constant 0 : i32
    %162 = arith.cmpi ne, %161, %c0_i32_97 : i32
    scf.if %162 {
      %c0_98 = arith.constant 0 : index
      %c0_99 = arith.constant 0 : index
      %c0_100 = arith.constant 0 : index
      %163 = vector.load %arg10[%c0_98, %c0_99, %c0_100] : memref<4x8x32xf32, #tpu.memory_space<vmem>>, vector<1x8x32xf32>
      %164 = vector.shape_cast %163 : vector<1x8x32xf32> to vector<8x32xf32>
      %c0_101 = arith.constant 0 : index
      %c0_102 = arith.constant 0 : index
      %c0_103 = arith.constant 0 : index
      %165 = vector.load %arg9[%c0_101, %c0_102, %c0_103] : memref<4x8x1xf32, #tpu.memory_space<vmem>>, vector<1x8x1xf32>
      %166 = vector.shape_cast %165 : vector<1x8x1xf32> to vector<8x1xf32>
      %167 = tpu.reciprocal %166 {approx = true} : vector<8x1xf32> -> vector<8x1xf32>
      %168 = vector.broadcast %167 : vector<8x1xf32> to vector<8x32xf32>
      %169 = arith.mulf %164, %168 : vector<8x32xf32>
      %c1_104 = arith.constant 1 : index
      %c0_105 = arith.constant 0 : index
      %c0_106 = arith.constant 0 : index
      %170 = vector.load %arg10[%c1_104, %c0_105, %c0_106] : memref<4x8x32xf32, #tpu.memory_space<vmem>>, vector<1x8x32xf32>
      %171 = vector.shape_cast %170 : vector<1x8x32xf32> to vector<8x32xf32>
      %c1_107 = arith.constant 1 : index
      %c0_108 = arith.constant 0 : index
      %c0_109 = arith.constant 0 : index
      %172 = vector.load %arg9[%c1_107, %c0_108, %c0_109] : memref<4x8x1xf32, #tpu.memory_space<vmem>>, vector<1x8x1xf32>
      %173 = vector.shape_cast %172 : vector<1x8x1xf32> to vector<8x1xf32>
      %174 = tpu.reciprocal %173 {approx = true} : vector<8x1xf32> -> vector<8x1xf32>
      %175 = vector.broadcast %174 : vector<8x1xf32> to vector<8x32xf32>
      %176 = arith.mulf %171, %175 : vector<8x32xf32>
      %c2_110 = arith.constant 2 : index
      %c0_111 = arith.constant 0 : index
      %c0_112 = arith.constant 0 : index
      %177 = vector.load %arg10[%c2_110, %c0_111, %c0_112] : memref<4x8x32xf32, #tpu.memory_space<vmem>>, vector<1x8x32xf32>
      %178 = vector.shape_cast %177 : vector<1x8x32xf32> to vector<8x32xf32>
      %c2_113 = arith.constant 2 : index
      %c0_114 = arith.constant 0 : index
      %c0_115 = arith.constant 0 : index
      %179 = vector.load %arg9[%c2_113, %c0_114, %c0_115] : memref<4x8x1xf32, #tpu.memory_space<vmem>>, vector<1x8x1xf32>
      %180 = vector.shape_cast %179 : vector<1x8x1xf32> to vector<8x1xf32>
      %181 = tpu.reciprocal %180 {approx = true} : vector<8x1xf32> -> vector<8x1xf32>
      %182 = vector.broadcast %181 : vector<8x1xf32> to vector<8x32xf32>
      %183 = arith.mulf %178, %182 : vector<8x32xf32>
      %c3_116 = arith.constant 3 : index
      %c0_117 = arith.constant 0 : index
      %c0_118 = arith.constant 0 : index
      %184 = vector.load %arg10[%c3_116, %c0_117, %c0_118] : memref<4x8x32xf32, #tpu.memory_space<vmem>>, vector<1x8x32xf32>
      %185 = vector.shape_cast %184 : vector<1x8x32xf32> to vector<8x32xf32>
      %c3_119 = arith.constant 3 : index
      %c0_120 = arith.constant 0 : index
      %c0_121 = arith.constant 0 : index
      %186 = vector.load %arg9[%c3_119, %c0_120, %c0_121] : memref<4x8x1xf32, #tpu.memory_space<vmem>>, vector<1x8x1xf32>
      %187 = vector.shape_cast %186 : vector<1x8x1xf32> to vector<8x1xf32>
      %188 = tpu.reciprocal %187 {approx = true} : vector<8x1xf32> -> vector<8x1xf32>
      %189 = vector.broadcast %188 : vector<8x1xf32> to vector<8x32xf32>
      %190 = arith.mulf %185, %189 : vector<8x32xf32>
      %191 = tpu.concatenate %169, %176, %183, %190 in 1 : vector<8x32xf32>, vector<8x32xf32>, vector<8x32xf32>, vector<8x32xf32> -> vector<8x128xf32>
      %192 = arith.truncf %191 : vector<8x128xf32> to vector<8x128xbf16>
      %c0_122 = arith.constant 0 : index
      %c0_123 = arith.constant 0 : index
      %c0_124 = arith.constant 0 : index
      %193 = vector.load %arg7[%c0_122, %c0_123, %c0_124] : memref<1x8x128xbf16, #tpu.memory_space<vmem>>, vector<1x8x128xbf16>
      %194 = vector.shape_cast %193 : vector<1x8x128xbf16> to vector<8x128xbf16>
      %195 = vector.shape_cast %192 : vector<8x128xbf16> to vector<1x8x128xbf16>
      tpu.vector_store %arg7[%c0_122, %c0_123, %c0_124], %195 {strides = array<i32>} : memref<1x8x128xbf16, #tpu.memory_space<vmem>>, vector<1x8x128xbf16>,
    } else {
    }
    return
  }
  func.func @transform_0(%arg0: i32, %arg1: i32, %arg2: i32) -> (i32, i32, i32) {
    %c0_i32 = arith.constant 0 : i32
    %c0_i32_0 = arith.constant 0 : i32
    return %arg0, %arg1, %c0_i32 : i32, i32, i32
  }
  func.func @transform_1(%arg0: i32, %arg1: i32, %arg2: i32) -> (i32, i32, i32) {
    %c1_i32 = arith.constant 1 : i32
    %c0_i32 = arith.constant 0 : i32
    return %arg0, %arg2, %c1_i32 : i32, i32, i32
  }
  func.func @transform_2(%arg0: i32, %arg1: i32, %arg2: i32) -> (i32, i32, i32) {
    %c2_i32 = arith.constant 2 : i32
    %c0_i32 = arith.constant 0 : i32
    return %arg0, %arg2, %c2_i32 : i32, i32, i32
  }
  func.func @transform_3(%arg0: i32, %arg1: i32, %arg2: i32) -> (i32, i32, i32) {
    %c0_i32 = arith.constant 0 : i32
    return %arg0, %arg1, %arg2 : i32, i32, i32
  }
  func.func @transform_4(%arg0: i32, %arg1: i32, %arg2: i32) -> (i32, i32, i32) {
    %c0_i32 = arith.constant 0 : i32
    %c0_i32_0 = arith.constant 0 : i32
    return %arg0, %arg1, %c0_i32 : i32, i32, i32
  }
}

module attributes {stable_mosaic.version = 11 : i64} {
  func.func @_ln_matmul_kernel(%arg0: i32, %arg1: i32, %arg2: memref<16x128xf32, #tpu.memory_space<vmem>>, %arg3: memref<1x128xf32, #tpu.memory_space<vmem>>, %arg4: memref<1x128xf32, #tpu.memory_space<vmem>>, %arg5: memref<128x256xbf16, #tpu.memory_space<vmem>>, %arg6: memref<1x256xf32, #tpu.memory_space<vmem>>, %arg7: memref<16x256xbf16, #tpu.memory_space<vmem>>, %arg8: memref<16x128xbf16, #tpu.memory_space<vmem>>) attributes {dimension_semantics = [#tpu.dimension_semantics<parallel>, #tpu.dimension_semantics<arbitrary>], iteration_bounds = array<i64: 1, 1>, scalar_prefetch = 0 : i64, scratch_operands = 1 : i64, tpu.core_type = #tpu.core_type<tc>, window_params = [{transform_indices = @transform_0, window_bounds = array<i64: 16, 128>}, {pipeline_mode = #tpu.pipeline_mode<synchronous>, transform_indices = @transform_1, window_bounds = array<i64: 1, 128>}, {pipeline_mode = #tpu.pipeline_mode<synchronous>, transform_indices = @transform_2, window_bounds = array<i64: 1, 128>}, {transform_indices = @transform_3, window_bounds = array<i64: 128, 256>}, {transform_indices = @transform_4, window_bounds = array<i64: 1, 256>}, {transform_indices = @transform_5, window_bounds = array<i64: 16, 256>}]} {
    %c0_i32 = arith.constant 0 : i32
    %0 = arith.cmpi eq, %arg1, %c0_i32 : i32
    %1 = arith.extui %0 : i1 to i32
    %c0_i32_0 = arith.constant 0 : i32
    %2 = arith.cmpi ne, %1, %c0_i32_0 : i32
    scf.if %2 {
      %c0_9 = arith.constant 0 : index
      %c0_10 = arith.constant 0 : index
      %13 = vector.load %arg2[%c0_9, %c0_10] : memref<16x128xf32, #tpu.memory_space<vmem>>, vector<16x128xf32>
      %cst_11 = arith.constant dense<0.000000e+00> : vector<16xf32>
      %14 = vector.multi_reduction <add>, %13, %cst_11 [1] : vector<16x128xf32> to vector<16xf32>
      %15 = vector.shape_cast %14 : vector<16xf32> to vector<16x1xf32>
      %cst_12 = arith.constant 1.280000e+02 : f32
      %16 = vector.broadcast %cst_12 : f32 to vector<16x1xf32>
      %17 = arith.divf %15, %16 : vector<16x1xf32>
      %18 = vector.broadcast %17 : vector<16x1xf32> to vector<16x128xf32>
      %19 = arith.subf %13, %18 : vector<16x128xf32>
      %20 = arith.mulf %19, %19 : vector<16x128xf32>
      %cst_13 = arith.constant dense<0.000000e+00> : vector<16xf32>
      %21 = vector.multi_reduction <add>, %20, %cst_13 [1] : vector<16x128xf32> to vector<16xf32>
      %22 = vector.shape_cast %21 : vector<16xf32> to vector<16x1xf32>
      %cst_14 = arith.constant 0.00787401571 : f32
      %23 = vector.broadcast %cst_14 : f32 to vector<16x1xf32>
      %24 = arith.mulf %22, %23 : vector<16x1xf32>
      %25 = math.sqrt %24 : vector<16x1xf32>
      %cst_15 = arith.constant 9.99999997E-7 : f32
      %26 = vector.broadcast %cst_15 : f32 to vector<16x1xf32>
      %27 = arith.addf %25, %26 : vector<16x1xf32>
      %cst_16 = arith.constant 1.000000e+00 : f32
      %28 = vector.broadcast %cst_16 : f32 to vector<16x1xf32>
      %29 = arith.divf %28, %27 : vector<16x1xf32>
      %c0_17 = arith.constant 0 : index
      %c0_18 = arith.constant 0 : index
      %30 = vector.load %arg3[%c0_17, %c0_18] : memref<1x128xf32, #tpu.memory_space<vmem>>, vector<1x128xf32>
      %31 = vector.broadcast %30 : vector<1x128xf32> to vector<16x128xf32>
      %32 = arith.mulf %31, %19 : vector<16x128xf32>
      %33 = vector.broadcast %29 : vector<16x1xf32> to vector<16x128xf32>
      %34 = arith.mulf %32, %33 : vector<16x128xf32>
      %c0_19 = arith.constant 0 : index
      %c0_20 = arith.constant 0 : index
      %35 = vector.load %arg4[%c0_19, %c0_20] : memref<1x128xf32, #tpu.memory_space<vmem>>, vector<1x128xf32>
      %36 = vector.broadcast %35 : vector<1x128xf32> to vector<16x128xf32>
      %37 = arith.addf %34, %36 : vector<16x128xf32>
      %38 = arith.truncf %37 : vector<16x128xf32> to vector<16x128xbf16>
      %c0_21 = arith.constant 0 : index
      %c0_22 = arith.constant 0 : index
      %39 = vector.load %arg8[%c0_21, %c0_22] : memref<16x128xbf16, #tpu.memory_space<vmem>>, vector<16x128xbf16>
      tpu.vector_store %arg8[%c0_21, %c0_22], %38 {strides = array<i32>} : memref<16x128xbf16, #tpu.memory_space<vmem>>, vector<16x128xbf16>,
    } else {
    }
    %c0 = arith.constant 0 : index
    %c0_1 = arith.constant 0 : index
    %3 = vector.load %arg8[%c0, %c0_1] : memref<16x128xbf16, #tpu.memory_space<vmem>>, vector<16x128xbf16>
    %c0_2 = arith.constant 0 : index
    %c0_3 = arith.constant 0 : index
    %4 = vector.load %arg5[%c0_2, %c0_3] : memref<128x256xbf16, #tpu.memory_space<vmem>>, vector<128x256xbf16>
    %cst = arith.constant dense<0.000000e+00> : vector<16x256xf32>
    %5 = tpu.matmul %3, %4, %cst {dimension_numbers = #tpu.dot_dimension_numbers<[1], [0], [0], [1], [0, 0, 1, 1], [], []>} : vector<16x128xbf16>, vector<128x256xbf16>, vector<16x256xf32> -> vector<16x256xf32>
    %c0_4 = arith.constant 0 : index
    %c0_5 = arith.constant 0 : index
    %6 = vector.load %arg6[%c0_4, %c0_5] : memref<1x256xf32, #tpu.memory_space<vmem>>, vector<1x256xf32>
    %7 = vector.broadcast %6 : vector<1x256xf32> to vector<16x256xf32>
    %8 = arith.addf %5, %7 : vector<16x256xf32>
    %cst_6 = arith.constant 0.000000e+00 : f32
    %9 = vector.broadcast %cst_6 : f32 to vector<16x256xf32>
    %10 = arith.maximumf %8, %9 : vector<16x256xf32>
    %11 = arith.truncf %10 : vector<16x256xf32> to vector<16x256xbf16>
    %c0_7 = arith.constant 0 : index
    %c0_8 = arith.constant 0 : index
    %12 = vector.load %arg7[%c0_7, %c0_8] : memref<16x256xbf16, #tpu.memory_space<vmem>>, vector<16x256xbf16>
    tpu.vector_store %arg7[%c0_7, %c0_8], %11 {strides = array<i32>} : memref<16x256xbf16, #tpu.memory_space<vmem>>, vector<16x256xbf16>,
    return
  }
  func.func @transform_0(%arg0: i32, %arg1: i32) -> (i32, i32) {
    %c0_i32 = arith.constant 0 : i32
    %c0_i32_0 = arith.constant 0 : i32
    return %arg0, %c0_i32 : i32, i32
  }
  func.func @transform_1(%arg0: i32, %arg1: i32) -> (i32, i32) {
    %c0_i32 = arith.constant 0 : i32
    %c0_i32_0 = arith.constant 0 : i32
    %c0_i32_1 = arith.constant 0 : i32
    return %c0_i32, %c0_i32_0 : i32, i32
  }
  func.func @transform_2(%arg0: i32, %arg1: i32) -> (i32, i32) {
    %c0_i32 = arith.constant 0 : i32
    %c0_i32_0 = arith.constant 0 : i32
    %c0_i32_1 = arith.constant 0 : i32
    return %c0_i32, %c0_i32_0 : i32, i32
  }
  func.func @transform_3(%arg0: i32, %arg1: i32) -> (i32, i32) {
    %c0_i32 = arith.constant 0 : i32
    %c0_i32_0 = arith.constant 0 : i32
    return %c0_i32, %arg1 : i32, i32
  }
  func.func @transform_4(%arg0: i32, %arg1: i32) -> (i32, i32) {
    %c0_i32 = arith.constant 0 : i32
    %c0_i32_0 = arith.constant 0 : i32
    return %c0_i32, %arg1 : i32, i32
  }
  func.func @transform_5(%arg0: i32, %arg1: i32) -> (i32, i32) {
    %c0_i32 = arith.constant 0 : i32
    return %arg0, %arg1 : i32, i32
  }
}

module attributes {stable_mosaic.version = 11 : i64} {
  func.func @_matmul_residual_kernel(%arg0: i32, %arg1: i32, %arg2: i32, %arg3: memref<16x256xbf16, #tpu.memory_space<vmem>>, %arg4: memref<256x128xbf16, #tpu.memory_space<vmem>>, %arg5: memref<1x128xf32, #tpu.memory_space<vmem>>, %arg6: memref<16x128xf32, #tpu.memory_space<vmem>>, %arg7: memref<16x128xf32, #tpu.memory_space<vmem>>, %arg8: memref<16x128xf32, #tpu.memory_space<vmem>>) attributes {dimension_semantics = [#tpu.dimension_semantics<parallel>, #tpu.dimension_semantics<parallel>, #tpu.dimension_semantics<arbitrary>], iteration_bounds = array<i64: 1, 1, 1>, scalar_prefetch = 0 : i64, scratch_operands = 1 : i64, tpu.core_type = #tpu.core_type<tc>, window_params = [{transform_indices = @transform_0, window_bounds = array<i64: 16, 256>}, {transform_indices = @transform_1, window_bounds = array<i64: 256, 128>}, {transform_indices = @transform_2, window_bounds = array<i64: 1, 128>}, {transform_indices = @transform_3, window_bounds = array<i64: 16, 128>}, {transform_indices = @transform_4, window_bounds = array<i64: 16, 128>}]} {
    %c0_i32 = arith.constant 0 : i32
    %0 = arith.cmpi eq, %arg2, %c0_i32 : i32
    %1 = arith.extui %0 : i1 to i32
    %c0_i32_0 = arith.constant 0 : i32
    %2 = arith.cmpi ne, %1, %c0_i32_0 : i32
    scf.if %2 {
      %cst_10 = arith.constant 0.000000e+00 : f32
      %12 = vector.broadcast %cst_10 : f32 to vector<16x128xf32>
      %c0_11 = arith.constant 0 : index
      %c0_12 = arith.constant 0 : index
      %13 = vector.load %arg8[%c0_11, %c0_12] : memref<16x128xf32, #tpu.memory_space<vmem>>, vector<16x128xf32>
      tpu.vector_store %arg8[%c0_11, %c0_12], %12 {strides = array<i32>} : memref<16x128xf32, #tpu.memory_space<vmem>>, vector<16x128xf32>,
    } else {
    }
    %c0 = arith.constant 0 : index
    %c0_1 = arith.constant 0 : index
    %3 = vector.load %arg8[%c0, %c0_1] : memref<16x128xf32, #tpu.memory_space<vmem>>, vector<16x128xf32>
    %c0_2 = arith.constant 0 : index
    %c0_3 = arith.constant 0 : index
    %4 = vector.load %arg3[%c0_2, %c0_3] : memref<16x256xbf16, #tpu.memory_space<vmem>>, vector<16x256xbf16>
    %c0_4 = arith.constant 0 : index
    %c0_5 = arith.constant 0 : index
    %5 = vector.load %arg4[%c0_4, %c0_5] : memref<256x128xbf16, #tpu.memory_space<vmem>>, vector<256x128xbf16>
    %cst = arith.constant dense<0.000000e+00> : vector<16x128xf32>
    %6 = tpu.matmul %4, %5, %cst {dimension_numbers = #tpu.dot_dimension_numbers<[1], [0], [0], [1], [0, 0, 1, 1], [], []>} : vector<16x256xbf16>, vector<256x128xbf16>, vector<16x128xf32> -> vector<16x128xf32>
    %7 = arith.addf %3, %6 : vector<16x128xf32>
    %c0_6 = arith.constant 0 : index
    %c0_7 = arith.constant 0 : index
    %8 = vector.load %arg8[%c0_6, %c0_7] : memref<16x128xf32, #tpu.memory_space<vmem>>, vector<16x128xf32>
    tpu.vector_store %arg8[%c0_6, %c0_7], %7 {strides = array<i32>} : memref<16x128xf32, #tpu.memory_space<vmem>>, vector<16x128xf32>,
    %c0_i32_8 = arith.constant 0 : i32
    %9 = arith.cmpi eq, %arg2, %c0_i32_8 : i32
    %10 = arith.extui %9 : i1 to i32
    %c0_i32_9 = arith.constant 0 : i32
    %11 = arith.cmpi ne, %10, %c0_i32_9 : i32
    scf.if %11 {
      %c0_10 = arith.constant 0 : index
      %c0_11 = arith.constant 0 : index
      %12 = vector.load %arg8[%c0_10, %c0_11] : memref<16x128xf32, #tpu.memory_space<vmem>>, vector<16x128xf32>
      %c0_12 = arith.constant 0 : index
      %c0_13 = arith.constant 0 : index
      %13 = vector.load %arg5[%c0_12, %c0_13] : memref<1x128xf32, #tpu.memory_space<vmem>>, vector<1x128xf32>
      %14 = vector.broadcast %13 : vector<1x128xf32> to vector<16x128xf32>
      %15 = arith.addf %12, %14 : vector<16x128xf32>
      %c0_14 = arith.constant 0 : index
      %c0_15 = arith.constant 0 : index
      %16 = vector.load %arg6[%c0_14, %c0_15] : memref<16x128xf32, #tpu.memory_space<vmem>>, vector<16x128xf32>
      %17 = arith.addf %15, %16 : vector<16x128xf32>
      %c0_16 = arith.constant 0 : index
      %c0_17 = arith.constant 0 : index
      %18 = vector.load %arg7[%c0_16, %c0_17] : memref<16x128xf32, #tpu.memory_space<vmem>>, vector<16x128xf32>
      tpu.vector_store %arg7[%c0_16, %c0_17], %17 {strides = array<i32>} : memref<16x128xf32, #tpu.memory_space<vmem>>, vector<16x128xf32>,
    } else {
    }
    return
  }
  func.func @transform_0(%arg0: i32, %arg1: i32, %arg2: i32) -> (i32, i32) {
    %c0_i32 = arith.constant 0 : i32
    return %arg0, %arg2 : i32, i32
  }
  func.func @transform_1(%arg0: i32, %arg1: i32, %arg2: i32) -> (i32, i32) {
    %c0_i32 = arith.constant 0 : i32
    return %arg2, %arg1 : i32, i32
  }
  func.func @transform_2(%arg0: i32, %arg1: i32, %arg2: i32) -> (i32, i32) {
    %c0_i32 = arith.constant 0 : i32
    %c0_i32_0 = arith.constant 0 : i32
    return %c0_i32, %arg1 : i32, i32
  }
  func.func @transform_3(%arg0: i32, %arg1: i32, %arg2: i32) -> (i32, i32) {
    %c0_i32 = arith.constant 0 : i32
    return %arg0, %arg1 : i32, i32
  }
  func.func @transform_4(%arg0: i32, %arg1: i32, %arg2: i32) -> (i32, i32) {
    %c0_i32 = arith.constant 0 : i32
    return %arg0, %arg1 : i32, i32
  }
}

module attributes {stable_mosaic.version = 11 : i64} {
  func.func @_ln_matmul_kernel(%arg0: i32, %arg1: i32, %arg2: memref<16x128xf32, #tpu.memory_space<vmem>>, %arg3: memref<1x128xf32, #tpu.memory_space<vmem>>, %arg4: memref<1x128xf32, #tpu.memory_space<vmem>>, %arg5: memref<128x384xbf16, #tpu.memory_space<vmem>>, %arg6: memref<1x384xf32, #tpu.memory_space<vmem>>, %arg7: memref<16x384xbf16, #tpu.memory_space<vmem>>, %arg8: memref<16x128xbf16, #tpu.memory_space<vmem>>) attributes {dimension_semantics = [#tpu.dimension_semantics<parallel>, #tpu.dimension_semantics<arbitrary>], iteration_bounds = array<i64: 1, 1>, scalar_prefetch = 0 : i64, scratch_operands = 1 : i64, tpu.core_type = #tpu.core_type<tc>, window_params = [{transform_indices = @transform_0, window_bounds = array<i64: 16, 128>}, {pipeline_mode = #tpu.pipeline_mode<synchronous>, transform_indices = @transform_1, window_bounds = array<i64: 1, 128>}, {pipeline_mode = #tpu.pipeline_mode<synchronous>, transform_indices = @transform_2, window_bounds = array<i64: 1, 128>}, {transform_indices = @transform_3, window_bounds = array<i64: 128, 384>}, {transform_indices = @transform_4, window_bounds = array<i64: 1, 384>}, {transform_indices = @transform_5, window_bounds = array<i64: 16, 384>}]} {
    %c0_i32 = arith.constant 0 : i32
    %0 = arith.cmpi eq, %arg1, %c0_i32 : i32
    %1 = arith.extui %0 : i1 to i32
    %c0_i32_0 = arith.constant 0 : i32
    %2 = arith.cmpi ne, %1, %c0_i32_0 : i32
    scf.if %2 {
      %c0_8 = arith.constant 0 : index
      %c0_9 = arith.constant 0 : index
      %11 = vector.load %arg2[%c0_8, %c0_9] : memref<16x128xf32, #tpu.memory_space<vmem>>, vector<16x128xf32>
      %cst_10 = arith.constant dense<0.000000e+00> : vector<16xf32>
      %12 = vector.multi_reduction <add>, %11, %cst_10 [1] : vector<16x128xf32> to vector<16xf32>
      %13 = vector.shape_cast %12 : vector<16xf32> to vector<16x1xf32>
      %cst_11 = arith.constant 1.280000e+02 : f32
      %14 = vector.broadcast %cst_11 : f32 to vector<16x1xf32>
      %15 = arith.divf %13, %14 : vector<16x1xf32>
      %16 = vector.broadcast %15 : vector<16x1xf32> to vector<16x128xf32>
      %17 = arith.subf %11, %16 : vector<16x128xf32>
      %18 = arith.mulf %17, %17 : vector<16x128xf32>
      %cst_12 = arith.constant dense<0.000000e+00> : vector<16xf32>
      %19 = vector.multi_reduction <add>, %18, %cst_12 [1] : vector<16x128xf32> to vector<16xf32>
      %20 = vector.shape_cast %19 : vector<16xf32> to vector<16x1xf32>
      %cst_13 = arith.constant 0.00787401571 : f32
      %21 = vector.broadcast %cst_13 : f32 to vector<16x1xf32>
      %22 = arith.mulf %20, %21 : vector<16x1xf32>
      %23 = math.sqrt %22 : vector<16x1xf32>
      %cst_14 = arith.constant 9.99999997E-7 : f32
      %24 = vector.broadcast %cst_14 : f32 to vector<16x1xf32>
      %25 = arith.addf %23, %24 : vector<16x1xf32>
      %cst_15 = arith.constant 1.000000e+00 : f32
      %26 = vector.broadcast %cst_15 : f32 to vector<16x1xf32>
      %27 = arith.divf %26, %25 : vector<16x1xf32>
      %c0_16 = arith.constant 0 : index
      %c0_17 = arith.constant 0 : index
      %28 = vector.load %arg3[%c0_16, %c0_17] : memref<1x128xf32, #tpu.memory_space<vmem>>, vector<1x128xf32>
      %29 = vector.broadcast %28 : vector<1x128xf32> to vector<16x128xf32>
      %30 = arith.mulf %29, %17 : vector<16x128xf32>
      %31 = vector.broadcast %27 : vector<16x1xf32> to vector<16x128xf32>
      %32 = arith.mulf %30, %31 : vector<16x128xf32>
      %c0_18 = arith.constant 0 : index
      %c0_19 = arith.constant 0 : index
      %33 = vector.load %arg4[%c0_18, %c0_19] : memref<1x128xf32, #tpu.memory_space<vmem>>, vector<1x128xf32>
      %34 = vector.broadcast %33 : vector<1x128xf32> to vector<16x128xf32>
      %35 = arith.addf %32, %34 : vector<16x128xf32>
      %36 = arith.truncf %35 : vector<16x128xf32> to vector<16x128xbf16>
      %c0_20 = arith.constant 0 : index
      %c0_21 = arith.constant 0 : index
      %37 = vector.load %arg8[%c0_20, %c0_21] : memref<16x128xbf16, #tpu.memory_space<vmem>>, vector<16x128xbf16>
      tpu.vector_store %arg8[%c0_20, %c0_21], %36 {strides = array<i32>} : memref<16x128xbf16, #tpu.memory_space<vmem>>, vector<16x128xbf16>,
    } else {
    }
    %c0 = arith.constant 0 : index
    %c0_1 = arith.constant 0 : index
    %3 = vector.load %arg8[%c0, %c0_1] : memref<16x128xbf16, #tpu.memory_space<vmem>>, vector<16x128xbf16>
    %c0_2 = arith.constant 0 : index
    %c0_3 = arith.constant 0 : index
    %4 = vector.load %arg5[%c0_2, %c0_3] : memref<128x384xbf16, #tpu.memory_space<vmem>>, vector<128x384xbf16>
    %cst = arith.constant dense<0.000000e+00> : vector<16x384xf32>
    %5 = tpu.matmul %3, %4, %cst {dimension_numbers = #tpu.dot_dimension_numbers<[1], [0], [0], [1], [0, 0, 1, 1], [], []>} : vector<16x128xbf16>, vector<128x384xbf16>, vector<16x384xf32> -> vector<16x384xf32>
    %c0_4 = arith.constant 0 : index
    %c0_5 = arith.constant 0 : index
    %6 = vector.load %arg6[%c0_4, %c0_5] : memref<1x384xf32, #tpu.memory_space<vmem>>, vector<1x384xf32>
    %7 = vector.broadcast %6 : vector<1x384xf32> to vector<16x384xf32>
    %8 = arith.addf %5, %7 : vector<16x384xf32>
    %9 = arith.truncf %8 : vector<16x384xf32> to vector<16x384xbf16>
    %c0_6 = arith.constant 0 : index
    %c0_7 = arith.constant 0 : index
    %10 = vector.load %arg7[%c0_6, %c0_7] : memref<16x384xbf16, #tpu.memory_space<vmem>>, vector<16x384xbf16>
    tpu.vector_store %arg7[%c0_6, %c0_7], %9 {strides = array<i32>} : memref<16x384xbf16, #tpu.memory_space<vmem>>, vector<16x384xbf16>,
    return
  }
  func.func @transform_0(%arg0: i32, %arg1: i32) -> (i32, i32) {
    %c0_i32 = arith.constant 0 : i32
    %c0_i32_0 = arith.constant 0 : i32
    return %arg0, %c0_i32 : i32, i32
  }
  func.func @transform_1(%arg0: i32, %arg1: i32) -> (i32, i32) {
    %c0_i32 = arith.constant 0 : i32
    %c0_i32_0 = arith.constant 0 : i32
    %c0_i32_1 = arith.constant 0 : i32
    return %c0_i32, %c0_i32_0 : i32, i32
  }
  func.func @transform_2(%arg0: i32, %arg1: i32) -> (i32, i32) {
    %c0_i32 = arith.constant 0 : i32
    %c0_i32_0 = arith.constant 0 : i32
    %c0_i32_1 = arith.constant 0 : i32
    return %c0_i32, %c0_i32_0 : i32, i32
  }
  func.func @transform_3(%arg0: i32, %arg1: i32) -> (i32, i32) {
    %c0_i32 = arith.constant 0 : i32
    %c0_i32_0 = arith.constant 0 : i32
    return %c0_i32, %arg1 : i32, i32
  }
  func.func @transform_4(%arg0: i32, %arg1: i32) -> (i32, i32) {
    %c0_i32 = arith.constant 0 : i32
    %c0_i32_0 = arith.constant 0 : i32
    return %c0_i32, %arg1 : i32, i32
  }
  func.func @transform_5(%arg0: i32, %arg1: i32) -> (i32, i32) {
    %c0_i32 = arith.constant 0 : i32
    return %arg0, %arg1 : i32, i32
  }
}

module attributes {stable_mosaic.version = 11 : i64} {
  func.func @_layernorm_kernel(%arg0: i32, %arg1: memref<16x128xf32, #tpu.memory_space<vmem>>, %arg2: memref<1x128xf32, #tpu.memory_space<vmem>>, %arg3: memref<1x128xf32, #tpu.memory_space<vmem>>, %arg4: memref<16x128xf32, #tpu.memory_space<vmem>>) attributes {dimension_semantics = [#tpu.dimension_semantics<parallel>], iteration_bounds = array<i64: 1>, scalar_prefetch = 0 : i64, scratch_operands = 0 : i64, tpu.core_type = #tpu.core_type<tc>, window_params = [{transform_indices = @transform_0, window_bounds = array<i64: 16, 128>}, {pipeline_mode = #tpu.pipeline_mode<synchronous>, transform_indices = @transform_1, window_bounds = array<i64: 1, 128>}, {pipeline_mode = #tpu.pipeline_mode<synchronous>, transform_indices = @transform_2, window_bounds = array<i64: 1, 128>}, {transform_indices = @transform_3, window_bounds = array<i64: 16, 128>}]} {
    %c0 = arith.constant 0 : index
    %c0_0 = arith.constant 0 : index
    %0 = vector.load %arg1[%c0, %c0_0] : memref<16x128xf32, #tpu.memory_space<vmem>>, vector<16x128xf32>
    %cst = arith.constant dense<0.000000e+00> : vector<16xf32>
    %1 = vector.multi_reduction <add>, %0, %cst [1] : vector<16x128xf32> to vector<16xf32>
    %2 = vector.shape_cast %1 : vector<16xf32> to vector<16x1xf32>
    %cst_1 = arith.constant 1.280000e+02 : f32
    %3 = vector.broadcast %cst_1 : f32 to vector<16x1xf32>
    %4 = arith.divf %2, %3 : vector<16x1xf32>
    %5 = vector.broadcast %4 : vector<16x1xf32> to vector<16x128xf32>
    %6 = arith.subf %0, %5 : vector<16x128xf32>
    %7 = arith.mulf %6, %6 : vector<16x128xf32>
    %cst_2 = arith.constant dense<0.000000e+00> : vector<16xf32>
    %8 = vector.multi_reduction <add>, %7, %cst_2 [1] : vector<16x128xf32> to vector<16xf32>
    %9 = vector.shape_cast %8 : vector<16xf32> to vector<16x1xf32>
    %cst_3 = arith.constant 0.00787401571 : f32
    %10 = vector.broadcast %cst_3 : f32 to vector<16x1xf32>
    %11 = arith.mulf %9, %10 : vector<16x1xf32>
    %12 = math.sqrt %11 : vector<16x1xf32>
    %cst_4 = arith.constant 9.99999997E-7 : f32
    %13 = vector.broadcast %cst_4 : f32 to vector<16x1xf32>
    %14 = arith.addf %12, %13 : vector<16x1xf32>
    %cst_5 = arith.constant 1.000000e+00 : f32
    %15 = vector.broadcast %cst_5 : f32 to vector<16x1xf32>
    %16 = arith.divf %15, %14 : vector<16x1xf32>
    %c0_6 = arith.constant 0 : index
    %c0_7 = arith.constant 0 : index
    %17 = vector.load %arg2[%c0_6, %c0_7] : memref<1x128xf32, #tpu.memory_space<vmem>>, vector<1x128xf32>
    %18 = vector.broadcast %17 : vector<1x128xf32> to vector<16x128xf32>
    %19 = arith.mulf %18, %6 : vector<16x128xf32>
    %20 = vector.broadcast %16 : vector<16x1xf32> to vector<16x128xf32>
    %21 = arith.mulf %19, %20 : vector<16x128xf32>
    %c0_8 = arith.constant 0 : index
    %c0_9 = arith.constant 0 : index
    %22 = vector.load %arg3[%c0_8, %c0_9] : memref<1x128xf32, #tpu.memory_space<vmem>>, vector<1x128xf32>
    %23 = vector.broadcast %22 : vector<1x128xf32> to vector<16x128xf32>
    %24 = arith.addf %21, %23 : vector<16x128xf32>
    %c0_10 = arith.constant 0 : index
    %c0_11 = arith.constant 0 : index
    %25 = vector.load %arg4[%c0_10, %c0_11] : memref<16x128xf32, #tpu.memory_space<vmem>>, vector<16x128xf32>
    tpu.vector_store %arg4[%c0_10, %c0_11], %24 {strides = array<i32>} : memref<16x128xf32, #tpu.memory_space<vmem>>, vector<16x128xf32>,
    return
  }
  func.func @transform_0(%arg0: i32) -> (i32, i32) {
    %c0_i32 = arith.constant 0 : i32
    %c0_i32_0 = arith.constant 0 : i32
    return %arg0, %c0_i32 : i32, i32
  }
  func.func @transform_1(%arg0: i32) -> (i32, i32) {
    %c0_i32 = arith.constant 0 : i32
    %c0_i32_0 = arith.constant 0 : i32
    %c0_i32_1 = arith.constant 0 : i32
    return %c0_i32, %c0_i32_0 : i32, i32
  }
  func.func @transform_2(%arg0: i32) -> (i32, i32) {
    %c0_i32 = arith.constant 0 : i32
    %c0_i32_0 = arith.constant 0 : i32
    %c0_i32_1 = arith.constant 0 : i32
    return %c0_i32, %c0_i32_0 : i32, i32
  }
  func.func @transform_3(%arg0: i32) -> (i32, i32) {
    %c0_i32 = arith.constant 0 : i32
    %c0_i32_0 = arith.constant 0 : i32
    return %arg0, %c0_i32 : i32, i32
  }
}

</mosaic_0001>

<llo_original>
// kernel: transformer_forward.13
$region0: #{transformer_forward.13}
  #allocation0 [shape = 'u32[]', space=smem, size = 0x4, offset = 0x4, fixed_abs, tag = 'smem constant byte address 0x4 - core index']
  #allocation1 [shape = 'u32[144,128]{1,0:T(1,128)}', space=vmem, size = 0x12000, scoped, tag = 'internal scratch']
  #allocation2 [shape = 'f32[16,128]{1,0:T(8,128)}', space=vmem, size = 0x2000, scoped, tag = 'scratch operand']
  %s0 = inlined_call_operand.vmem [shape: bf16[16,128], index: 0, kind: input, shape index: {}]
  %s1 = inlined_call_operand.vmem [shape: bf16[128,128], index: 1, kind: input, shape index: {}]
  %s2 = inlined_call_operand.vmem [shape: f32[1,128], index: 2, kind: input, shape index: {}]
  %s3 = inlined_call_operand.vmem [shape: f32[16,128], index: 3, kind: input, shape index: {}]
  %s4 = inlined_call_operand.vmem [shape: f32[16,128], index: 4, kind: output, shape index: {}]
  %s5 = sld [smem:[#allocation0]]
  $region34: #{transformer_forward.13} parent=0
    _
  %s7 = ssub.s32 1, %s5
  %s8 = scalar_select 0, %s7, %s5
  // Predicated region
  $region2: #{transformer_forward.13} parent=0 // pred_check
    _
  $region3: #{transformer_forward.13} parent=0 // pred_check_branch
    %10 = sbr.rel (0) target = $region5
  $region4: #{transformer_forward.13} parent=0 // pred_region
    _
  $region5: #{transformer_forward.13} parent=0 // pred_fallthru
    _
  // Predicated region
  $region6: #{transformer_forward.13} parent=0 // pred_check
    _
  $region7: #{transformer_forward.13} parent=0 // pred_check_branch
    %12 = sbr.rel (0) target = $region9
  $region8: #{transformer_forward.13} parent=0 // pred_region
    _
  $region9: #{transformer_forward.13} parent=0 // pred_fallthru
    _
  // Predicated region
  $region10: #{transformer_forward.13} parent=0 // pred_check
    _
  $region11: #{transformer_forward.13} parent=0 // pred_check_branch
    %14 = sbr.rel (0) target = $region13
  $region12: #{transformer_forward.13} parent=0 // pred_region
    _
  $region13: #{transformer_forward.13} parent=0 // pred_fallthru
    _
  // Predicated region
  $region14: #{transformer_forward.13} parent=0 // pred_check
    _
  $region15: #{transformer_forward.13} parent=0 // pred_check_branch
    %16 = sbr.rel (0) target = $region17
  $region16: #{transformer_forward.13} parent=0 // pred_region
    _
  $region17: #{transformer_forward.13} parent=0 // pred_fallthru
    _
  %p18 = scmp.eq.s32.totalorder 0, 0
  // Predicated region
  $region18: #{transformer_forward.13} parent=0 // pred_check
    %p19 = pneg %p18
  $region19: #{transformer_forward.13} parent=0 // pred_check_branch
    %21 = sbr.rel (%p19) target = $region21
  $region20: #{transformer_forward.13} parent=0 // pred_region
    %22 = vst [vmem:[#allocation2] sm:$0xff] 0.0
    %23 = vst [vmem:[#allocation2 + $0x8] sm:$0xff] 0.0
  $region21: #{transformer_forward.13} parent=0 // pred_fallthru
    _
  %v24 = vld [vmem:[#allocation2] sm:$0xff]
  %v25 = vld [vmem:[#allocation2 + $0x8] sm:$0xff]
  %v26 = vld [vmem:[%s0] sm:$0xf]
  %v27 = vld [vmem:[%s0 + $0x4] sm:$0xf]
  %v28 = vld [vmem:[%s1] sm:$0xf]
  %v29 = vld [vmem:[%s1 + $0x4] sm:$0xf]
  %v30 = vld [vmem:[%s1 + $0x8] sm:$0xf]
  %v31 = vld [vmem:[%s1 + $0xc] sm:$0xf]
  %v32 = vld [vmem:[%s1 + $0x10] sm:$0xf]
  %v33 = vld [vmem:[%s1 + $0x14] sm:$0xf]
  %v34 = vld [vmem:[%s1 + $0x18] sm:$0xf]
  %v35 = vld [vmem:[%s1 + $0x1c] sm:$0xf]
  %v36 = vld [vmem:[%s1 + $0x20] sm:$0xf]
  %v37 = vld [vmem:[%s1 + $0x24] sm:$0xf]
  %v38 = vld [vmem:[%s1 + $0x28] sm:$0xf]
  %v39 = vld [vmem:[%s1 + $0x2c] sm:$0xf]
  %v40 = vld [vmem:[%s1 + $0x30] sm:$0xf]
  %v41 = vld [vmem:[%s1 + $0x34] sm:$0xf]
  %v42 = vld [vmem:[%s1 + $0x38] sm:$0xf]
  %v43 = vld [vmem:[%s1 + $0x3c] sm:$0xf]
  %v46 = vunpack.c.l.b16 %v26
  %v47 = vunpack.c.l.b16 %v27
  %v48 = vpack.c.b16 %v47, %v46
  %v66 = vunpack.c.l.b16 %v28
  %v67 = vunpack.c.l.b16 %v29
  %v68 = vunpack.c.l.b16 %v30
  %v69 = vunpack.c.l.b16 %v31
  %v70 = vunpack.c.l.b16 %v32
  %v71 = vunpack.c.l.b16 %v33
  %v72 = vunpack.c.l.b16 %v34
  %v73 = vunpack.c.l.b16 %v35
  %v74 = vunpack.c.l.b16 %v36
  %v75 = vunpack.c.l.b16 %v37
  %v76 = vunpack.c.l.b16 %v38
  %v77 = vunpack.c.l.b16 %v39
  %v78 = vunpack.c.l.b16 %v40
  %v79 = vunpack.c.l.b16 %v41
  %v80 = vunpack.c.l.b16 %v42
  %v81 = vunpack.c.l.b16 %v43
  %v82 = vpack.c.b16 %v67, %v66
  %v83 = vpack.c.b16 %v69, %v68
  %v84 = vpack.c.b16 %v71, %v70
  %v85 = vpack.c.b16 %v73, %v72
  %v86 = vpack.c.b16 %v75, %v74
  %v87 = vpack.c.b16 %v77, %v76
  %v88 = vpack.c.b16 %v79, %v78
  %v89 = vpack.c.b16 %v81, %v80
  %98 = vmatprep.subr.bf16.mxu0 0
  %99 = vmatpush1.bf16.msra.mxu0 %v89
  %100 = vmatprep.subr.bf16.mxu0 0
  %101 = vmatpush1.bf16.msra.mxu0 %v88
  %102 = vmatprep.subr.bf16.mxu0 0
  %103 = vmatpush1.bf16.msra.mxu0 %v87
  %104 = vmatprep.subr.bf16.mxu0 0
  %105 = vmatpush1.bf16.msra.mxu0 %v86
  %106 = vmatprep.subr.bf16.mxu0 0
  %107 = vmatpush1.bf16.msra.mxu0 %v85
  %108 = vmatprep.subr.bf16.mxu0 0
  %109 = vmatpush1.bf16.msra.mxu0 %v84
  %110 = vmatprep.subr.bf16.mxu0 0
  %111 = vmatpush1.bf16.msra.mxu0 %v83
  %112 = vmatprep.subr.bf16.mxu0 0
  %113 = vmatpush1.bf16.msra.mxu0 %v82
  %114 = vmatprep.subr.bf16.mxu0 0
  %115 = vmatpush2.bf16.msra.mxu0 0
  %116 = vmatprep.subr.bf16.mxu0 0
  %117 = vmatpush2.bf16.msra.mxu0 0
  %118 = vmatprep.subr.bf16.mxu0 0
  %119 = vmatpush2.bf16.msra.mxu0 0
  %120 = vmatprep.subr.bf16.mxu0 0
  %121 = vmatpush2.bf16.msra.mxu0 0
  %122 = vmatprep.subr.bf16.mxu0 0
  %123 = vmatpush2.bf16.msra.mxu0 0
  %124 = vmatprep.subr.bf16.mxu0 0
  %125 = vmatpush2.bf16.msra.mxu0 0
  %126 = vmatprep.subr.bf16.mxu0 0
  %127 = vmatpush2.bf16.msra.mxu0 0
  %128 = vmatprep.subr.bf16.mxu0 0
  %129 = vmatpush2.bf16.msra.mxu0 0
  %130 = vmatprep.mubr.bf16.mxu0 0
  %131 = vmatmul.mubr.bf16.gmra.mxu0 %v48
  %v132 = vpop.f32.mrf.mxu0
  %v133 = vadd.f32 0.0, %v132
  %v134 = vpop.f32.mrf.mxu0
  %v135 = vpop.f32.mrf.mxu0
  %v136 = vadd.f32 0.0, %v135
  %v137 = vpop.f32.mrf.mxu0
  %138 = vdwg.mxu0
  %v139 = vadd.f32 %v24, %v133
  %v140 = vadd.f32 %v25, %v136
  %141 = vst [vmem:[#allocation2] sm:$0xff] %v139
  %142 = vst [vmem:[#allocation2 + $0x8] sm:$0xff] %v140
  // Predicated region
  $region22: #{transformer_forward.13} parent=0 // pred_check
    %p143 = pneg %p18
  $region23: #{transformer_forward.13} parent=0 // pred_check_branch
    %145 = sbr.rel (%p143) target = $region25
  $region24: #{transformer_forward.13} parent=0 // pred_region
    %v146 = vld [vmem:[#allocation2] sm:$0xff]
    %v147 = vld [vmem:[#allocation2 + $0x8] sm:$0xff]
    %v148 = vld [vmem:[%s2] sm:$0x1]
    %v150 = vlaneseq
    %v151 = vshrl.u32 %v150, 7
    %v152 = vsub.s32 0, %v151
    %v153 = vrot.slane %v148, %v152
    %v155 = vadd.f32 %v146, %v153
    %v156 = vadd.f32 %v147, %v153
    %v157 = vld [vmem:[%s3] sm:$0xff]
    %v158 = vld [vmem:[%s3 + $0x8] sm:$0xff]
    %v159 = vadd.f32 %v155, %v157
    %v160 = vadd.f32 %v156, %v158
    %161 = vst [vmem:[%s4] sm:$0xff] %v159
    %162 = vst [vmem:[%s4 + $0x8] sm:$0xff] %v160
  $region25: #{transformer_forward.13} parent=0 // pred_fallthru
    _
  // Predicated region
  $region26: #{transformer_forward.13} parent=0 // pred_check
    _
  $region27: #{transformer_forward.13} parent=0 // pred_check_branch
    %164 = sbr.rel (0) target = $region29
  $region28: #{transformer_forward.13} parent=0 // pred_region
    _
  $region29: #{transformer_forward.13} parent=0 // pred_fallthru
    _
  // Predicated region
  $region30: #{transformer_forward.13} parent=0 // pred_check
    _
  $region31: #{transformer_forward.13} parent=0 // pred_check_branch
    %166 = sbr.rel (0) target = $region33
  $region32: #{transformer_forward.13} parent=0 // pred_region
    _
  $region33: #{transformer_forward.13} parent=0 // pred_fallthru
    _

// kernel: transformer_forward.11
$region0: #{transformer_forward.11}
  #allocation0 [shape = 'u32[]', space=smem, size = 0x4, offset = 0x4, fixed_abs, tag = 'smem constant byte address 0x4 - core index']
  #allocation1 [shape = 'u32[144,128]{1,0:T(1,128)}', space=vmem, size = 0x12000, scoped, tag = 'internal scratch']
  #allocation2 [shape = 'bf16[16,128]{1,0:T(8,128)(2,1)}', space=vmem, size = 0x1000, scoped, tag = 'scratch operand']
  %s0 = inlined_call_operand.vmem [shape: f32[16,128], index: 0, kind: input, shape index: {}]
  %s1 = inlined_call_operand.vmem [shape: f32[1,128], index: 1, kind: input, shape index: {}]
  %s2 = inlined_call_operand.vmem [shape: f32[1,128], index: 2, kind: input, shape index: {}]
  %s3 = inlined_call_operand.hbm [shape: bf16[128,384], index: 3, kind: input, shape index: {}]
  %s4 = inlined_call_operand.vmem [shape: f32[1,384], index: 4, kind: input, shape index: {}]
  %s5 = inlined_call_operand.vmem [shape: bf16[16,384], index: 5, kind: output, shape index: {}]
  %s6 = sld [smem:[#allocation0]]
  $region38: #{transformer_forward.11} parent=0
    _
  %s8 = ssub.s32 1, %s6
  %s9 = scalar_select 0, %s8, %s6
  $region1: #{transformer_forward.11} parent=0
    #allocation3 [shape = 'u8[98304]{0}', space=vmem, size = 0x18000, scoped, tag = 'input window, operand 3, single buffered']
    #allocation4 [shape = 's32[1]{0}', space=sflag, size = 0x4, scoped, tag = 'scoped memory for transformer_forward.11']
    %10 = vsyncpa [#allocation4], 0
    // Predicated region
    $region2: #{transformer_forward.11} parent=1 // pred_check
      _
    $region3: #{transformer_forward.11} parent=1 // pred_check_branch
      %12 = sbr.rel (0) target = $region5
    $region4: #{transformer_forward.11} parent=1 // pred_region
      _
    $region5: #{transformer_forward.11} parent=1 // pred_fallthru
      _
    // Predicated region
    $region6: #{transformer_forward.11} parent=1 // pred_check
      _
    $region7: #{transformer_forward.11} parent=1 // pred_check_branch
      %14 = sbr.rel (0) target = $region9
    $region8: #{transformer_forward.11} parent=1 // pred_region
      _
    $region9: #{transformer_forward.11} parent=1 // pred_fallthru
      _
    // Predicated region
    $region10: #{transformer_forward.11} parent=1 // pred_check
      _
    $region11: #{transformer_forward.11} parent=1 // pred_check_branch
      %16 = sbr.rel (0) target = $region13
    $region12: #{transformer_forward.11} parent=1 // pred_region
      _
    $region13: #{transformer_forward.11} parent=1 // pred_fallthru
      _
    // Predicated region
    $region14: #{transformer_forward.11} parent=1 // pred_check
      _
    $region15: #{transformer_forward.11} parent=1 // pred_check_branch
      %18 = sbr.rel (0) target = $region17
    $region16: #{transformer_forward.11} parent=1 // pred_region
      %s20 = ssub.s32 3072, 3072
      %21 = vsyncadd [#allocation4], %s20
      %s22 = sshll.u32 [#allocation3], 4
      %s23 = int_to_ptr.vmem [resolvable:$true] %s22
      %28 = dma.hbm_to_vmem [thread:$0]  %s3, 3072, %s23, [#allocation4], 192, 192, 12
    $region17: #{transformer_forward.11} parent=1 // pred_fallthru
      _
    // Predicated region
    $region18: #{transformer_forward.11} parent=1 // pred_check
      _
    $region19: #{transformer_forward.11} parent=1 // pred_check_branch
      %30 = sbr.rel (0) target = $region21
    $region20: #{transformer_forward.11} parent=1 // pred_region
      _
    $region21: #{transformer_forward.11} parent=1 // pred_fallthru
      _
    // Predicated region
    $region22: #{transformer_forward.11} parent=1 // pred_check
      _
    $region23: #{transformer_forward.11} parent=1 // pred_check_branch
      %32 = sbr.rel (0) target = $region25
    $region24: #{transformer_forward.11} parent=1 // pred_region
      %33 = dma.done [#allocation4], 3072
    $region25: #{transformer_forward.11} parent=1 // pred_fallthru
      _
    %p35 = scmp.eq.s32.totalorder 0, 0
    // Predicated region
    $region26: #{transformer_forward.11} parent=1 // pred_check
      %p36 = pneg %p35
    $region27: #{transformer_forward.11} parent=1 // pred_check_branch
      %38 = sbr.rel (%p36) target = $region29
    $region28: #{transformer_forward.11} parent=1 // pred_region
      %v39 = vld [vmem:[%s0] sm:$0xff]
      %v40 = vld [vmem:[%s0 + $0x8] sm:$0xff]
      %41 = vadd.xlane.f32.xlu0 %v39
      %v42 = vpop.xlane.xlu0 %41
      %43 = vadd.xlane.f32.xlu0 %v40
      %v44 = vpop.xlane.xlu0 %43
      %v45 = vrcp.pop 128.0
      %v46 = vmul.f32 %v42, %v45
      %v47 = vmul.f32 %v44, %v45
      %v48 = vsub.f32 %v39, %v46
      %v49 = vsub.f32 %v40, %v47
      %v50 = vmul.f32 %v48, %v48
      %v51 = vmul.f32 %v49, %v49
      %52 = vadd.xlane.f32.xlu0 %v50
      %v53 = vpop.xlane.xlu0 %52
      %54 = vadd.xlane.f32.xlu0 %v51
      %v55 = vpop.xlane.xlu0 %54
      %v56 = vmul.f32 %v53, 0.007874016
      %v57 = vmul.f32 %v55, 0.007874016
      %v58 = vrsqrt.pop %v56
      %v59 = vmul.f32 %v56, %v58
      %vm60 = vcmp.eq.f32.partialorder %v56, inf
      %v61 = vsel %vm60, %v56, %v59
      %vm62 = vcmp.eq.f32.partialorder %v56, 0.0
      %v63 = vand.u32 %v56, 2147483648
      %v64 = vsel %vm62, %v63, %v61
      %v65 = vrsqrt.pop %v57
      %v66 = vmul.f32 %v57, %v65
      %vm67 = vcmp.eq.f32.partialorder %v57, inf
      %v68 = vsel %vm67, %v57, %v66
      %vm69 = vcmp.eq.f32.partialorder %v57, 0.0
      %v70 = vand.u32 %v57, 2147483648
      %v71 = vsel %vm69, %v70, %v68
      %v72 = vadd.f32 %v64, 1e-06
      %v73 = vadd.f32 %v71, 1e-06
      %v74 = vrcp.pop %v72
      %v75 = vmul.f32 1.0, %v74
      %v76 = vrcp.pop %v73
      %v77 = vmul.f32 1.0, %v76
      %v78 = vld [vmem:[%s1] sm:$0x1]
      %v80 = vlaneseq
      %v81 = vshrl.u32 %v80, 7
      %v82 = vsub.s32 0, %v81
      %v83 = vrot.slane %v78, %v82
      %v85 = vmul.f32 %v83, %v48
      %v86 = vmul.f32 %v83, %v49
      %v87 = vmul.f32 %v85, %v75
      %v88 = vmul.f32 %v86, %v77
      %v89 = vld [vmem:[%s2] sm:$0x1]
      %v91 = vlaneseq
      %v92 = vshrl.u32 %v91, 7
      %v93 = vsub.s32 0, %v92
      %v94 = vrot.slane %v89, %v93
      %v96 = vadd.f32 %v87, %v94
      %v97 = vadd.f32 %v88, %v94
      %v98 = vpack.c.bf16 %v97, %v96
      %v100 = vunpack.c.l.b16 %v98
      %v101 = vunpack.c.h.b16 %v98
      %v102 = vpack.c.b16 %v100, %v100
      %v103 = vpack.c.b16 %v101, %v101
      %106 = vst [vmem:[#allocation2] sm:$0xf] %v102
      %107 = vst [vmem:[#allocation2 + $0x4] sm:$0xf] %v103
    $region29: #{transformer_forward.11} parent=1 // pred_fallthru
      _
    %v108 = vld [vmem:[#allocation2] sm:$0xf]
    %v109 = vld [vmem:[#allocation2 + $0x4] sm:$0xf]
    %v110 = vld [vmem:[#allocation3] sm:$0xff]
    %v111 = vld [vmem:[#allocation3 + $0x8] sm:$0xf]
    %v112 = vld [vmem:[#allocation3 + $0xc] sm:$0xff]
    %v113 = vld [vmem:[#allocation3 + $0x14] sm:$0xf]
    %v114 = vld [vmem:[#allocation3 + $0x18] sm:$0xff]
    %v115 = vld [vmem:[#allocation3 + $0x20] sm:$0xf]
    %v116 = vld [vmem:[#allocation3 + $0x24] sm:$0xff]
    %v117 = vld [vmem:[#allocation3 + $0x2c] sm:$0xf]
    %v118 = vld [vmem:[#allocation3 + $0x30] sm:$0xff]
    %v119 = vld [vmem:[#allocation3 + $0x38] sm:$0xf]
    %v120 = vld [vmem:[#allocation3 + $0x3c] sm:$0xff]
    %v121 = vld [vmem:[#allocation3 + $0x44] sm:$0xf]
    %v122 = vld [vmem:[#allocation3 + $0x48] sm:$0xff]
    %v123 = vld [vmem:[#allocation3 + $0x50] sm:$0xf]
    %v124 = vld [vmem:[#allocation3 + $0x54] sm:$0xff]
    %v125 = vld [vmem:[#allocation3 + $0x5c] sm:$0xf]
    %v126 = vld [vmem:[#allocation3 + $0x60] sm:$0xff]
    %v127 = vld [vmem:[#allocation3 + $0x68] sm:$0xf]
    %v128 = vld [vmem:[#allocation3 + $0x6c] sm:$0xff]
    %v129 = vld [vmem:[#allocation3 + $0x74] sm:$0xf]
    %v130 = vld [vmem:[#allocation3 + $0x78] sm:$0xff]
    %v131 = vld [vmem:[#allocation3 + $0x80] sm:$0xf]
    %v132 = vld [vmem:[#allocation3 + $0x84] sm:$0xff]
    %v133 = vld [vmem:[#allocation3 + $0x8c] sm:$0xf]
    %v134 = vld [vmem:[#allocation3 + $0x90] sm:$0xff]
    %v135 = vld [vmem:[#allocation3 + $0x98] sm:$0xf]
    %v136 = vld [vmem:[#allocation3 + $0x9c] sm:$0xff]
    %v137 = vld [vmem:[#allocation3 + $0xa4] sm:$0xf]
    %v138 = vld [vmem:[#allocation3 + $0xa8] sm:$0xff]
    %v139 = vld [vmem:[#allocation3 + $0xb0] sm:$0xf]
    %v140 = vld [vmem:[#allocation3 + $0xb4] sm:$0xff]
    %v141 = vld [vmem:[#allocation3 + $0xbc] sm:$0xf]
    %v142 = vld [vmem:[%s4] sm:$0x7]
    %v144 = vlaneseq
    %v145 = vshrl.u32 %v144, 7
    %v146 = vsub.s32 0, %v145
    %v147 = vrot.slane %v142, %v146
    %v148 = vlaneseq
    %v149 = vshrl.u32 %v148, 7
    %v150 = vsub.s32 1, %v149
    %v151 = vrot.slane %v142, %v150
    %v152 = vlaneseq
    %v153 = vshrl.u32 %v152, 7
    %v154 = vsub.s32 2, %v153
    %v155 = vrot.slane %v142, %v154
    %v161 = vunpack.c.l.b16 %v108
    %v162 = vunpack.c.l.b16 %v109
    %v163 = vpack.c.b16 %v162, %v161
    %v197 = vunpack.c.l.b16 %v110
    %v198 = vunpack.c.h.b16 %v110
    %v199 = vunpack.c.l.b16 %v111
    %v200 = vunpack.c.l.b16 %v112
    %v201 = vunpack.c.h.b16 %v112
    %v202 = vunpack.c.l.b16 %v113
    %v203 = vunpack.c.l.b16 %v114
    %v204 = vunpack.c.h.b16 %v114
    %v205 = vunpack.c.l.b16 %v115
    %v206 = vunpack.c.l.b16 %v116
    %v207 = vunpack.c.h.b16 %v116
    %v208 = vunpack.c.l.b16 %v117
    %v209 = vunpack.c.l.b16 %v118
    %v210 = vunpack.c.h.b16 %v118
    %v211 = vunpack.c.l.b16 %v119
    %v212 = vunpack.c.l.b16 %v120
    %v213 = vunpack.c.h.b16 %v120
    %v214 = vunpack.c.l.b16 %v121
    %v215 = vunpack.c.l.b16 %v122
    %v216 = vunpack.c.h.b16 %v122
    %v217 = vunpack.c.l.b16 %v123
    %v218 = vunpack.c.l.b16 %v124
    %v219 = vunpack.c.h.b16 %v124
    %v220 = vunpack.c.l.b16 %v125
    %v221 = vunpack.c.l.b16 %v126
    %v222 = vunpack.c.h.b16 %v126
    %v223 = vunpack.c.l.b16 %v127
    %v224 = vunpack.c.l.b16 %v128
    %v225 = vunpack.c.h.b16 %v128
    %v226 = vunpack.c.l.b16 %v129
    %v227 = vunpack.c.l.b16 %v130
    %v228 = vunpack.c.h.b16 %v130
    %v229 = vunpack.c.l.b16 %v131
    %v230 = vunpack.c.l.b16 %v132
    %v231 = vunpack.c.h.b16 %v132
    %v232 = vunpack.c.l.b16 %v133
    %v233 = vunpack.c.l.b16 %v134
    %v234 = vunpack.c.h.b16 %v134
    %v235 = vunpack.c.l.b16 %v135
    %v236 = vunpack.c.l.b16 %v136
    %v237 = vunpack.c.h.b16 %v136
    %v238 = vunpack.c.l.b16 %v137
    %v239 = vunpack.c.l.b16 %v138
    %v240 = vunpack.c.h.b16 %v138
    %v241 = vunpack.c.l.b16 %v139
    %v242 = vunpack.c.l.b16 %v140
    %v243 = vunpack.c.h.b16 %v140
    %v244 = vunpack.c.l.b16 %v141
    %v245 = vpack.c.b16 %v200, %v197
    %v246 = vpack.c.b16 %v201, %v198
    %v247 = vpack.c.b16 %v202, %v199
    %v248 = vpack.c.b16 %v206, %v203
    %v249 = vpack.c.b16 %v207, %v204
    %v250 = vpack.c.b16 %v208, %v205
    %v251 = vpack.c.b16 %v212, %v209
    %v252 = vpack.c.b16 %v213, %v210
    %v253 = vpack.c.b16 %v214, %v211
    %v254 = vpack.c.b16 %v218, %v215
    %v255 = vpack.c.b16 %v219, %v216
    %v256 = vpack.c.b16 %v220, %v217
    %v257 = vpack.c.b16 %v224, %v221
    %v258 = vpack.c.b16 %v225, %v222
    %v259 = vpack.c.b16 %v226, %v223
    %v260 = vpack.c.b16 %v230, %v227
    %v261 = vpack.c.b16 %v231, %v228
    %v262 = vpack.c.b16 %v232, %v229
    %v263 = vpack.c.b16 %v236, %v233
    %v264 = vpack.c.b16 %v237, %v234
    %v265 = vpack.c.b16 %v238, %v235
    %v266 = vpack.c.b16 %v242, %v239
    %v267 = vpack.c.b16 %v243, %v240
    %v268 = vpack.c.b16 %v244, %v241
    %293 = vmatprep.subr.bf16.mxu0 %v267
    %294 = vmatpush1.bf16.msra.mxu0 %v266
    %295 = vmatprep.subr.bf16.mxu0 %v264
    %296 = vmatpush1.bf16.msra.mxu0 %v263
    %297 = vmatprep.subr.bf16.mxu0 %v261
    %298 = vmatpush1.bf16.msra.mxu0 %v260
    %299 = vmatprep.subr.bf16.mxu0 %v258
    %300 = vmatpush1.bf16.msra.mxu0 %v257
    %301 = vmatprep.subr.bf16.mxu0 %v255
    %302 = vmatpush1.bf16.msra.mxu0 %v254
    %303 = vmatprep.subr.bf16.mxu0 %v252
    %304 = vmatpush1.bf16.msra.mxu0 %v251
    %305 = vmatprep.subr.bf16.mxu0 %v249
    %306 = vmatpush1.bf16.msra.mxu0 %v248
    %307 = vmatprep.subr.bf16.mxu0 %v246
    %308 = vmatpush1.bf16.msra.mxu0 %v245
    %309 = vmatprep.subr.bf16.mxu0 0
    %310 = vmatpush2.bf16.msra.mxu0 0
    %311 = vmatprep.subr.bf16.mxu0 0
    %312 = vmatpush2.bf16.msra.mxu0 0
    %313 = vmatprep.subr.bf16.mxu0 0
    %314 = vmatpush2.bf16.msra.mxu0 0
    %315 = vmatprep.subr.bf16.mxu0 0
    %316 = vmatpush2.bf16.msra.mxu0 0
    %317 = vmatprep.subr.bf16.mxu0 0
    %318 = vmatpush2.bf16.msra.mxu0 0
    %319 = vmatprep.subr.bf16.mxu0 0
    %320 = vmatpush2.bf16.msra.mxu0 0
    %321 = vmatprep.subr.bf16.mxu0 0
    %322 = vmatpush2.bf16.msra.mxu0 0
    %323 = vmatprep.subr.bf16.mxu0 0
    %324 = vmatpush2.bf16.msra.mxu0 0
    %325 = vmatprep.mubr.bf16.mxu0 0
    %326 = vmatmul.mubr.bf16.gmra.mxu0 %v163
    %v327 = vpop.f32.mrf.mxu0
    %v328 = vadd.f32 %v147, %v327
    %v329 = vpop.f32.mrf.mxu0
    %v330 = vadd.f32 %v151, %v329
    %v331 = vpop.f32.mrf.mxu0
    %v332 = vadd.f32 %v147, %v331
    %v333 = vpop.f32.mrf.mxu0
    %v334 = vadd.f32 %v151, %v333
    %335 = vdwg.mxu0
    %336 = vmatprep.subr.bf16.mxu0 0
    %337 = vmatpush1.bf16.msra.mxu0 %v268
    %338 = vmatprep.subr.bf16.mxu0 0
    %339 = vmatpush1.bf16.msra.mxu0 %v265
    %340 = vmatprep.subr.bf16.mxu0 0
    %341 = vmatpush1.bf16.msra.mxu0 %v262
    %342 = vmatprep.subr.bf16.mxu0 0
    %343 = vmatpush1.bf16.msra.mxu0 %v259
    %344 = vmatprep.subr.bf16.mxu0 0
    %345 = vmatpush1.bf16.msra.mxu0 %v256
    %346 = vmatprep.subr.bf16.mxu0 0
    %347 = vmatpush1.bf16.msra.mxu0 %v253
    %348 = vmatprep.subr.bf16.mxu0 0
    %349 = vmatpush1.bf16.msra.mxu0 %v250
    %350 = vmatprep.subr.bf16.mxu0 0
    %351 = vmatpush1.bf16.msra.mxu0 %v247
    %352 = vmatprep.subr.bf16.mxu0 0
    %353 = vmatpush2.bf16.msra.mxu0 0
    %354 = vmatprep.subr.bf16.mxu0 0
    %355 = vmatpush2.bf16.msra.mxu0 0
    %356 = vmatprep.subr.bf16.mxu0 0
    %357 = vmatpush2.bf16.msra.mxu0 0
    %358 = vmatprep.subr.bf16.mxu0 0
    %359 = vmatpush2.bf16.msra.mxu0 0
    %360 = vmatprep.subr.bf16.mxu0 0
    %361 = vmatpush2.bf16.msra.mxu0 0
    %362 = vmatprep.subr.bf16.mxu0 0
    %363 = vmatpush2.bf16.msra.mxu0 0
    %364 = vmatprep.subr.bf16.mxu0 0
    %365 = vmatpush2.bf16.msra.mxu0 0
    %366 = vmatprep.subr.bf16.mxu0 0
    %367 = vmatpush2.bf16.msra.mxu0 0
    %368 = vmatprep.mubr.bf16.mxu0 0
    %369 = vmatmul.mubr.bf16.gmra.mxu0 %v163
    %v370 = vpop.f32.mrf.mxu0
    %v371 = vadd.f32 %v155, %v370
    %v372 = vpop.f32.mrf.mxu0
    %v373 = vpop.f32.mrf.mxu0
    %v374 = vadd.f32 %v155, %v373
    %v375 = vpop.f32.mrf.mxu0
    %376 = vdwg.mxu0
    %v377 = vpack.c.bf16 %v332, %v328
    %v378 = vpack.c.bf16 %v334, %v330
    %v379 = vpack.c.bf16 %v374, %v371
    %v383 = vunpack.c.l.b16 %v377
    %v384 = vunpack.c.l.b16 %v378
    %v385 = vunpack.c.l.b16 %v379
    %v386 = vunpack.c.h.b16 %v377
    %v387 = vunpack.c.h.b16 %v378
    %v388 = vunpack.c.h.b16 %v379
    %v389 = vpack.c.b16 %v384, %v383
    %v390 = vpack.c.b16 %v385, %v385
    %v391 = vpack.c.b16 %v387, %v386
    %v392 = vpack.c.b16 %v388, %v388
    %397 = vst [vmem:[%s5] sm:$0xff] %v389
    %398 = vst [vmem:[%s5 + $0x8] sm:$0xf] %v390
    %399 = vst [vmem:[%s5 + $0xc] sm:$0xff] %v391
    %400 = vst [vmem:[%s5 + $0x14] sm:$0xf] %v392
    // Predicated region
    $region30: #{transformer_forward.11} parent=1 // pred_check
      _
    $region31: #{transformer_forward.11} parent=1 // pred_check_branch
      %402 = sbr.rel (0) target = $region33
    $region32: #{transformer_forward.11} parent=1 // pred_region
      _
    $region33: #{transformer_forward.11} parent=1 // pred_fallthru
      _
    // Predicated region
    $region34: #{transformer_forward.11} parent=1 // pred_check
      _
    $region35: #{transformer_forward.11} parent=1 // pred_check_branch
      %404 = sbr.rel (0) target = $region37
    $region36: #{transformer_forward.11} parent=1 // pred_region
      _
    $region37: #{transformer_forward.11} parent=1 // pred_fallthru
      _
    %405 = vsyncpa [#allocation4], 1

// kernel: transformer_forward.14
$region0: #{transformer_forward.14}
  #allocation0 [shape = 'u32[]', space=smem, size = 0x4, offset = 0x4, fixed_abs, tag = 'smem constant byte address 0x4 - core index']
  #allocation1 [shape = 'u32[144,128]{1,0:T(1,128)}', space=vmem, size = 0x12000, scoped, tag = 'internal scratch']
  #allocation2 [shape = 'bf16[16,128]{1,0:T(8,128)(2,1)}', space=vmem, size = 0x1000, scoped, tag = 'scratch operand']
  %s0 = inlined_call_operand.vmem [shape: f32[16,128], index: 0, kind: input, shape index: {}]
  %s1 = inlined_call_operand.vmem [shape: f32[1,128], index: 1, kind: input, shape index: {}]
  %s2 = inlined_call_operand.vmem [shape: f32[1,128], index: 2, kind: input, shape index: {}]
  %s3 = inlined_call_operand.vmem [shape: bf16[128,256], index: 3, kind: input, shape index: {}]
  %s4 = inlined_call_operand.vmem [shape: f32[1,256], index: 4, kind: input, shape index: {}]
  %s5 = inlined_call_operand.vmem [shape: bf16[16,256], index: 5, kind: output, shape index: {}]
  %s6 = sld [smem:[#allocation0]]
  $region34: #{transformer_forward.14} parent=0
    _
  %s8 = ssub.s32 1, %s6
  %s9 = scalar_select 0, %s8, %s6
  // Predicated region
  $region2: #{transformer_forward.14} parent=0 // pred_check
    _
  $region3: #{transformer_forward.14} parent=0 // pred_check_branch
    %11 = sbr.rel (0) target = $region5
  $region4: #{transformer_forward.14} parent=0 // pred_region
    _
  $region5: #{transformer_forward.14} parent=0 // pred_fallthru
    _
  // Predicated region
  $region6: #{transformer_forward.14} parent=0 // pred_check
    _
  $region7: #{transformer_forward.14} parent=0 // pred_check_branch
    %13 = sbr.rel (0) target = $region9
  $region8: #{transformer_forward.14} parent=0 // pred_region
    _
  $region9: #{transformer_forward.14} parent=0 // pred_fallthru
    _
  // Predicated region
  $region10: #{transformer_forward.14} parent=0 // pred_check
    _
  $region11: #{transformer_forward.14} parent=0 // pred_check_branch
    %15 = sbr.rel (0) target = $region13
  $region12: #{transformer_forward.14} parent=0 // pred_region
    _
  $region13: #{transformer_forward.14} parent=0 // pred_fallthru
    _
  // Predicated region
  $region14: #{transformer_forward.14} parent=0 // pred_check
    _
  $region15: #{transformer_forward.14} parent=0 // pred_check_branch
    %17 = sbr.rel (0) target = $region17
  $region16: #{transformer_forward.14} parent=0 // pred_region
    _
  $region17: #{transformer_forward.14} parent=0 // pred_fallthru
    _
  // Predicated region
  $region18: #{transformer_forward.14} parent=0 // pred_check
    _
  $region19: #{transformer_forward.14} parent=0 // pred_check_branch
    %19 = sbr.rel (0) target = $region21
  $region20: #{transformer_forward.14} parent=0 // pred_region
    _
  $region21: #{transformer_forward.14} parent=0 // pred_fallthru
    _
  %p21 = scmp.eq.s32.totalorder 0, 0
  // Predicated region
  $region22: #{transformer_forward.14} parent=0 // pred_check
    %p22 = pneg %p21
  $region23: #{transformer_forward.14} parent=0 // pred_check_branch
    %24 = sbr.rel (%p22) target = $region25
  $region24: #{transformer_forward.14} parent=0 // pred_region
    %v25 = vld [vmem:[%s0] sm:$0xff]
    %v26 = vld [vmem:[%s0 + $0x8] sm:$0xff]
    %27 = vadd.xlane.f32.xlu0 %v25
    %v28 = vpop.xlane.xlu0 %27
    %29 = vadd.xlane.f32.xlu0 %v26
    %v30 = vpop.xlane.xlu0 %29
    %v31 = vrcp.pop 128.0
    %v32 = vmul.f32 %v28, %v31
    %v33 = vmul.f32 %v30, %v31
    %v34 = vsub.f32 %v25, %v32
    %v35 = vsub.f32 %v26, %v33
    %v36 = vmul.f32 %v34, %v34
    %v37 = vmul.f32 %v35, %v35
    %38 = vadd.xlane.f32.xlu0 %v36
    %v39 = vpop.xlane.xlu0 %38
    %40 = vadd.xlane.f32.xlu0 %v37
    %v41 = vpop.xlane.xlu0 %40
    %v42 = vmul.f32 %v39, 0.007874016
    %v43 = vmul.f32 %v41, 0.007874016
    %v44 = vrsqrt.pop %v42
    %v45 = vmul.f32 %v42, %v44
    %vm46 = vcmp.eq.f32.partialorder %v42, inf
    %v47 = vsel %vm46, %v42, %v45
    %vm48 = vcmp.eq.f32.partialorder %v42, 0.0
    %v49 = vand.u32 %v42, 2147483648
    %v50 = vsel %vm48, %v49, %v47
    %v51 = vrsqrt.pop %v43
    %v52 = vmul.f32 %v43, %v51
    %vm53 = vcmp.eq.f32.partialorder %v43, inf
    %v54 = vsel %vm53, %v43, %v52
    %vm55 = vcmp.eq.f32.partialorder %v43, 0.0
    %v56 = vand.u32 %v43, 2147483648
    %v57 = vsel %vm55, %v56, %v54
    %v58 = vadd.f32 %v50, 1e-06
    %v59 = vadd.f32 %v57, 1e-06
    %v60 = vrcp.pop %v58
    %v61 = vmul.f32 1.0, %v60
    %v62 = vrcp.pop %v59
    %v63 = vmul.f32 1.0, %v62
    %v64 = vld [vmem:[%s1] sm:$0x1]
    %v66 = vlaneseq
    %v67 = vshrl.u32 %v66, 7
    %v68 = vsub.s32 0, %v67
    %v69 = vrot.slane %v64, %v68
    %v71 = vmul.f32 %v69, %v34
    %v72 = vmul.f32 %v69, %v35
    %v73 = vmul.f32 %v71, %v61
    %v74 = vmul.f32 %v72, %v63
    %v75 = vld [vmem:[%s2] sm:$0x1]
    %v77 = vlaneseq
    %v78 = vshrl.u32 %v77, 7
    %v79 = vsub.s32 0, %v78
    %v80 = vrot.slane %v75, %v79
    %v82 = vadd.f32 %v73, %v80
    %v83 = vadd.f32 %v74, %v80
    %v84 = vpack.c.bf16 %v83, %v82
    %v86 = vunpack.c.l.b16 %v84
    %v87 = vunpack.c.h.b16 %v84
    %v88 = vpack.c.b16 %v86, %v86
    %v89 = vpack.c.b16 %v87, %v87
    %92 = vst [vmem:[#allocation2] sm:$0xf] %v88
    %93 = vst [vmem:[#allocation2 + $0x4] sm:$0xf] %v89
  $region25: #{transformer_forward.14} parent=0 // pred_fallthru
    _
  %v94 = vld [vmem:[#allocation2] sm:$0xf]
  %v95 = vld [vmem:[#allocation2 + $0x4] sm:$0xf]
  %v96 = vld [vmem:[%s3] sm:$0xff]
  %v97 = vld [vmem:[%s3 + $0x8] sm:$0xff]
  %v98 = vld [vmem:[%s3 + $0x10] sm:$0xff]
  %v99 = vld [vmem:[%s3 + $0x18] sm:$0xff]
  %v100 = vld [vmem:[%s3 + $0x20] sm:$0xff]
  %v101 = vld [vmem:[%s3 + $0x28] sm:$0xff]
  %v102 = vld [vmem:[%s3 + $0x30] sm:$0xff]
  %v103 = vld [vmem:[%s3 + $0x38] sm:$0xff]
  %v104 = vld [vmem:[%s3 + $0x40] sm:$0xff]
  %v105 = vld [vmem:[%s3 + $0x48] sm:$0xff]
  %v106 = vld [vmem:[%s3 + $0x50] sm:$0xff]
  %v107 = vld [vmem:[%s3 + $0x58] sm:$0xff]
  %v108 = vld [vmem:[%s3 + $0x60] sm:$0xff]
  %v109 = vld [vmem:[%s3 + $0x68] sm:$0xff]
  %v110 = vld [vmem:[%s3 + $0x70] sm:$0xff]
  %v111 = vld [vmem:[%s3 + $0x78] sm:$0xff]
  %v112 = vld [vmem:[%s4] sm:$0x3]
  %v114 = vlaneseq
  %v115 = vshrl.u32 %v114, 7
  %v116 = vsub.s32 0, %v115
  %v117 = vrot.slane %v112, %v116
  %v118 = vlaneseq
  %v119 = vshrl.u32 %v118, 7
  %v120 = vsub.s32 1, %v119
  %v121 = vrot.slane %v112, %v120
  %v126 = vunpack.c.l.b16 %v94
  %v127 = vunpack.c.l.b16 %v95
  %v128 = vpack.c.b16 %v127, %v126
  %v146 = vunpack.c.l.b16 %v96
  %v147 = vunpack.c.h.b16 %v96
  %v148 = vunpack.c.l.b16 %v97
  %v149 = vunpack.c.h.b16 %v97
  %v150 = vunpack.c.l.b16 %v98
  %v151 = vunpack.c.h.b16 %v98
  %v152 = vunpack.c.l.b16 %v99
  %v153 = vunpack.c.h.b16 %v99
  %v154 = vunpack.c.l.b16 %v100
  %v155 = vunpack.c.h.b16 %v100
  %v156 = vunpack.c.l.b16 %v101
  %v157 = vunpack.c.h.b16 %v101
  %v158 = vunpack.c.l.b16 %v102
  %v159 = vunpack.c.h.b16 %v102
  %v160 = vunpack.c.l.b16 %v103
  %v161 = vunpack.c.h.b16 %v103
  %v162 = vunpack.c.l.b16 %v104
  %v163 = vunpack.c.h.b16 %v104
  %v164 = vunpack.c.l.b16 %v105
  %v165 = vunpack.c.h.b16 %v105
  %v166 = vunpack.c.l.b16 %v106
  %v167 = vunpack.c.h.b16 %v106
  %v168 = vunpack.c.l.b16 %v107
  %v169 = vunpack.c.h.b16 %v107
  %v170 = vunpack.c.l.b16 %v108
  %v171 = vunpack.c.h.b16 %v108
  %v172 = vunpack.c.l.b16 %v109
  %v173 = vunpack.c.h.b16 %v109
  %v174 = vunpack.c.l.b16 %v110
  %v175 = vunpack.c.h.b16 %v110
  %v176 = vunpack.c.l.b16 %v111
  %v177 = vunpack.c.h.b16 %v111
  %v178 = vpack.c.b16 %v148, %v146
  %v179 = vpack.c.b16 %v149, %v147
  %v180 = vpack.c.b16 %v152, %v150
  %v181 = vpack.c.b16 %v153, %v151
  %v182 = vpack.c.b16 %v156, %v154
  %v183 = vpack.c.b16 %v157, %v155
  %v184 = vpack.c.b16 %v160, %v158
  %v185 = vpack.c.b16 %v161, %v159
  %v186 = vpack.c.b16 %v164, %v162
  %v187 = vpack.c.b16 %v165, %v163
  %v188 = vpack.c.b16 %v168, %v166
  %v189 = vpack.c.b16 %v169, %v167
  %v190 = vpack.c.b16 %v172, %v170
  %v191 = vpack.c.b16 %v173, %v171
  %v192 = vpack.c.b16 %v176, %v174
  %v193 = vpack.c.b16 %v177, %v175
  %210 = vmatprep.subr.bf16.mxu0 %v193
  %211 = vmatpush1.bf16.msra.mxu0 %v192
  %212 = vmatprep.subr.bf16.mxu0 %v191
  %213 = vmatpush1.bf16.msra.mxu0 %v190
  %214 = vmatprep.subr.bf16.mxu0 %v189
  %215 = vmatpush1.bf16.msra.mxu0 %v188
  %216 = vmatprep.subr.bf16.mxu0 %v187
  %217 = vmatpush1.bf16.msra.mxu0 %v186
  %218 = vmatprep.subr.bf16.mxu0 %v185
  %219 = vmatpush1.bf16.msra.mxu0 %v184
  %220 = vmatprep.subr.bf16.mxu0 %v183
  %221 = vmatpush1.bf16.msra.mxu0 %v182
  %222 = vmatprep.subr.bf16.mxu0 %v181
  %223 = vmatpush1.bf16.msra.mxu0 %v180
  %224 = vmatprep.subr.bf16.mxu0 %v179
  %225 = vmatpush1.bf16.msra.mxu0 %v178
  %226 = vmatprep.subr.bf16.mxu0 0
  %227 = vmatpush2.bf16.msra.mxu0 0
  %228 = vmatprep.subr.bf16.mxu0 0
  %229 = vmatpush2.bf16.msra.mxu0 0
  %230 = vmatprep.subr.bf16.mxu0 0
  %231 = vmatpush2.bf16.msra.mxu0 0
  %232 = vmatprep.subr.bf16.mxu0 0
  %233 = vmatpush2.bf16.msra.mxu0 0
  %234 = vmatprep.subr.bf16.mxu0 0
  %235 = vmatpush2.bf16.msra.mxu0 0
  %236 = vmatprep.subr.bf16.mxu0 0
  %237 = vmatpush2.bf16.msra.mxu0 0
  %238 = vmatprep.subr.bf16.mxu0 0
  %239 = vmatpush2.bf16.msra.mxu0 0
  %240 = vmatprep.subr.bf16.mxu0 0
  %241 = vmatpush2.bf16.msra.mxu0 0
  %242 = vmatprep.mubr.bf16.mxu0 0
  %243 = vmatmul.mubr.bf16.gmra.mxu0 %v128
  %v244 = vpop.f32.mrf.mxu0
  %v245 = vadd.f32 %v117, %v244
  %v246 = vpop.f32.mrf.mxu0
  %v247 = vadd.f32 %v121, %v246
  %v248 = vpop.f32.mrf.mxu0
  %v249 = vadd.f32 %v117, %v248
  %v250 = vpop.f32.mrf.mxu0
  %v251 = vadd.f32 %v121, %v250
  %252 = vdwg.mxu0
  %v253 = vmax.f32 %v245, 0.0
  %v254 = vmax.f32 %v247, 0.0
  %v255 = vmax.f32 %v249, 0.0
  %v256 = vmax.f32 %v251, 0.0
  %v257 = vpack.c.bf16 %v255, %v253
  %v258 = vpack.c.bf16 %v256, %v254
  %v261 = vunpack.c.l.b16 %v257
  %v262 = vunpack.c.l.b16 %v258
  %v263 = vunpack.c.h.b16 %v257
  %v264 = vunpack.c.h.b16 %v258
  %v265 = vpack.c.b16 %v262, %v261
  %v266 = vpack.c.b16 %v264, %v263
  %269 = vst [vmem:[%s5] sm:$0xff] %v265
  %270 = vst [vmem:[%s5 + $0x8] sm:$0xff] %v266
  // Predicated region
  $region26: #{transformer_forward.14} parent=0 // pred_check
    _
  $region27: #{transformer_forward.14} parent=0 // pred_check_branch
    %272 = sbr.rel (0) target = $region29
  $region28: #{transformer_forward.14} parent=0 // pred_region
    _
  $region29: #{transformer_forward.14} parent=0 // pred_fallthru
    _
  // Predicated region
  $region30: #{transformer_forward.14} parent=0 // pred_check
    _
  $region31: #{transformer_forward.14} parent=0 // pred_check_branch
    %274 = sbr.rel (0) target = $region33
  $region32: #{transformer_forward.14} parent=0 // pred_region
    _
  $region33: #{transformer_forward.14} parent=0 // pred_fallthru
    _

// kernel: transformer_forward.12
$region0: #{transformer_forward.12}
  #allocation0 [shape = 'u32[]', space=smem, size = 0x4, offset = 0x4, fixed_abs, tag = 'smem constant byte address 0x4 - core index']
  #allocation1 [shape = 'u32[144,128]{1,0:T(1,128)}', space=vmem, size = 0x12000, scoped, tag = 'internal scratch']
  #allocation2 [shape = 'f32[4,8,1]{2,1,0:T(8,128)}', space=vmem, size = 0x4000, scoped, tag = 'scratch operand']
  #allocation3 [shape = 'f32[4,8,1]{2,1,0:T(8,128)}', space=vmem, size = 0x4000, scoped, tag = 'scratch operand']
  #allocation4 [shape = 'f32[4,8,32]{2,1,0:T(8,128)}', space=vmem, size = 0x4000, scoped, tag = 'scratch operand']
  %s0 = inlined_call_operand.vmem [shape: bf16[2,8,384], index: 0, kind: input, shape index: {}, may-alias: {0,1,2}]
  %s1 = inlined_call_operand.vmem [shape: bf16[2,8,384], index: 1, kind: input, shape index: {}, may-alias: {0,1,2}]
  %s2 = inlined_call_operand.vmem [shape: bf16[2,8,384], index: 2, kind: input, shape index: {}, may-alias: {0,1,2}]
  %s3 = inlined_call_operand.vmem [shape: bf16[2,8,8], index: 3, kind: input, shape index: {}]
  %s4 = inlined_call_operand.vmem [shape: bf16[2,8,128], index: 4, kind: output, shape index: {}]
  %s5 = sld [smem:[#allocation0]]
  $region57: #{transformer_forward.12} parent=0
    _
  %s7 = ssub.s32 1, %s5
  %s8 = scalar_select 0, %s7, %s5
  loop: start=0, step=1, limit=4
  $region2: #{transformer_forward.12} parent=0 // loop_pre_header
    _
  $region3: #{transformer_forward.12} parent=0 // loop_header
    %s10 = sphi 0, %s14
    %p11 = scmp.ge.s32.totalorder %s10, 4
    %s17 = sphi 0, %s36
    %s18 = sphi 0, %s32
    %s19 = sphi 0, %s28
    %s20 = sphi 0, %s17
    %s21 = sphi 0, %s18
    %s22 = sphi 0, %s19
    %s23 = sphi 0, %s20
    %s24 = sphi 0, %s21
    %s25 = sphi 0, %s22
    %s41 = sphi 0, %s43
    %s44 = sphi 0, %s41
    %s45 = sphi 0, %s44
    %s61 = sphi 0, %s45
    %s69 = sphi 0, %s71
    %s72 = sphi 0, %s69
    %s73 = sphi 0, %s72
    %s89 = sphi 0, %s73
    %s97 = sphi 0, %s99
    %s100 = sphi 0, %s97
    %s101 = sphi 0, %s100
    %s117 = sphi 0, %s101
    %s127 = sphi 0, %s129
    %s130 = sphi 0, %s127
    %s131 = sphi 0, %s130
    %s147 = sphi 0, %s131
    %s155 = sphi 0, %s157
    %s158 = sphi 0, %s155
    %s159 = sphi 0, %s158
    %s175 = sphi 0, %s159
  $region4: #{transformer_forward.12} parent=0 // loop_header_branch
    %13 = sbr.rel (%p11) target = $region8
  $region5: #{transformer_forward.12} parent=0 // loop_body
    %s15 = ssub.s32 %s10, 1
    %s16 = ssub.s32 %s10, 2
    %s26 = sadd.s32 1, %s19
    %p27 = scmp.ge.s32.totalorder %s26, 1
    %s28 = scalar_select %p27, 0, %s26
    %s29 = sadd.s32 1, %s18
    %s30 = scalar_select %p27, %s29, %s18
    %p31 = scmp.ge.s32.totalorder %s30, 1
    %s32 = scalar_select %p31, 0, %s30
    %s33 = sadd.s32 1, %s17
    %s34 = scalar_select %p31, %s33, %s17
    %p35 = scmp.ge.s32.totalorder %s34, 2
    %s36 = scalar_select %p35, 0, %s34
    %s37 = ssub.s32 %s17, %s36
    %s38 = ssub.s32 %s18, %s32
    %s39 = sor.u32 %s37, %s38
    %p40 = scmp.eq.s32.totalorder %s39, 0
    %s42 = sadd.s32 %s41, 1
    %s43 = scalar_select %p40, %s41, %s42
    %p46 = pneg %p40
    %p47 = scmp.eq.s32.totalorder %s10, 1
    %p48 = por %p46, %p47
    %p49 = scmp.ne.s32.totalorder %s41, %s44
    %p50 = scmp.eq.s32.totalorder %s10, 0
    %p51 = por %p49, %p50
    %p52 = scmp.ne.s32.totalorder %s41, %s44
    %p53 = scmp.eq.s32.totalorder %s15, 1
    %p54 = por %p52, %p53
    %p55 = scmp.ne.s32.totalorder %s44, %s45
    %p56 = scmp.eq.s32.totalorder %s15, 0
    %p57 = por %p55, %p56
    %p58 = scmp.ne.s32.totalorder %s44, %s45
    %p59 = scmp.eq.s32.totalorder %s16, 1
    %p60 = por %p58, %p59
    %p62 = scmp.ne.s32.totalorder %s45, %s61
    %p63 = scmp.eq.s32.totalorder %s16, 0
    %p64 = por %p62, %p63
    %s65 = ssub.s32 %s17, %s36
    %s66 = ssub.s32 %s19, %s28
    %s67 = sor.u32 %s65, %s66
    %p68 = scmp.eq.s32.totalorder %s67, 0
    %s70 = sadd.s32 %s69, 1
    %s71 = scalar_select %p68, %s69, %s70
    %p74 = pneg %p68
    %p75 = scmp.eq.s32.totalorder %s10, 1
    %p76 = por %p74, %p75
    %p77 = scmp.ne.s32.totalorder %s69, %s72
    %p78 = scmp.eq.s32.totalorder %s10, 0
    %p79 = por %p77, %p78
    %p80 = scmp.ne.s32.totalorder %s69, %s72
    %p81 = scmp.eq.s32.totalorder %s15, 1
    %p82 = por %p80, %p81
    %p83 = scmp.ne.s32.totalorder %s72, %s73
    %p84 = scmp.eq.s32.totalorder %s15, 0
    %p85 = por %p83, %p84
    %p86 = scmp.ne.s32.totalorder %s72, %s73
    %p87 = scmp.eq.s32.totalorder %s16, 1
    %p88 = por %p86, %p87
    %p90 = scmp.ne.s32.totalorder %s73, %s89
    %p91 = scmp.eq.s32.totalorder %s16, 0
    %p92 = por %p90, %p91
    %s93 = ssub.s32 %s17, %s36
    %s94 = ssub.s32 %s19, %s28
    %s95 = sor.u32 %s93, %s94
    %p96 = scmp.eq.s32.totalorder %s95, 0
    %s98 = sadd.s32 %s97, 1
    %s99 = scalar_select %p96, %s97, %s98
    %p102 = pneg %p96
    %p103 = scmp.eq.s32.totalorder %s10, 1
    %p104 = por %p102, %p103
    %p105 = scmp.ne.s32.totalorder %s97, %s100
    %p106 = scmp.eq.s32.totalorder %s10, 0
    %p107 = por %p105, %p106
    %p108 = scmp.ne.s32.totalorder %s97, %s100
    %p109 = scmp.eq.s32.totalorder %s15, 1
    %p110 = por %p108, %p109
    %p111 = scmp.ne.s32.totalorder %s100, %s101
    %p112 = scmp.eq.s32.totalorder %s15, 0
    %p113 = por %p111, %p112
    %p114 = scmp.ne.s32.totalorder %s100, %s101
    %p115 = scmp.eq.s32.totalorder %s16, 1
    %p116 = por %p114, %p115
    %p118 = scmp.ne.s32.totalorder %s101, %s117
    %p119 = scmp.eq.s32.totalorder %s16, 0
    %p120 = por %p118, %p119
    %s121 = ssub.s32 %s17, %s36
    %s122 = ssub.s32 %s18, %s32
    %s123 = sor.u32 %s121, %s122
    %s124 = ssub.s32 %s19, %s28
    %s125 = sor.u32 %s123, %s124
    %p126 = scmp.eq.s32.totalorder %s125, 0
    %s128 = sadd.s32 %s127, 1
    %s129 = scalar_select %p126, %s127, %s128
    %p132 = pneg %p126
    %p133 = scmp.eq.s32.totalorder %s10, 1
    %p134 = por %p132, %p133
    %p135 = scmp.ne.s32.totalorder %s127, %s130
    %p136 = scmp.eq.s32.totalorder %s10, 0
    %p137 = por %p135, %p136
    %p138 = scmp.ne.s32.totalorder %s127, %s130
    %p139 = scmp.eq.s32.totalorder %s15, 1
    %p140 = por %p138, %p139
    %p141 = scmp.ne.s32.totalorder %s130, %s131
    %p142 = scmp.eq.s32.totalorder %s15, 0
    %p143 = por %p141, %p142
    %p144 = scmp.ne.s32.totalorder %s130, %s131
    %p145 = scmp.eq.s32.totalorder %s16, 1
    %p146 = por %p144, %p145
    %p148 = scmp.ne.s32.totalorder %s131, %s147
    %p149 = scmp.eq.s32.totalorder %s16, 0
    %p150 = por %p148, %p149
    %s151 = ssub.s32 %s17, %s36
    %s152 = ssub.s32 %s18, %s32
    %s153 = sor.u32 %s151, %s152
    %p154 = scmp.eq.s32.totalorder %s153, 0
    %s156 = sadd.s32 %s155, 1
    %s157 = scalar_select %p154, %s155, %s156
    %p160 = pneg %p154
    %p161 = scmp.eq.s32.totalorder %s10, 1
    %p162 = por %p160, %p161
    %p163 = scmp.ne.s32.totalorder %s155, %s158
    %p164 = scmp.eq.s32.totalorder %s10, 0
    %p165 = por %p163, %p164
    %p166 = scmp.ne.s32.totalorder %s155, %s158
    %p167 = scmp.eq.s32.totalorder %s15, 1
    %p168 = por %p166, %p167
    %p169 = scmp.ne.s32.totalorder %s158, %s159
    %p170 = scmp.eq.s32.totalorder %s15, 0
    %p171 = por %p169, %p170
    %p172 = scmp.ne.s32.totalorder %s158, %s159
    %p173 = scmp.eq.s32.totalorder %s16, 1
    %p174 = por %p172, %p173
    %p176 = scmp.ne.s32.totalorder %s159, %s175
    %p177 = scmp.eq.s32.totalorder %s16, 0
    %p178 = por %p176, %p177
    %p179 = scmp.le.s32.totalorder 1, %s10
    %p180 = scmp.lt.s32.totalorder %s10, 3
    %p181 = pnand %p179, %p180
    %p182 = pneg %p181
    // Predicated region
    $region9: #{transformer_forward.12} parent=5 // pred_check
      _
    $region10: #{transformer_forward.12} parent=5 // pred_check_branch
      %184 = sbr.rel (%p181) target = $region12
    $region11: #{transformer_forward.12} parent=5 // pred_region
      %s185 = ssub.s32 %s10, 1
    $region12: #{transformer_forward.12} parent=5 // pred_fallthru
      _
    %p186 = scmp.lt.s32.totalorder %s10, 2
    // Predicated region
    $region13: #{transformer_forward.12} parent=5 // pred_check
      %p187 = pneg %p186
    $region14: #{transformer_forward.12} parent=5 // pred_check_branch
      %189 = sbr.rel (%p187) target = $region16
    $region15: #{transformer_forward.12} parent=5 // pred_region
      // Predicated region
      $region17: #{transformer_forward.12} parent=15 // pred_check
        %p190 = pneg %p51
      $region18: #{transformer_forward.12} parent=15 // pred_check_branch
        %192 = sbr.rel (%p190) target = $region20
      $region19: #{transformer_forward.12} parent=15 // pred_region
        %p193 = scmp.lt.s32.totalorder %s17, 1
        %s194 = scalar_select %p193, %s17, 1
        %p195 = scmp.lt.s32.totalorder %s18, 0
        %s196 = scalar_select %p195, %s18, 0
        %s197 = smul.addr %s196, 3
        %s198 = smul.addr %s194, 3
        %s199 = sadd.s32 %s197, %s198
        %s200 = smul.addr %s199, 4
        %s201 = scalar_lea.vmem %s0, %s200
      $region20: #{transformer_forward.12} parent=15 // pred_fallthru
        _
      // Predicated region
      $region21: #{transformer_forward.12} parent=15 // pred_check
        %p202 = pneg %p79
      $region22: #{transformer_forward.12} parent=15 // pred_check_branch
        %204 = sbr.rel (%p202) target = $region24
      $region23: #{transformer_forward.12} parent=15 // pred_region
        %p205 = scmp.lt.s32.totalorder %s17, 1
        %s206 = scalar_select %p205, %s17, 1
        %p207 = scmp.lt.s32.totalorder %s19, 0
        %s208 = scalar_select %p207, %s19, 0
        %s209 = smul.addr %s208, 3
        %s210 = sadd.s32 1, %s209
        %s211 = smul.addr %s206, 3
        %s212 = sadd.s32 %s210, %s211
        %s213 = smul.addr %s212, 4
        %s214 = scalar_lea.vmem %s1, %s213
      $region24: #{transformer_forward.12} parent=15 // pred_fallthru
        _
      // Predicated region
      $region25: #{transformer_forward.12} parent=15 // pred_check
        %p215 = pneg %p107
      $region26: #{transformer_forward.12} parent=15 // pred_check_branch
        %217 = sbr.rel (%p215) target = $region28
      $region27: #{transformer_forward.12} parent=15 // pred_region
        %p218 = scmp.lt.s32.totalorder %s17, 1
        %s219 = scalar_select %p218, %s17, 1
        %p220 = scmp.lt.s32.totalorder %s19, 0
        %s221 = scalar_select %p220, %s19, 0
        %s222 = smul.addr %s221, 3
        %s223 = sadd.s32 2, %s222
        %s224 = smul.addr %s219, 3
        %s225 = sadd.s32 %s223, %s224
        %s226 = smul.addr %s225, 4
        %s227 = scalar_lea.vmem %s2, %s226
      $region28: #{transformer_forward.12} parent=15 // pred_fallthru
        _
      // Predicated region
      $region29: #{transformer_forward.12} parent=15 // pred_check
        %p228 = pneg %p137
      $region30: #{transformer_forward.12} parent=15 // pred_check_branch
        %230 = sbr.rel (%p228) target = $region32
      $region31: #{transformer_forward.12} parent=15 // pred_region
        %p231 = scmp.lt.s32.totalorder %s17, 1
        %s232 = scalar_select %p231, %s17, 1
        %p233 = scmp.lt.s32.totalorder %s18, 0
        %s234 = scalar_select %p233, %s18, 0
        %p235 = scmp.lt.s32.totalorder %s19, 0
        %s236 = scalar_select %p235, %s19, 0
        %s237 = sadd.s32 %s236, %s234
        %s238 = sadd.s32 %s237, %s232
        %s239 = smul.addr %s238, 4
        %s240 = scalar_lea.vmem %s3, %s239
      $region32: #{transformer_forward.12} parent=15 // pred_fallthru
        _
    $region16: #{transformer_forward.12} parent=5 // pred_fallthru
      _
    %p241 = scmp.le.s32.totalorder 1, %s10
    %p242 = scmp.lt.s32.totalorder %s10, 3
    %p243 = pnand %p241, %p242
    %p244 = pneg %p243
    // Predicated region
    $region33: #{transformer_forward.12} parent=5 // pred_check
      _
    $region34: #{transformer_forward.12} parent=5 // pred_check_branch
      %246 = sbr.rel (%p243) target = $region36
    $region35: #{transformer_forward.12} parent=5 // pred_region
      %s247 = ssub.s32 %s10, 1
      %p248 = scmp.lt.s32.totalorder %s20, 1
      %s249 = scalar_select %p248, %s20, 1
      %p250 = scmp.lt.s32.totalorder %s21, 0
      %s251 = scalar_select %p250, %s21, 0
      %s252 = smul.addr %s251, 3
      %s253 = smul.addr %s249, 3
      %s254 = sadd.s32 %s252, %s253
      %s255 = smul.addr %s254, 4
      %s256 = scalar_lea.vmem %s0, %s255
      %p257 = pneg %p57
      %p258 = pneg %p54
      %p259 = scmp.lt.s32.totalorder %s20, 1
      %s260 = scalar_select %p259, %s20, 1
      %p261 = scmp.lt.s32.totalorder %s22, 0
      %s262 = scalar_select %p261, %s22, 0
      %s263 = smul.addr %s262, 3
      %s264 = sadd.s32 1, %s263
      %s265 = smul.addr %s260, 3
      %s266 = sadd.s32 %s264, %s265
      %s267 = smul.addr %s266, 4
      %s268 = scalar_lea.vmem %s1, %s267
      %p269 = pneg %p85
      %p270 = pneg %p82
      %p271 = scmp.lt.s32.totalorder %s20, 1
      %s272 = scalar_select %p271, %s20, 1
      %p273 = scmp.lt.s32.totalorder %s22, 0
      %s274 = scalar_select %p273, %s22, 0
      %s275 = smul.addr %s274, 3
      %s276 = sadd.s32 2, %s275
      %s277 = smul.addr %s272, 3
      %s278 = sadd.s32 %s276, %s277
      %s279 = smul.addr %s278, 4
      %s280 = scalar_lea.vmem %s2, %s279
      %p281 = pneg %p113
      %p282 = pneg %p110
      %p283 = scmp.lt.s32.totalorder %s20, 1
      %s284 = scalar_select %p283, %s20, 1
      %p285 = scmp.lt.s32.totalorder %s21, 0
      %s286 = scalar_select %p285, %s21, 0
      %p287 = scmp.lt.s32.totalorder %s22, 0
      %s288 = scalar_select %p287, %s22, 0
      %s289 = sadd.s32 %s288, %s286
      %s290 = sadd.s32 %s289, %s284
      %s291 = smul.addr %s290, 4
      %s292 = scalar_lea.vmem %s3, %s291
      %p293 = pneg %p143
      %p294 = pneg %p140
      %p295 = pneg %p171
      %p296 = pneg %p168
      %p297 = scmp.lt.s32.totalorder %s20, 1
      %s298 = scalar_select %p297, %s20, 1
      %p299 = scmp.lt.s32.totalorder %s21, 0
      %s300 = scalar_select %p299, %s21, 0
      %s301 = sadd.s32 %s300, %s298
      %s302 = smul.addr %s301, 4
      %s303 = scalar_lea.vmem %s4, %s302
      %p304 = scmp.lt.s32.totalorder %s20, 1
      %s305 = scalar_select %p304, %s20, 1
      %p306 = scmp.lt.s32.totalorder %s21, 0
      %s307 = scalar_select %p306, %s21, 0
      %s308 = smul.addr %s307, 3
      %s309 = smul.addr %s305, 3
      %s310 = sadd.s32 %s308, %s309
      %s311 = smul.addr %s310, 4
      %s312 = scalar_lea.vmem %s0, %s311
      %p313 = scmp.lt.s32.totalorder %s20, 1
      %s314 = scalar_select %p313, %s20, 1
      %p315 = scmp.lt.s32.totalorder %s22, 0
      %s316 = scalar_select %p315, %s22, 0
      %s317 = smul.addr %s316, 3
      %s318 = sadd.s32 1, %s317
      %s319 = smul.addr %s314, 3
      %s320 = sadd.s32 %s318, %s319
      %s321 = smul.addr %s320, 4
      %s322 = scalar_lea.vmem %s1, %s321
      %p323 = scmp.lt.s32.totalorder %s20, 1
      %s324 = scalar_select %p323, %s20, 1
      %p325 = scmp.lt.s32.totalorder %s22, 0
      %s326 = scalar_select %p325, %s22, 0
      %s327 = smul.addr %s326, 3
      %s328 = sadd.s32 2, %s327
      %s329 = smul.addr %s324, 3
      %s330 = sadd.s32 %s328, %s329
      %s331 = smul.addr %s330, 4
      %s332 = scalar_lea.vmem %s2, %s331
      %p333 = scmp.lt.s32.totalorder %s20, 1
      %s334 = scalar_select %p333, %s20, 1
      %p335 = scmp.lt.s32.totalorder %s21, 0
      %s336 = scalar_select %p335, %s21, 0
      %p337 = scmp.lt.s32.totalorder %s22, 0
      %s338 = scalar_select %p337, %s22, 0
      %s339 = sadd.s32 %s338, %s336
      %s340 = sadd.s32 %s339, %s334
      %s341 = smul.addr %s340, 4
      %s342 = scalar_lea.vmem %s3, %s341
      %p343 = scmp.lt.s32.totalorder %s20, 1
      %s344 = scalar_select %p343, %s20, 1
      %p345 = scmp.lt.s32.totalorder %s21, 0
      %s346 = scalar_select %p345, %s21, 0
      %s347 = sadd.s32 %s346, %s344
      %s348 = smul.addr %s347, 4
      %s349 = scalar_lea.vmem %s4, %s348
      %p351 = scmp.eq.s32.totalorder %s22, 0
      // Predicated region
      $region37: #{transformer_forward.12} parent=35 // pred_check
        %p352 = pneg %p351
      $region38: #{transformer_forward.12} parent=35 // pred_check_branch
        %354 = sbr.rel (%p352) target = $region40
      $region39: #{transformer_forward.12} parent=35 // pred_region
        %vm355 = vcmask 7168
        %356 = vst.msk [vmem:[#allocation2] sm:$0xff] %vm355, -1e+30
        %357 = vst.msk [vmem:[#allocation2 + $0x8] sm:$0xff] %vm355, -1e+30
        %358 = vst.msk [vmem:[#allocation2 + $0x10] sm:$0xff] %vm355, -1e+30
        %359 = vst.msk [vmem:[#allocation2 + $0x18] sm:$0xff] %vm355, -1e+30
        %360 = vst.msk [vmem:[#allocation3] sm:$0xff] %vm355, 0.0
        %361 = vst.msk [vmem:[#allocation3 + $0x8] sm:$0xff] %vm355, 0.0
        %362 = vst.msk [vmem:[#allocation3 + $0x10] sm:$0xff] %vm355, 0.0
        %363 = vst.msk [vmem:[#allocation3 + $0x18] sm:$0xff] %vm355, 0.0
        %vm364 = vcmask 261120
        %365 = vst.msk [vmem:[#allocation4] sm:$0xff] %vm364, 0.0
        %366 = vst.msk [vmem:[#allocation4 + $0x8] sm:$0xff] %vm364, 0.0
        %367 = vst.msk [vmem:[#allocation4 + $0x10] sm:$0xff] %vm364, 0.0
        %368 = vst.msk [vmem:[#allocation4 + $0x18] sm:$0xff] %vm364, 0.0
      $region40: #{transformer_forward.12} parent=35 // pred_fallthru
        _
      %v369 = vld [vmem:[%s312] sm:$0xf]
      %v370 = vld [vmem:[%s322] sm:$0xf]
      %v371 = vld [vmem:[%s332] sm:$0xf]
      %v372 = vld [vmem:[%s342] sm:$0xf]
      %v373 = vunpack.c.l.bf16 %v372
      %vm374 = vcmask 261120
      %v376 = vsel %vm374, %v369, 0
      %v379 = vsel %vm374, %v370, 0
      %381 = vmatprep.subr.bf16.mxu0 0
      %382 = vmatpush1.bf16.xpose.msra.mxu0 0
      %383 = vmatprep.subr.bf16.mxu0 0
      %384 = vmatpush1.bf16.xpose.msra.mxu0 0
      %385 = vmatprep.subr.bf16.mxu0 0
      %386 = vmatpush1.bf16.xpose.msra.mxu0 0
      %387 = vmatprep.subr.bf16.mxu0 0
      %388 = vmatpush1.bf16.xpose.msra.mxu0 0
      %389 = vmatprep.subr.bf16.mxu0 0
      %390 = vmatpush1.bf16.xpose.msra.mxu0 0
      %391 = vmatprep.subr.bf16.mxu0 0
      %392 = vmatpush1.bf16.xpose.msra.mxu0 0
      %393 = vmatprep.subr.bf16.mxu0 0
      %394 = vmatpush1.bf16.xpose.msra.mxu0 0
      %395 = vmatprep.subr.bf16.mxu0 0
      %396 = vmatpush1.bf16.xpose.msra.mxu0 %v379
      %397 = vmatprep.subr.bf16.mxu0 0
      %398 = vmatpush2.bf16.xpose.msra.mxu0 0
      %399 = vmatprep.subr.bf16.mxu0 0
      %400 = vmatpush2.bf16.xpose.msra.mxu0 0
      %401 = vmatprep.subr.bf16.mxu0 0
      %402 = vmatpush2.bf16.xpose.msra.mxu0 0
      %403 = vmatprep.subr.bf16.mxu0 0
      %404 = vmatpush2.bf16.xpose.msra.mxu0 0
      %405 = vmatprep.subr.bf16.mxu0 0
      %406 = vmatpush2.bf16.xpose.msra.mxu0 0
      %407 = vmatprep.subr.bf16.mxu0 0
      %408 = vmatpush2.bf16.xpose.msra.mxu0 0
      %409 = vmatprep.subr.bf16.mxu0 0
      %410 = vmatpush2.bf16.xpose.msra.mxu0 0
      %411 = vmatprep.subr.bf16.mxu0 0
      %412 = vmatpush2.bf16.xpose.msra.mxu0 0
      %413 = vmatprep.mubr.bf16.mxu0 0
      %414 = vmatmul.mubr.bf16.gmra.mxu0 %v376
      %v415 = vpop.f32.mrf.mxu0
      %v416 = vadd.f32 %v373, %v415
      %v417 = vpop.f32.mrf.mxu0
      %v418 = vpop.f32.mrf.mxu0
      %v419 = vpop.f32.mrf.mxu0
      %420 = vdwg.mxu0
      %v421 = vld [vmem:[#allocation2] sm:$0xff]
      %vm422 = vcmask 64512
      %v423 = vsel %vm422, %v416, -inf
      %424 = vmax.xlane.f32.xlu0 %v423
      %v425 = vpop.xlane.xlu0 %424
      %v426 = vmax.f32 %v421, %v425
      %v427 = vsub.f32 %v421, %v426
      %v428 = vmul.f32 %v427, 1.442695
      %v429 = vpow.pop %v428
      %431 = vset.pattern.permute.xlu0 0
      %432 = vperm.xlu0 %431, %v426
      %v433 = vpop.permute.xlu0 %432
      %v435 = vsub.f32 %v416, %v433
      %v436 = vmul.f32 %v435, 1.442695
      %v437 = vpow.pop %v436
      %v438 = vld [vmem:[#allocation3] sm:$0xff]
      %v439 = vmul.f32 %v429, %v438
      %v440 = vsel %vm422, %v437, 0.0
      %441 = vadd.xlane.f32.xlu0 %v440
      %v442 = vpop.xlane.xlu0 %441
      %v443 = vadd.f32 %v439, %v442
      %vm444 = vcmask 7168
      %445 = vst.msk [vmem:[#allocation3] sm:$0xff] %vm444, %v443
      %v446 = vld [vmem:[#allocation4] sm:$0xff]
      %448 = vset.pattern.permute.xlu0 0
      %449 = vperm.xlu0 %448, %v429
      %v450 = vpop.permute.xlu0 %449
      %v452 = vmul.f32 %v450, %v446
      %v453 = vpack.c.bf16 %v437, %v437
      %v455 = vsel %vm422, %v453, 0
      %vm457 = vcmask 1043456
      %v459 = vsel %vm457, %v371, 0
      %461 = vmatprep.subr.bf16.mxu0 0
      %462 = vmatpush1.bf16.msra.mxu0 0
      %463 = vmatprep.subr.bf16.mxu0 0
      %464 = vmatpush1.bf16.msra.mxu0 0
      %465 = vmatprep.subr.bf16.mxu0 0
      %466 = vmatpush1.bf16.msra.mxu0 0
      %467 = vmatprep.subr.bf16.mxu0 0
      %468 = vmatpush1.bf16.msra.mxu0 0
      %469 = vmatprep.subr.bf16.mxu0 0
      %470 = vmatpush1.bf16.msra.mxu0 0
      %471 = vmatprep.subr.bf16.mxu0 0
      %472 = vmatpush1.bf16.msra.mxu0 0
      %473 = vmatprep.subr.bf16.mxu0 0
      %474 = vmatpush1.bf16.msra.mxu0 0
      %475 = vmatprep.subr.bf16.mxu0 0
      %476 = vmatpush1.bf16.msra.mxu0 %v459
      %477 = vmatprep.subr.bf16.mxu0 0
      %478 = vmatpush2.bf16.msra.mxu0 0
      %479 = vmatprep.subr.bf16.mxu0 0
      %480 = vmatpush2.bf16.msra.mxu0 0
      %481 = vmatprep.subr.bf16.mxu0 0
      %482 = vmatpush2.bf16.msra.mxu0 0
      %483 = vmatprep.subr.bf16.mxu0 0
      %484 = vmatpush2.bf16.msra.mxu0 0
      %485 = vmatprep.subr.bf16.mxu0 0
      %486 = vmatpush2.bf16.msra.mxu0 0
      %487 = vmatprep.subr.bf16.mxu0 0
      %488 = vmatpush2.bf16.msra.mxu0 0
      %489 = vmatprep.subr.bf16.mxu0 0
      %490 = vmatpush2.bf16.msra.mxu0 0
      %491 = vmatprep.subr.bf16.mxu0 0
      %492 = vmatpush2.bf16.msra.mxu0 0
      %493 = vmatprep.mubr.bf16.mxu0 0
      %494 = vmatmul.mubr.bf16.gmra.mxu0 %v455
      %v495 = vpop.f32.mrf.mxu0
      %v496 = vadd.f32 0.0, %v495
      %v497 = vpop.f32.mrf.mxu0
      %v498 = vpop.f32.mrf.mxu0
      %v499 = vpop.f32.mrf.mxu0
      %500 = vdwg.mxu0
      %v501 = vadd.f32 %v452, %v496
      %502 = vst.msk [vmem:[#allocation4] sm:$0xff] %vm374, %v501
      %503 = vst.msk [vmem:[#allocation2] sm:$0xff] %vm444, %v426
      %v505 = vunpack.c.l.b16 %v369
      %v506 = vpack.c.b16 %v505, %v505
      %507 = vrot.lane.b32.xlu0 %v506, 96
      %v508 = vpop.permute.xlu0 %507
      %v510 = vunpack.c.l.b16 %v370
      %v511 = vpack.c.b16 %v510, %v510
      %512 = vrot.lane.b32.xlu0 %v511, 96
      %v513 = vpop.permute.xlu0 %512
      %v515 = vsel %vm374, %v508, 0
      %v518 = vsel %vm374, %v513, 0
      %520 = vmatprep.subr.bf16.mxu0 0
      %521 = vmatpush1.bf16.xpose.msra.mxu0 0
      %522 = vmatprep.subr.bf16.mxu0 0
      %523 = vmatpush1.bf16.xpose.msra.mxu0 0
      %524 = vmatprep.subr.bf16.mxu0 0
      %525 = vmatpush1.bf16.xpose.msra.mxu0 0
      %526 = vmatprep.subr.bf16.mxu0 0
      %527 = vmatpush1.bf16.xpose.msra.mxu0 0
      %528 = vmatprep.subr.bf16.mxu0 0
      %529 = vmatpush1.bf16.xpose.msra.mxu0 0
      %530 = vmatprep.subr.bf16.mxu0 0
      %531 = vmatpush1.bf16.xpose.msra.mxu0 0
      %532 = vmatprep.subr.bf16.mxu0 0
      %533 = vmatpush1.bf16.xpose.msra.mxu0 0
      %534 = vmatprep.subr.bf16.mxu0 0
      %535 = vmatpush1.bf16.xpose.msra.mxu0 %v518
      %536 = vmatprep.subr.bf16.mxu0 0
      %537 = vmatpush2.bf16.xpose.msra.mxu0 0
      %538 = vmatprep.subr.bf16.mxu0 0
      %539 = vmatpush2.bf16.xpose.msra.mxu0 0
      %540 = vmatprep.subr.bf16.mxu0 0
      %541 = vmatpush2.bf16.xpose.msra.mxu0 0
      %542 = vmatprep.subr.bf16.mxu0 0
      %543 = vmatpush2.bf16.xpose.msra.mxu0 0
      %544 = vmatprep.subr.bf16.mxu0 0
      %545 = vmatpush2.bf16.xpose.msra.mxu0 0
      %546 = vmatprep.subr.bf16.mxu0 0
      %547 = vmatpush2.bf16.xpose.msra.mxu0 0
      %548 = vmatprep.subr.bf16.mxu0 0
      %549 = vmatpush2.bf16.xpose.msra.mxu0 0
      %550 = vmatprep.subr.bf16.mxu0 0
      %551 = vmatpush2.bf16.xpose.msra.mxu0 0
      %552 = vmatprep.mubr.bf16.mxu0 0
      %553 = vmatmul.mubr.bf16.gmra.mxu0 %v515
      %v554 = vpop.f32.mrf.mxu0
      %v555 = vadd.f32 %v373, %v554
      %v556 = vpop.f32.mrf.mxu0
      %v557 = vpop.f32.mrf.mxu0
      %v558 = vpop.f32.mrf.mxu0
      %559 = vdwg.mxu0
      %s560 = scalar_lea.vmem [#allocation2], 8
      %v561 = vld [vmem:[%s560] sm:$0xff]
      %v562 = vsel %vm422, %v555, -inf
      %563 = vmax.xlane.f32.xlu0 %v562
      %v564 = vpop.xlane.xlu0 %563
      %v565 = vmax.f32 %v561, %v564
      %v566 = vsub.f32 %v561, %v565
      %v567 = vmul.f32 %v566, 1.442695
      %v568 = vpow.pop %v567
      %570 = vset.pattern.permute.xlu0 0
      %571 = vperm.xlu0 %570, %v565
      %v572 = vpop.permute.xlu0 %571
      %v574 = vsub.f32 %v555, %v572
      %v575 = vmul.f32 %v574, 1.442695
      %v576 = vpow.pop %v575
      %s577 = scalar_lea.vmem [#allocation3], 8
      %v578 = vld [vmem:[%s577] sm:$0xff]
      %v579 = vmul.f32 %v568, %v578
      %v580 = vsel %vm422, %v576, 0.0
      %581 = vadd.xlane.f32.xlu0 %v580
      %v582 = vpop.xlane.xlu0 %581
      %v583 = vadd.f32 %v579, %v582
      %584 = vst.msk [vmem:[%s577] sm:$0xff] %vm444, %v583
      %s585 = scalar_lea.vmem [#allocation4], 8
      %v586 = vld [vmem:[%s585] sm:$0xff]
      %588 = vset.pattern.permute.xlu0 0
      %589 = vperm.xlu0 %588, %v568
      %v590 = vpop.permute.xlu0 %589
      %v592 = vmul.f32 %v590, %v586
      %v593 = vpack.c.bf16 %v576, %v576
      %v595 = vunpack.c.l.b16 %v371
      %v596 = vpack.c.b16 %v595, %v595
      %597 = vrot.lane.b32.xlu0 %v596, 96
      %v598 = vpop.permute.xlu0 %597
      %v600 = vsel %vm422, %v593, 0
      %v603 = vsel %vm457, %v598, 0
      %605 = vmatprep.subr.bf16.mxu0 0
      %606 = vmatpush1.bf16.msra.mxu0 0
      %607 = vmatprep.subr.bf16.mxu0 0
      %608 = vmatpush1.bf16.msra.mxu0 0
      %609 = vmatprep.subr.bf16.mxu0 0
      %610 = vmatpush1.bf16.msra.mxu0 0
      %611 = vmatprep.subr.bf16.mxu0 0
      %612 = vmatpush1.bf16.msra.mxu0 0
      %613 = vmatprep.subr.bf16.mxu0 0
      %614 = vmatpush1.bf16.msra.mxu0 0
      %615 = vmatprep.subr.bf16.mxu0 0
      %616 = vmatpush1.bf16.msra.mxu0 0
      %617 = vmatprep.subr.bf16.mxu0 0
      %618 = vmatpush1.bf16.msra.mxu0 0
      %619 = vmatprep.subr.bf16.mxu0 0
      %620 = vmatpush1.bf16.msra.mxu0 %v603
      %621 = vmatprep.subr.bf16.mxu0 0
      %622 = vmatpush2.bf16.msra.mxu0 0
      %623 = vmatprep.subr.bf16.mxu0 0
      %624 = vmatpush2.bf16.msra.mxu0 0
      %625 = vmatprep.subr.bf16.mxu0 0
      %626 = vmatpush2.bf16.msra.mxu0 0
      %627 = vmatprep.subr.bf16.mxu0 0
      %628 = vmatpush2.bf16.msra.mxu0 0
      %629 = vmatprep.subr.bf16.mxu0 0
      %630 = vmatpush2.bf16.msra.mxu0 0
      %631 = vmatprep.subr.bf16.mxu0 0
      %632 = vmatpush2.bf16.msra.mxu0 0
      %633 = vmatprep.subr.bf16.mxu0 0
      %634 = vmatpush2.bf16.msra.mxu0 0
      %635 = vmatprep.subr.bf16.mxu0 0
      %636 = vmatpush2.bf16.msra.mxu0 0
      %637 = vmatprep.mubr.bf16.mxu0 0
      %638 = vmatmul.mubr.bf16.gmra.mxu0 %v600
      %v639 = vpop.f32.mrf.mxu0
      %v640 = vadd.f32 0.0, %v639
      %v641 = vpop.f32.mrf.mxu0
      %v642 = vpop.f32.mrf.mxu0
      %v643 = vpop.f32.mrf.mxu0
      %644 = vdwg.mxu0
      %v645 = vadd.f32 %v592, %v640
      %646 = vst.msk [vmem:[%s585] sm:$0xff] %vm374, %v645
      %647 = vst.msk [vmem:[%s560] sm:$0xff] %vm444, %v565
      %648 = vrot.lane.b32.xlu0 %v506, 64
      %v649 = vpop.permute.xlu0 %648
      %650 = vrot.lane.b32.xlu0 %v511, 64
      %v651 = vpop.permute.xlu0 %650
      %v653 = vsel %vm374, %v649, 0
      %v656 = vsel %vm374, %v651, 0
      %658 = vmatprep.subr.bf16.mxu0 0
      %659 = vmatpush1.bf16.xpose.msra.mxu0 0
      %660 = vmatprep.subr.bf16.mxu0 0
      %661 = vmatpush1.bf16.xpose.msra.mxu0 0
      %662 = vmatprep.subr.bf16.mxu0 0
      %663 = vmatpush1.bf16.xpose.msra.mxu0 0
      %664 = vmatprep.subr.bf16.mxu0 0
      %665 = vmatpush1.bf16.xpose.msra.mxu0 0
      %666 = vmatprep.subr.bf16.mxu0 0
      %667 = vmatpush1.bf16.xpose.msra.mxu0 0
      %668 = vmatprep.subr.bf16.mxu0 0
      %669 = vmatpush1.bf16.xpose.msra.mxu0 0
      %670 = vmatprep.subr.bf16.mxu0 0
      %671 = vmatpush1.bf16.xpose.msra.mxu0 0
      %672 = vmatprep.subr.bf16.mxu0 0
      %673 = vmatpush1.bf16.xpose.msra.mxu0 %v656
      %674 = vmatprep.subr.bf16.mxu0 0
      %675 = vmatpush2.bf16.xpose.msra.mxu0 0
      %676 = vmatprep.subr.bf16.mxu0 0
      %677 = vmatpush2.bf16.xpose.msra.mxu0 0
      %678 = vmatprep.subr.bf16.mxu0 0
      %679 = vmatpush2.bf16.xpose.msra.mxu0 0
      %680 = vmatprep.subr.bf16.mxu0 0
      %681 = vmatpush2.bf16.xpose.msra.mxu0 0
      %682 = vmatprep.subr.bf16.mxu0 0
      %683 = vmatpush2.bf16.xpose.msra.mxu0 0
      %684 = vmatprep.subr.bf16.mxu0 0
      %685 = vmatpush2.bf16.xpose.msra.mxu0 0
      %686 = vmatprep.subr.bf16.mxu0 0
      %687 = vmatpush2.bf16.xpose.msra.mxu0 0
      %688 = vmatprep.subr.bf16.mxu0 0
      %689 = vmatpush2.bf16.xpose.msra.mxu0 0
      %690 = vmatprep.mubr.bf16.mxu0 0
      %691 = vmatmul.mubr.bf16.gmra.mxu0 %v653
      %v692 = vpop.f32.mrf.mxu0
      %v693 = vadd.f32 %v373, %v692
      %v694 = vpop.f32.mrf.mxu0
      %v695 = vpop.f32.mrf.mxu0
      %v696 = vpop.f32.mrf.mxu0
      %697 = vdwg.mxu0
      %s698 = scalar_lea.vmem [#allocation2], 16
      %v699 = vld [vmem:[%s698] sm:$0xff]
      %v700 = vsel %vm422, %v693, -inf
      %701 = vmax.xlane.f32.xlu0 %v700
      %v702 = vpop.xlane.xlu0 %701
      %v703 = vmax.f32 %v699, %v702
      %v704 = vsub.f32 %v699, %v703
      %v705 = vmul.f32 %v704, 1.442695
      %v706 = vpow.pop %v705
      %708 = vset.pattern.permute.xlu0 0
      %709 = vperm.xlu0 %708, %v703
      %v710 = vpop.permute.xlu0 %709
      %v712 = vsub.f32 %v693, %v710
      %v713 = vmul.f32 %v712, 1.442695
      %v714 = vpow.pop %v713
      %s715 = scalar_lea.vmem [#allocation3], 16
      %v716 = vld [vmem:[%s715] sm:$0xff]
      %v717 = vmul.f32 %v706, %v716
      %v718 = vsel %vm422, %v714, 0.0
      %719 = vadd.xlane.f32.xlu0 %v718
      %v720 = vpop.xlane.xlu0 %719
      %v721 = vadd.f32 %v717, %v720
      %722 = vst.msk [vmem:[%s715] sm:$0xff] %vm444, %v721
      %s723 = scalar_lea.vmem [#allocation4], 16
      %v724 = vld [vmem:[%s723] sm:$0xff]
      %726 = vset.pattern.permute.xlu0 0
      %727 = vperm.xlu0 %726, %v706
      %v728 = vpop.permute.xlu0 %727
      %v730 = vmul.f32 %v728, %v724
      %v731 = vpack.c.bf16 %v714, %v714
      %732 = vrot.lane.b32.xlu0 %v596, 64
      %v733 = vpop.permute.xlu0 %732
      %v735 = vsel %vm422, %v731, 0
      %v738 = vsel %vm457, %v733, 0
      %740 = vmatprep.subr.bf16.mxu0 0
      %741 = vmatpush1.bf16.msra.mxu0 0
      %742 = vmatprep.subr.bf16.mxu0 0
      %743 = vmatpush1.bf16.msra.mxu0 0
      %744 = vmatprep.subr.bf16.mxu0 0
      %745 = vmatpush1.bf16.msra.mxu0 0
      %746 = vmatprep.subr.bf16.mxu0 0
      %747 = vmatpush1.bf16.msra.mxu0 0
      %748 = vmatprep.subr.bf16.mxu0 0
      %749 = vmatpush1.bf16.msra.mxu0 0
      %750 = vmatprep.subr.bf16.mxu0 0
      %751 = vmatpush1.bf16.msra.mxu0 0
      %752 = vmatprep.subr.bf16.mxu0 0
      %753 = vmatpush1.bf16.msra.mxu0 0
      %754 = vmatprep.subr.bf16.mxu0 0
      %755 = vmatpush1.bf16.msra.mxu0 %v738
      %756 = vmatprep.subr.bf16.mxu0 0
      %757 = vmatpush2.bf16.msra.mxu0 0
      %758 = vmatprep.subr.bf16.mxu0 0
      %759 = vmatpush2.bf16.msra.mxu0 0
      %760 = vmatprep.subr.bf16.mxu0 0
      %761 = vmatpush2.bf16.msra.mxu0 0
      %762 = vmatprep.subr.bf16.mxu0 0
      %763 = vmatpush2.bf16.msra.mxu0 0
      %764 = vmatprep.subr.bf16.mxu0 0
      %765 = vmatpush2.bf16.msra.mxu0 0
      %766 = vmatprep.subr.bf16.mxu0 0
      %767 = vmatpush2.bf16.msra.mxu0 0
      %768 = vmatprep.subr.bf16.mxu0 0
      %769 = vmatpush2.bf16.msra.mxu0 0
      %770 = vmatprep.subr.bf16.mxu0 0
      %771 = vmatpush2.bf16.msra.mxu0 0
      %772 = vmatprep.mubr.bf16.mxu0 0
      %773 = vmatmul.mubr.bf16.gmra.mxu0 %v735
      %v774 = vpop.f32.mrf.mxu0
      %v775 = vadd.f32 0.0, %v774
      %v776 = vpop.f32.mrf.mxu0
      %v777 = vpop.f32.mrf.mxu0
      %v778 = vpop.f32.mrf.mxu0
      %779 = vdwg.mxu0
      %v780 = vadd.f32 %v730, %v775
      %781 = vst.msk [vmem:[%s723] sm:$0xff] %vm374, %v780
      %782 = vst.msk [vmem:[%s698] sm:$0xff] %vm444, %v703
      %783 = vrot.lane.b32.xlu0 %v506, 32
      %v784 = vpop.permute.xlu0 %783
      %785 = vrot.lane.b32.xlu0 %v511, 32
      %v786 = vpop.permute.xlu0 %785
      %v788 = vsel %vm374, %v784, 0
      %v791 = vsel %vm374, %v786, 0
      %793 = vmatprep.subr.bf16.mxu0 0
      %794 = vmatpush1.bf16.xpose.msra.mxu0 0
      %795 = vmatprep.subr.bf16.mxu0 0
      %796 = vmatpush1.bf16.xpose.msra.mxu0 0
      %797 = vmatprep.subr.bf16.mxu0 0
      %798 = vmatpush1.bf16.xpose.msra.mxu0 0
      %799 = vmatprep.subr.bf16.mxu0 0
      %800 = vmatpush1.bf16.xpose.msra.mxu0 0
      %801 = vmatprep.subr.bf16.mxu0 0
      %802 = vmatpush1.bf16.xpose.msra.mxu0 0
      %803 = vmatprep.subr.bf16.mxu0 0
      %804 = vmatpush1.bf16.xpose.msra.mxu0 0
      %805 = vmatprep.subr.bf16.mxu0 0
      %806 = vmatpush1.bf16.xpose.msra.mxu0 0
      %807 = vmatprep.subr.bf16.mxu0 0
      %808 = vmatpush1.bf16.xpose.msra.mxu0 %v791
      %809 = vmatprep.subr.bf16.mxu0 0
      %810 = vmatpush2.bf16.xpose.msra.mxu0 0
      %811 = vmatprep.subr.bf16.mxu0 0
      %812 = vmatpush2.bf16.xpose.msra.mxu0 0
      %813 = vmatprep.subr.bf16.mxu0 0
      %814 = vmatpush2.bf16.xpose.msra.mxu0 0
      %815 = vmatprep.subr.bf16.mxu0 0
      %816 = vmatpush2.bf16.xpose.msra.mxu0 0
      %817 = vmatprep.subr.bf16.mxu0 0
      %818 = vmatpush2.bf16.xpose.msra.mxu0 0
      %819 = vmatprep.subr.bf16.mxu0 0
      %820 = vmatpush2.bf16.xpose.msra.mxu0 0
      %821 = vmatprep.subr.bf16.mxu0 0
      %822 = vmatpush2.bf16.xpose.msra.mxu0 0
      %823 = vmatprep.subr.bf16.mxu0 0
      %824 = vmatpush2.bf16.xpose.msra.mxu0 0
      %825 = vmatprep.mubr.bf16.mxu0 0
      %826 = vmatmul.mubr.bf16.gmra.mxu0 %v788
      %v827 = vpop.f32.mrf.mxu0
      %v828 = vadd.f32 %v373, %v827
      %v829 = vpop.f32.mrf.mxu0
      %v830 = vpop.f32.mrf.mxu0
      %v831 = vpop.f32.mrf.mxu0
      %832 = vdwg.mxu0
      %s833 = scalar_lea.vmem [#allocation2], 24
      %v834 = vld [vmem:[%s833] sm:$0xff]
      %v835 = vsel %vm422, %v828, -inf
      %836 = vmax.xlane.f32.xlu0 %v835
      %v837 = vpop.xlane.xlu0 %836
      %v838 = vmax.f32 %v834, %v837
      %v839 = vsub.f32 %v834, %v838
      %v840 = vmul.f32 %v839, 1.442695
      %v841 = vpow.pop %v840
      %843 = vset.pattern.permute.xlu0 0
      %844 = vperm.xlu0 %843, %v838
      %v845 = vpop.permute.xlu0 %844
      %v847 = vsub.f32 %v828, %v845
      %v848 = vmul.f32 %v847, 1.442695
      %v849 = vpow.pop %v848
      %s850 = scalar_lea.vmem [#allocation3], 24
      %v851 = vld [vmem:[%s850] sm:$0xff]
      %v852 = vmul.f32 %v841, %v851
      %v853 = vsel %vm422, %v849, 0.0
      %854 = vadd.xlane.f32.xlu0 %v853
      %v855 = vpop.xlane.xlu0 %854
      %v856 = vadd.f32 %v852, %v855
      %857 = vst.msk [vmem:[%s850] sm:$0xff] %vm444, %v856
      %s858 = scalar_lea.vmem [#allocation4], 24
      %v859 = vld [vmem:[%s858] sm:$0xff]
      %861 = vset.pattern.permute.xlu0 0
      %862 = vperm.xlu0 %861, %v841
      %v863 = vpop.permute.xlu0 %862
      %v865 = vmul.f32 %v863, %v859
      %v866 = vpack.c.bf16 %v849, %v849
      %867 = vrot.lane.b32.xlu0 %v596, 32
      %v868 = vpop.permute.xlu0 %867
      %v870 = vsel %vm422, %v866, 0
      %v873 = vsel %vm457, %v868, 0
      %875 = vmatprep.subr.bf16.mxu0 0
      %876 = vmatpush1.bf16.msra.mxu0 0
      %877 = vmatprep.subr.bf16.mxu0 0
      %878 = vmatpush1.bf16.msra.mxu0 0
      %879 = vmatprep.subr.bf16.mxu0 0
      %880 = vmatpush1.bf16.msra.mxu0 0
      %881 = vmatprep.subr.bf16.mxu0 0
      %882 = vmatpush1.bf16.msra.mxu0 0
      %883 = vmatprep.subr.bf16.mxu0 0
      %884 = vmatpush1.bf16.msra.mxu0 0
      %885 = vmatprep.subr.bf16.mxu0 0
      %886 = vmatpush1.bf16.msra.mxu0 0
      %887 = vmatprep.subr.bf16.mxu0 0
      %888 = vmatpush1.bf16.msra.mxu0 0
      %889 = vmatprep.subr.bf16.mxu0 0
      %890 = vmatpush1.bf16.msra.mxu0 %v873
      %891 = vmatprep.subr.bf16.mxu0 0
      %892 = vmatpush2.bf16.msra.mxu0 0
      %893 = vmatprep.subr.bf16.mxu0 0
      %894 = vmatpush2.bf16.msra.mxu0 0
      %895 = vmatprep.subr.bf16.mxu0 0
      %896 = vmatpush2.bf16.msra.mxu0 0
      %897 = vmatprep.subr.bf16.mxu0 0
      %898 = vmatpush2.bf16.msra.mxu0 0
      %899 = vmatprep.subr.bf16.mxu0 0
      %900 = vmatpush2.bf16.msra.mxu0 0
      %901 = vmatprep.subr.bf16.mxu0 0
      %902 = vmatpush2.bf16.msra.mxu0 0
      %903 = vmatprep.subr.bf16.mxu0 0
      %904 = vmatpush2.bf16.msra.mxu0 0
      %905 = vmatprep.subr.bf16.mxu0 0
      %906 = vmatpush2.bf16.msra.mxu0 0
      %907 = vmatprep.mubr.bf16.mxu0 0
      %908 = vmatmul.mubr.bf16.gmra.mxu0 %v870
      %v909 = vpop.f32.mrf.mxu0
      %v910 = vadd.f32 0.0, %v909
      %v911 = vpop.f32.mrf.mxu0
      %v912 = vpop.f32.mrf.mxu0
      %v913 = vpop.f32.mrf.mxu0
      %914 = vdwg.mxu0
      %v915 = vadd.f32 %v865, %v910
      %916 = vst.msk [vmem:[%s858] sm:$0xff] %vm374, %v915
      %917 = vst.msk [vmem:[%s833] sm:$0xff] %vm444, %v838
      // Predicated region
      $region41: #{transformer_forward.12} parent=35 // pred_check
        %p918 = pneg %p351
      $region42: #{transformer_forward.12} parent=35 // pred_check_branch
        %920 = sbr.rel (%p918) target = $region44
      $region43: #{transformer_forward.12} parent=35 // pred_region
        %v921 = vld [vmem:[#allocation4] sm:$0xff]
        %v922 = vld [vmem:[#allocation3] sm:$0xff]
        %v923 = vrcp.pop %v922
        %925 = vset.pattern.permute.xlu0 0
        %926 = vperm.xlu0 %925, %v923
        %v927 = vpop.permute.xlu0 %926
        %v929 = vmul.f32 %v921, %v927
        %v930 = vld [vmem:[%s585] sm:$0xff]
        %v931 = vld [vmem:[%s577] sm:$0xff]
        %v932 = vrcp.pop %v931
        %934 = vset.pattern.permute.xlu0 0
        %935 = vperm.xlu0 %934, %v932
        %v936 = vpop.permute.xlu0 %935
        %v938 = vmul.f32 %v930, %v936
        %v939 = vld [vmem:[%s723] sm:$0xff]
        %v940 = vld [vmem:[%s715] sm:$0xff]
        %v941 = vrcp.pop %v940
        %943 = vset.pattern.permute.xlu0 0
        %944 = vperm.xlu0 %943, %v941
        %v945 = vpop.permute.xlu0 %944
        %v947 = vmul.f32 %v939, %v945
        %v948 = vld [vmem:[%s858] sm:$0xff]
        %v949 = vld [vmem:[%s850] sm:$0xff]
        %v950 = vrcp.pop %v949
        %952 = vset.pattern.permute.xlu0 0
        %953 = vperm.xlu0 %952, %v950
        %v954 = vpop.permute.xlu0 %953
        %v956 = vmul.f32 %v948, %v954
        %958 = vrot.lane.b32.xlu0 %v938, 32
        %v959 = vpop.permute.xlu0 %958
        %962 = vrot.lane.b32.xlu0 %v947, 64
        %v963 = vpop.permute.xlu0 %962
        %966 = vrot.lane.b32.xlu0 %v956, 96
        %v967 = vpop.permute.xlu0 %966
        %v969 = vsel %vm374, %v929, %v959
        %vm970 = vcmask 523264
        %v971 = vsel %vm970, %v969, %v963
        %vm972 = vcmask 785408
        %v973 = vsel %vm972, %v971, %v967
        %v974 = vpack.c.bf16 %v973, %v973
        %975 = vst [vmem:[%s349] sm:$0xf] %v974
      $region44: #{transformer_forward.12} parent=35 // pred_fallthru
        _
      %p976 = scmp.lt.s32.totalorder %s20, 1
      %s977 = scalar_select %p976, %s20, 1
      %p978 = scmp.lt.s32.totalorder %s21, 0
      %s979 = scalar_select %p978, %s21, 0
      %s980 = sadd.s32 %s979, %s977
      %s981 = smul.addr %s980, 4
      %s982 = scalar_lea.vmem %s4, %s981
      // Predicated region
      $region45: #{transformer_forward.12} parent=35 // pred_check
        %p983 = pneg %p168
      $region46: #{transformer_forward.12} parent=35 // pred_check_branch
        %985 = sbr.rel (%p983) target = $region48
      $region47: #{transformer_forward.12} parent=35 // pred_region
        _
      $region48: #{transformer_forward.12} parent=35 // pred_fallthru
        _
    $region36: #{transformer_forward.12} parent=5 // pred_fallthru
      _
    %p986 = scmp.le.s32.totalorder 2, %s10
    // Predicated region
    $region49: #{transformer_forward.12} parent=5 // pred_check
      %p987 = pneg %p986
    $region50: #{transformer_forward.12} parent=5 // pred_check_branch
      %989 = sbr.rel (%p987) target = $region52
    $region51: #{transformer_forward.12} parent=5 // pred_region
      %s990 = ssub.s32 %s10, 2
      // Predicated region
      $region53: #{transformer_forward.12} parent=51 // pred_check
        %p991 = pneg %p174
      $region54: #{transformer_forward.12} parent=51 // pred_check_branch
        %993 = sbr.rel (%p991) target = $region56
      $region55: #{transformer_forward.12} parent=51 // pred_region
        %p994 = scmp.lt.s32.totalorder %s23, 1
        %s995 = scalar_select %p994, %s23, 1
        %p996 = scmp.lt.s32.totalorder %s24, 0
        %s997 = scalar_select %p996, %s24, 0
        %s998 = sadd.s32 %s997, %s995
        %s999 = smul.addr %s998, 4
        %s1000 = scalar_lea.vmem %s4, %s999
      $region56: #{transformer_forward.12} parent=51 // pred_fallthru
        _
    $region52: #{transformer_forward.12} parent=5 // pred_fallthru
      _
  $region6: #{transformer_forward.12} parent=0 // loop_footer
    %s14 = sadd.s32 1, %s10
  $region7: #{transformer_forward.12} parent=0 // loop_footer_branch
    %9 = sbr.rel target = $region3
  $region8: #{transformer_forward.12} parent=0 // loop_exit
    _

// kernel: transformer_forward.21
$region0: #{transformer_forward.21}
  #allocation0 [shape = 'u32[]', space=smem, size = 0x4, offset = 0x4, fixed_abs, tag = 'smem constant byte address 0x4 - core index']
  #allocation1 [shape = 'u32[144,128]{1,0:T(1,128)}', space=vmem, size = 0x12000, scoped, tag = 'internal scratch']
  %s0 = inlined_call_operand.vmem [shape: f32[16,128], index: 0, kind: input, shape index: {}]
  %s1 = inlined_call_operand.vmem [shape: f32[1,128], index: 1, kind: input, shape index: {}]
  %s2 = inlined_call_operand.vmem [shape: f32[1,128], index: 2, kind: input, shape index: {}]
  %s3 = inlined_call_operand.hbm [shape: f32[16,128], index: 3, kind: output, shape index: {}]
  %s4 = sld [smem:[#allocation0]]
  $region22: #{transformer_forward.21} parent=0
    _
  %s6 = ssub.s32 1, %s4
  %s7 = scalar_select 0, %s6, %s4
  $region1: #{transformer_forward.21} parent=0
    #allocation2 [shape = 'u8[8192]{0}', space=vmem, size = 0x2000, scoped, tag = 'output window, operand 0, single buffered']
    #allocation3 [shape = 's32[1]{0}', space=sflag, size = 0x4, scoped, tag = 'scoped memory for transformer_forward.21']
    %8 = vsyncpa [#allocation3], 0
    // Predicated region
    $region2: #{transformer_forward.21} parent=1 // pred_check
      _
    $region3: #{transformer_forward.21} parent=1 // pred_check_branch
      %10 = sbr.rel (0) target = $region5
    $region4: #{transformer_forward.21} parent=1 // pred_region
      _
    $region5: #{transformer_forward.21} parent=1 // pred_fallthru
      _
    // Predicated region
    $region6: #{transformer_forward.21} parent=1 // pred_check
      _
    $region7: #{transformer_forward.21} parent=1 // pred_check_branch
      %12 = sbr.rel (0) target = $region9
    $region8: #{transformer_forward.21} parent=1 // pred_region
      _
    $region9: #{transformer_forward.21} parent=1 // pred_fallthru
      _
    // Predicated region
    $region10: #{transformer_forward.21} parent=1 // pred_check
      _
    $region11: #{transformer_forward.21} parent=1 // pred_check_branch
      %14 = sbr.rel (0) target = $region13
    $region12: #{transformer_forward.21} parent=1 // pred_region
      _
    $region13: #{transformer_forward.21} parent=1 // pred_fallthru
      _
    %v15 = vld [vmem:[%s0] sm:$0xff]
    %v16 = vld [vmem:[%s0 + $0x8] sm:$0xff]
    %17 = vadd.xlane.f32.xlu0 %v15
    %v18 = vpop.xlane.xlu0 %17
    %19 = vadd.xlane.f32.xlu0 %v16
    %v20 = vpop.xlane.xlu0 %19
    %v21 = vrcp.pop 128.0
    %v22 = vmul.f32 %v18, %v21
    %v23 = vmul.f32 %v20, %v21
    %v24 = vsub.f32 %v15, %v22
    %v25 = vsub.f32 %v16, %v23
    %v26 = vmul.f32 %v24, %v24
    %v27 = vmul.f32 %v25, %v25
    %28 = vadd.xlane.f32.xlu0 %v26
    %v29 = vpop.xlane.xlu0 %28
    %30 = vadd.xlane.f32.xlu0 %v27
    %v31 = vpop.xlane.xlu0 %30
    %v32 = vmul.f32 %v29, 0.007874016
    %v33 = vmul.f32 %v31, 0.007874016
    %v34 = vrsqrt.pop %v32
    %v35 = vmul.f32 %v32, %v34
    %vm36 = vcmp.eq.f32.partialorder %v32, inf
    %v37 = vsel %vm36, %v32, %v35
    %vm38 = vcmp.eq.f32.partialorder %v32, 0.0
    %v39 = vand.u32 %v32, 2147483648
    %v40 = vsel %vm38, %v39, %v37
    %v41 = vrsqrt.pop %v33
    %v42 = vmul.f32 %v33, %v41
    %vm43 = vcmp.eq.f32.partialorder %v33, inf
    %v44 = vsel %vm43, %v33, %v42
    %vm45 = vcmp.eq.f32.partialorder %v33, 0.0
    %v46 = vand.u32 %v33, 2147483648
    %v47 = vsel %vm45, %v46, %v44
    %v48 = vadd.f32 %v40, 1e-06
    %v49 = vadd.f32 %v47, 1e-06
    %v50 = vrcp.pop %v48
    %v51 = vmul.f32 1.0, %v50
    %v52 = vrcp.pop %v49
    %v53 = vmul.f32 1.0, %v52
    %v54 = vld [vmem:[%s1] sm:$0x1]
    %v56 = vlaneseq
    %v57 = vshrl.u32 %v56, 7
    %v58 = vsub.s32 0, %v57
    %v59 = vrot.slane %v54, %v58
    %v61 = vmul.f32 %v59, %v24
    %v62 = vmul.f32 %v59, %v25
    %v63 = vmul.f32 %v61, %v51
    %v64 = vmul.f32 %v62, %v53
    %v65 = vld [vmem:[%s2] sm:$0x1]
    %v67 = vlaneseq
    %v68 = vshrl.u32 %v67, 7
    %v69 = vsub.s32 0, %v68
    %v70 = vrot.slane %v65, %v69
    %v72 = vadd.f32 %v63, %v70
    %v73 = vadd.f32 %v64, %v70
    %74 = vst [vmem:[#allocation2] sm:$0xff] %v72
    %75 = vst [vmem:[#allocation2 + $0x8] sm:$0xff] %v73
    // Predicated region
    $region14: #{transformer_forward.21} parent=1 // pred_check
      _
    $region15: #{transformer_forward.21} parent=1 // pred_check_branch
      %77 = sbr.rel (0) target = $region17
    $region16: #{transformer_forward.21} parent=1 // pred_region
      %s79 = ssub.s32 256, 256
      %80 = vsyncadd [#allocation3], %s79
      %s81 = sshll.u32 [#allocation2], 4
      %s82 = int_to_ptr.vmem [resolvable:$true] %s81
      %87 = dma.vmem_to_hbm [thread:$0]  %s82, 256, %s3, [#allocation3], 128, 128, 8
    $region17: #{transformer_forward.21} parent=1 // pred_fallthru
      _
    // Predicated region
    $region18: #{transformer_forward.21} parent=1 // pred_check
      _
    $region19: #{transformer_forward.21} parent=1 // pred_check_branch
      %89 = sbr.rel (0) target = $region21
    $region20: #{transformer_forward.21} parent=1 // pred_region
      %90 = dma.done [#allocation3], 256
    $region21: #{transformer_forward.21} parent=1 // pred_fallthru
      _
    %91 = vsyncpa [#allocation3], 1

// kernel: transformer_forward.15
$region0: #{transformer_forward.15}
  #allocation0 [shape = 'u32[]', space=smem, size = 0x4, offset = 0x4, fixed_abs, tag = 'smem constant byte address 0x4 - core index']
  #allocation1 [shape = 'u32[144,128]{1,0:T(1,128)}', space=vmem, size = 0x12000, scoped, tag = 'internal scratch']
  #allocation2 [shape = 'f32[16,128]{1,0:T(8,128)}', space=vmem, size = 0x2000, scoped, tag = 'scratch operand']
  %s0 = inlined_call_operand.vmem [shape: bf16[16,256], index: 0, kind: input, shape index: {}]
  %s1 = inlined_call_operand.vmem [shape: bf16[256,128], index: 1, kind: input, shape index: {}]
  %s2 = inlined_call_operand.vmem [shape: f32[1,128], index: 2, kind: input, shape index: {}]
  %s3 = inlined_call_operand.vmem [shape: f32[16,128], index: 3, kind: input, shape index: {}]
  %s4 = inlined_call_operand.vmem [shape: f32[16,128], index: 4, kind: output, shape index: {}]
  %s5 = sld [smem:[#allocation0]]
  $region34: #{transformer_forward.15} parent=0
    _
  %s7 = ssub.s32 1, %s5
  %s8 = scalar_select 0, %s7, %s5
  // Predicated region
  $region2: #{transformer_forward.15} parent=0 // pred_check
    _
  $region3: #{transformer_forward.15} parent=0 // pred_check_branch
    %10 = sbr.rel (0) target = $region5
  $region4: #{transformer_forward.15} parent=0 // pred_region
    _
  $region5: #{transformer_forward.15} parent=0 // pred_fallthru
    _
  // Predicated region
  $region6: #{transformer_forward.15} parent=0 // pred_check
    _
  $region7: #{transformer_forward.15} parent=0 // pred_check_branch
    %12 = sbr.rel (0) target = $region9
  $region8: #{transformer_forward.15} parent=0 // pred_region
    _
  $region9: #{transformer_forward.15} parent=0 // pred_fallthru
    _
  // Predicated region
  $region10: #{transformer_forward.15} parent=0 // pred_check
    _
  $region11: #{transformer_forward.15} parent=0 // pred_check_branch
    %14 = sbr.rel (0) target = $region13
  $region12: #{transformer_forward.15} parent=0 // pred_region
    _
  $region13: #{transformer_forward.15} parent=0 // pred_fallthru
    _
  // Predicated region
  $region14: #{transformer_forward.15} parent=0 // pred_check
    _
  $region15: #{transformer_forward.15} parent=0 // pred_check_branch
    %16 = sbr.rel (0) target = $region17
  $region16: #{transformer_forward.15} parent=0 // pred_region
    _
  $region17: #{transformer_forward.15} parent=0 // pred_fallthru
    _
  %p18 = scmp.eq.s32.totalorder 0, 0
  // Predicated region
  $region18: #{transformer_forward.15} parent=0 // pred_check
    %p19 = pneg %p18
  $region19: #{transformer_forward.15} parent=0 // pred_check_branch
    %21 = sbr.rel (%p19) target = $region21
  $region20: #{transformer_forward.15} parent=0 // pred_region
    %22 = vst [vmem:[#allocation2] sm:$0xff] 0.0
    %23 = vst [vmem:[#allocation2 + $0x8] sm:$0xff] 0.0
  $region21: #{transformer_forward.15} parent=0 // pred_fallthru
    _
  %v24 = vld [vmem:[#allocation2] sm:$0xff]
  %v25 = vld [vmem:[#allocation2 + $0x8] sm:$0xff]
  %v26 = vld [vmem:[%s0] sm:$0xff]
  %v27 = vld [vmem:[%s0 + $0x8] sm:$0xff]
  %v28 = vld [vmem:[%s1] sm:$0xf]
  %v29 = vld [vmem:[%s1 + $0x4] sm:$0xf]
  %v30 = vld [vmem:[%s1 + $0x8] sm:$0xf]
  %v31 = vld [vmem:[%s1 + $0xc] sm:$0xf]
  %v32 = vld [vmem:[%s1 + $0x10] sm:$0xf]
  %v33 = vld [vmem:[%s1 + $0x14] sm:$0xf]
  %v34 = vld [vmem:[%s1 + $0x18] sm:$0xf]
  %v35 = vld [vmem:[%s1 + $0x1c] sm:$0xf]
  %v36 = vld [vmem:[%s1 + $0x20] sm:$0xf]
  %v37 = vld [vmem:[%s1 + $0x24] sm:$0xf]
  %v38 = vld [vmem:[%s1 + $0x28] sm:$0xf]
  %v39 = vld [vmem:[%s1 + $0x2c] sm:$0xf]
  %v40 = vld [vmem:[%s1 + $0x30] sm:$0xf]
  %v41 = vld [vmem:[%s1 + $0x34] sm:$0xf]
  %v42 = vld [vmem:[%s1 + $0x38] sm:$0xf]
  %v43 = vld [vmem:[%s1 + $0x3c] sm:$0xf]
  %v44 = vld [vmem:[%s1 + $0x40] sm:$0xf]
  %v45 = vld [vmem:[%s1 + $0x44] sm:$0xf]
  %v46 = vld [vmem:[%s1 + $0x48] sm:$0xf]
  %v47 = vld [vmem:[%s1 + $0x4c] sm:$0xf]
  %v48 = vld [vmem:[%s1 + $0x50] sm:$0xf]
  %v49 = vld [vmem:[%s1 + $0x54] sm:$0xf]
  %v50 = vld [vmem:[%s1 + $0x58] sm:$0xf]
  %v51 = vld [vmem:[%s1 + $0x5c] sm:$0xf]
  %v52 = vld [vmem:[%s1 + $0x60] sm:$0xf]
  %v53 = vld [vmem:[%s1 + $0x64] sm:$0xf]
  %v54 = vld [vmem:[%s1 + $0x68] sm:$0xf]
  %v55 = vld [vmem:[%s1 + $0x6c] sm:$0xf]
  %v56 = vld [vmem:[%s1 + $0x70] sm:$0xf]
  %v57 = vld [vmem:[%s1 + $0x74] sm:$0xf]
  %v58 = vld [vmem:[%s1 + $0x78] sm:$0xf]
  %v59 = vld [vmem:[%s1 + $0x7c] sm:$0xf]
  %v62 = vunpack.c.l.b16 %v26
  %v63 = vunpack.c.h.b16 %v26
  %v64 = vunpack.c.l.b16 %v27
  %v65 = vunpack.c.h.b16 %v27
  %v66 = vpack.c.b16 %v64, %v62
  %v67 = vpack.c.b16 %v65, %v63
  %v102 = vunpack.c.l.b16 %v28
  %v103 = vunpack.c.l.b16 %v29
  %v104 = vunpack.c.l.b16 %v30
  %v105 = vunpack.c.l.b16 %v31
  %v106 = vunpack.c.l.b16 %v32
  %v107 = vunpack.c.l.b16 %v33
  %v108 = vunpack.c.l.b16 %v34
  %v109 = vunpack.c.l.b16 %v35
  %v110 = vunpack.c.l.b16 %v36
  %v111 = vunpack.c.l.b16 %v37
  %v112 = vunpack.c.l.b16 %v38
  %v113 = vunpack.c.l.b16 %v39
  %v114 = vunpack.c.l.b16 %v40
  %v115 = vunpack.c.l.b16 %v41
  %v116 = vunpack.c.l.b16 %v42
  %v117 = vunpack.c.l.b16 %v43
  %v118 = vunpack.c.l.b16 %v44
  %v119 = vunpack.c.l.b16 %v45
  %v120 = vunpack.c.l.b16 %v46
  %v121 = vunpack.c.l.b16 %v47
  %v122 = vunpack.c.l.b16 %v48
  %v123 = vunpack.c.l.b16 %v49
  %v124 = vunpack.c.l.b16 %v50
  %v125 = vunpack.c.l.b16 %v51
  %v126 = vunpack.c.l.b16 %v52
  %v127 = vunpack.c.l.b16 %v53
  %v128 = vunpack.c.l.b16 %v54
  %v129 = vunpack.c.l.b16 %v55
  %v130 = vunpack.c.l.b16 %v56
  %v131 = vunpack.c.l.b16 %v57
  %v132 = vunpack.c.l.b16 %v58
  %v133 = vunpack.c.l.b16 %v59
  %v134 = vpack.c.b16 %v103, %v102
  %v135 = vpack.c.b16 %v105, %v104
  %v136 = vpack.c.b16 %v107, %v106
  %v137 = vpack.c.b16 %v109, %v108
  %v138 = vpack.c.b16 %v111, %v110
  %v139 = vpack.c.b16 %v113, %v112
  %v140 = vpack.c.b16 %v115, %v114
  %v141 = vpack.c.b16 %v117, %v116
  %v142 = vpack.c.b16 %v119, %v118
  %v143 = vpack.c.b16 %v121, %v120
  %v144 = vpack.c.b16 %v123, %v122
  %v145 = vpack.c.b16 %v125, %v124
  %v146 = vpack.c.b16 %v127, %v126
  %v147 = vpack.c.b16 %v129, %v128
  %v148 = vpack.c.b16 %v131, %v130
  %v149 = vpack.c.b16 %v133, %v132
  %166 = vmatprep.subr.bf16.mxu0 0
  %167 = vmatpush1.bf16.msra.mxu0 %v141
  %168 = vmatprep.subr.bf16.mxu0 0
  %169 = vmatpush1.bf16.msra.mxu0 %v140
  %170 = vmatprep.subr.bf16.mxu0 0
  %171 = vmatpush1.bf16.msra.mxu0 %v139
  %172 = vmatprep.subr.bf16.mxu0 0
  %173 = vmatpush1.bf16.msra.mxu0 %v138
  %174 = vmatprep.subr.bf16.mxu0 0
  %175 = vmatpush1.bf16.msra.mxu0 %v137
  %176 = vmatprep.subr.bf16.mxu0 0
  %177 = vmatpush1.bf16.msra.mxu0 %v136
  %178 = vmatprep.subr.bf16.mxu0 0
  %179 = vmatpush1.bf16.msra.mxu0 %v135
  %180 = vmatprep.subr.bf16.mxu0 0
  %181 = vmatpush1.bf16.msra.mxu0 %v134
  %182 = vmatprep.subr.bf16.mxu0 0
  %183 = vmatpush2.bf16.msra.mxu0 %v149
  %184 = vmatprep.subr.bf16.mxu0 0
  %185 = vmatpush2.bf16.msra.mxu0 %v148
  %186 = vmatprep.subr.bf16.mxu0 0
  %187 = vmatpush2.bf16.msra.mxu0 %v147
  %188 = vmatprep.subr.bf16.mxu0 0
  %189 = vmatpush2.bf16.msra.mxu0 %v146
  %190 = vmatprep.subr.bf16.mxu0 0
  %191 = vmatpush2.bf16.msra.mxu0 %v145
  %192 = vmatprep.subr.bf16.mxu0 0
  %193 = vmatpush2.bf16.msra.mxu0 %v144
  %194 = vmatprep.subr.bf16.mxu0 0
  %195 = vmatpush2.bf16.msra.mxu0 %v143
  %196 = vmatprep.subr.bf16.mxu0 0
  %197 = vmatpush2.bf16.msra.mxu0 %v142
  %198 = vmatprep.mubr.bf16.mxu0 %v67
  %199 = vmatmul.mubr.bf16.gmra.mxu0 %v66
  %v200 = vpop.f32.mrf.mxu0
  %v201 = vadd.f32 0.0, %v200
  %v202 = vpop.f32.mrf.mxu0
  %v203 = vpop.f32.mrf.mxu0
  %v204 = vadd.f32 0.0, %v203
  %v205 = vpop.f32.mrf.mxu0
  %206 = vdwg.mxu0
  %v207 = vadd.f32 %v24, %v201
  %v208 = vadd.f32 %v25, %v204
  %209 = vst [vmem:[#allocation2] sm:$0xff] %v207
  %210 = vst [vmem:[#allocation2 + $0x8] sm:$0xff] %v208
  // Predicated region
  $region22: #{transformer_forward.15} parent=0 // pred_check
    %p211 = pneg %p18
  $region23: #{transformer_forward.15} parent=0 // pred_check_branch
    %213 = sbr.rel (%p211) target = $region25
  $region24: #{transformer_forward.15} parent=0 // pred_region
    %v214 = vld [vmem:[#allocation2] sm:$0xff]
    %v215 = vld [vmem:[#allocation2 + $0x8] sm:$0xff]
    %v216 = vld [vmem:[%s2] sm:$0x1]
    %v218 = vlaneseq
    %v219 = vshrl.u32 %v218, 7
    %v220 = vsub.s32 0, %v219
    %v221 = vrot.slane %v216, %v220
    %v223 = vadd.f32 %v214, %v221
    %v224 = vadd.f32 %v215, %v221
    %v225 = vld [vmem:[%s3] sm:$0xff]
    %v226 = vld [vmem:[%s3 + $0x8] sm:$0xff]
    %v227 = vadd.f32 %v223, %v225
    %v228 = vadd.f32 %v224, %v226
    %229 = vst [vmem:[%s4] sm:$0xff] %v227
    %230 = vst [vmem:[%s4 + $0x8] sm:$0xff] %v228
  $region25: #{transformer_forward.15} parent=0 // pred_fallthru
    _
  // Predicated region
  $region26: #{transformer_forward.15} parent=0 // pred_check
    _
  $region27: #{transformer_forward.15} parent=0 // pred_check_branch
    %232 = sbr.rel (0) target = $region29
  $region28: #{transformer_forward.15} parent=0 // pred_region
    _
  $region29: #{transformer_forward.15} parent=0 // pred_fallthru
    _
  // Predicated region
  $region30: #{transformer_forward.15} parent=0 // pred_check
    _
  $region31: #{transformer_forward.15} parent=0 // pred_check_branch
    %234 = sbr.rel (0) target = $region33
  $region32: #{transformer_forward.15} parent=0 // pred_region
    _
  $region33: #{transformer_forward.15} parent=0 // pred_fallthru
    _

// kernel: transformer_forward.16
$region0: #{transformer_forward.16}
  #allocation0 [shape = 'u32[]', space=smem, size = 0x4, offset = 0x4, fixed_abs, tag = 'smem constant byte address 0x4 - core index']
  #allocation1 [shape = 'u32[144,128]{1,0:T(1,128)}', space=vmem, size = 0x12000, scoped, tag = 'internal scratch']
  #allocation2 [shape = 'bf16[16,128]{1,0:T(8,128)(2,1)}', space=vmem, size = 0x1000, scoped, tag = 'scratch operand']
  %s0 = inlined_call_operand.vmem [shape: f32[16,128], index: 0, kind: input, shape index: {}]
  %s1 = inlined_call_operand.vmem [shape: f32[1,128], index: 1, kind: input, shape index: {}]
  %s2 = inlined_call_operand.vmem [shape: f32[1,128], index: 2, kind: input, shape index: {}]
  %s3 = inlined_call_operand.vmem [shape: bf16[128,384], index: 3, kind: input, shape index: {}]
  %s4 = inlined_call_operand.vmem [shape: f32[1,384], index: 4, kind: input, shape index: {}]
  %s5 = inlined_call_operand.vmem [shape: bf16[16,384], index: 5, kind: output, shape index: {}]
  %s6 = sld [smem:[#allocation0]]
  $region34: #{transformer_forward.16} parent=0
    _
  %s8 = ssub.s32 1, %s6
  %s9 = scalar_select 0, %s8, %s6
  // Predicated region
  $region2: #{transformer_forward.16} parent=0 // pred_check
    _
  $region3: #{transformer_forward.16} parent=0 // pred_check_branch
    %11 = sbr.rel (0) target = $region5
  $region4: #{transformer_forward.16} parent=0 // pred_region
    _
  $region5: #{transformer_forward.16} parent=0 // pred_fallthru
    _
  // Predicated region
  $region6: #{transformer_forward.16} parent=0 // pred_check
    _
  $region7: #{transformer_forward.16} parent=0 // pred_check_branch
    %13 = sbr.rel (0) target = $region9
  $region8: #{transformer_forward.16} parent=0 // pred_region
    _
  $region9: #{transformer_forward.16} parent=0 // pred_fallthru
    _
  // Predicated region
  $region10: #{transformer_forward.16} parent=0 // pred_check
    _
  $region11: #{transformer_forward.16} parent=0 // pred_check_branch
    %15 = sbr.rel (0) target = $region13
  $region12: #{transformer_forward.16} parent=0 // pred_region
    _
  $region13: #{transformer_forward.16} parent=0 // pred_fallthru
    _
  // Predicated region
  $region14: #{transformer_forward.16} parent=0 // pred_check
    _
  $region15: #{transformer_forward.16} parent=0 // pred_check_branch
    %17 = sbr.rel (0) target = $region17
  $region16: #{transformer_forward.16} parent=0 // pred_region
    _
  $region17: #{transformer_forward.16} parent=0 // pred_fallthru
    _
  // Predicated region
  $region18: #{transformer_forward.16} parent=0 // pred_check
    _
  $region19: #{transformer_forward.16} parent=0 // pred_check_branch
    %19 = sbr.rel (0) target = $region21
  $region20: #{transformer_forward.16} parent=0 // pred_region
    _
  $region21: #{transformer_forward.16} parent=0 // pred_fallthru
    _
  %p21 = scmp.eq.s32.totalorder 0, 0
  // Predicated region
  $region22: #{transformer_forward.16} parent=0 // pred_check
    %p22 = pneg %p21
  $region23: #{transformer_forward.16} parent=0 // pred_check_branch
    %24 = sbr.rel (%p22) target = $region25
  $region24: #{transformer_forward.16} parent=0 // pred_region
    %v25 = vld [vmem:[%s0] sm:$0xff]
    %v26 = vld [vmem:[%s0 + $0x8] sm:$0xff]
    %27 = vadd.xlane.f32.xlu0 %v25
    %v28 = vpop.xlane.xlu0 %27
    %29 = vadd.xlane.f32.xlu0 %v26
    %v30 = vpop.xlane.xlu0 %29
    %v31 = vrcp.pop 128.0
    %v32 = vmul.f32 %v28, %v31
    %v33 = vmul.f32 %v30, %v31
    %v34 = vsub.f32 %v25, %v32
    %v35 = vsub.f32 %v26, %v33
    %v36 = vmul.f32 %v34, %v34
    %v37 = vmul.f32 %v35, %v35
    %38 = vadd.xlane.f32.xlu0 %v36
    %v39 = vpop.xlane.xlu0 %38
    %40 = vadd.xlane.f32.xlu0 %v37
    %v41 = vpop.xlane.xlu0 %40
    %v42 = vmul.f32 %v39, 0.007874016
    %v43 = vmul.f32 %v41, 0.007874016
    %v44 = vrsqrt.pop %v42
    %v45 = vmul.f32 %v42, %v44
    %vm46 = vcmp.eq.f32.partialorder %v42, inf
    %v47 = vsel %vm46, %v42, %v45
    %vm48 = vcmp.eq.f32.partialorder %v42, 0.0
    %v49 = vand.u32 %v42, 2147483648
    %v50 = vsel %vm48, %v49, %v47
    %v51 = vrsqrt.pop %v43
    %v52 = vmul.f32 %v43, %v51
    %vm53 = vcmp.eq.f32.partialorder %v43, inf
    %v54 = vsel %vm53, %v43, %v52
    %vm55 = vcmp.eq.f32.partialorder %v43, 0.0
    %v56 = vand.u32 %v43, 2147483648
    %v57 = vsel %vm55, %v56, %v54
    %v58 = vadd.f32 %v50, 1e-06
    %v59 = vadd.f32 %v57, 1e-06
    %v60 = vrcp.pop %v58
    %v61 = vmul.f32 1.0, %v60
    %v62 = vrcp.pop %v59
    %v63 = vmul.f32 1.0, %v62
    %v64 = vld [vmem:[%s1] sm:$0x1]
    %v66 = vlaneseq
    %v67 = vshrl.u32 %v66, 7
    %v68 = vsub.s32 0, %v67
    %v69 = vrot.slane %v64, %v68
    %v71 = vmul.f32 %v69, %v34
    %v72 = vmul.f32 %v69, %v35
    %v73 = vmul.f32 %v71, %v61
    %v74 = vmul.f32 %v72, %v63
    %v75 = vld [vmem:[%s2] sm:$0x1]
    %v77 = vlaneseq
    %v78 = vshrl.u32 %v77, 7
    %v79 = vsub.s32 0, %v78
    %v80 = vrot.slane %v75, %v79
    %v82 = vadd.f32 %v73, %v80
    %v83 = vadd.f32 %v74, %v80
    %v84 = vpack.c.bf16 %v83, %v82
    %v86 = vunpack.c.l.b16 %v84
    %v87 = vunpack.c.h.b16 %v84
    %v88 = vpack.c.b16 %v86, %v86
    %v89 = vpack.c.b16 %v87, %v87
    %92 = vst [vmem:[#allocation2] sm:$0xf] %v88
    %93 = vst [vmem:[#allocation2 + $0x4] sm:$0xf] %v89
  $region25: #{transformer_forward.16} parent=0 // pred_fallthru
    _
  %v94 = vld [vmem:[#allocation2] sm:$0xf]
  %v95 = vld [vmem:[#allocation2 + $0x4] sm:$0xf]
  %v96 = vld [vmem:[%s3] sm:$0xff]
  %v97 = vld [vmem:[%s3 + $0x8] sm:$0xf]
  %v98 = vld [vmem:[%s3 + $0xc] sm:$0xff]
  %v99 = vld [vmem:[%s3 + $0x14] sm:$0xf]
  %v100 = vld [vmem:[%s3 + $0x18] sm:$0xff]
  %v101 = vld [vmem:[%s3 + $0x20] sm:$0xf]
  %v102 = vld [vmem:[%s3 + $0x24] sm:$0xff]
  %v103 = vld [vmem:[%s3 + $0x2c] sm:$0xf]
  %v104 = vld [vmem:[%s3 + $0x30] sm:$0xff]
  %v105 = vld [vmem:[%s3 + $0x38] sm:$0xf]
  %v106 = vld [vmem:[%s3 + $0x3c] sm:$0xff]
  %v107 = vld [vmem:[%s3 + $0x44] sm:$0xf]
  %v108 = vld [vmem:[%s3 + $0x48] sm:$0xff]
  %v109 = vld [vmem:[%s3 + $0x50] sm:$0xf]
  %v110 = vld [vmem:[%s3 + $0x54] sm:$0xff]
  %v111 = vld [vmem:[%s3 + $0x5c] sm:$0xf]
  %v112 = vld [vmem:[%s3 + $0x60] sm:$0xff]
  %v113 = vld [vmem:[%s3 + $0x68] sm:$0xf]
  %v114 = vld [vmem:[%s3 + $0x6c] sm:$0xff]
  %v115 = vld [vmem:[%s3 + $0x74] sm:$0xf]
  %v116 = vld [vmem:[%s3 + $0x78] sm:$0xff]
  %v117 = vld [vmem:[%s3 + $0x80] sm:$0xf]
  %v118 = vld [vmem:[%s3 + $0x84] sm:$0xff]
  %v119 = vld [vmem:[%s3 + $0x8c] sm:$0xf]
  %v120 = vld [vmem:[%s3 + $0x90] sm:$0xff]
  %v121 = vld [vmem:[%s3 + $0x98] sm:$0xf]
  %v122 = vld [vmem:[%s3 + $0x9c] sm:$0xff]
  %v123 = vld [vmem:[%s3 + $0xa4] sm:$0xf]
  %v124 = vld [vmem:[%s3 + $0xa8] sm:$0xff]
  %v125 = vld [vmem:[%s3 + $0xb0] sm:$0xf]
  %v126 = vld [vmem:[%s3 + $0xb4] sm:$0xff]
  %v127 = vld [vmem:[%s3 + $0xbc] sm:$0xf]
  %v128 = vld [vmem:[%s4] sm:$0x7]
  %v130 = vlaneseq
  %v131 = vshrl.u32 %v130, 7
  %v132 = vsub.s32 0, %v131
  %v133 = vrot.slane %v128, %v132
  %v134 = vlaneseq
  %v135 = vshrl.u32 %v134, 7
  %v136 = vsub.s32 1, %v135
  %v137 = vrot.slane %v128, %v136
  %v138 = vlaneseq
  %v139 = vshrl.u32 %v138, 7
  %v140 = vsub.s32 2, %v139
  %v141 = vrot.slane %v128, %v140
  %v147 = vunpack.c.l.b16 %v94
  %v148 = vunpack.c.l.b16 %v95
  %v149 = vpack.c.b16 %v148, %v147
  %v183 = vunpack.c.l.b16 %v96
  %v184 = vunpack.c.h.b16 %v96
  %v185 = vunpack.c.l.b16 %v97
  %v186 = vunpack.c.l.b16 %v98
  %v187 = vunpack.c.h.b16 %v98
  %v188 = vunpack.c.l.b16 %v99
  %v189 = vunpack.c.l.b16 %v100
  %v190 = vunpack.c.h.b16 %v100
  %v191 = vunpack.c.l.b16 %v101
  %v192 = vunpack.c.l.b16 %v102
  %v193 = vunpack.c.h.b16 %v102
  %v194 = vunpack.c.l.b16 %v103
  %v195 = vunpack.c.l.b16 %v104
  %v196 = vunpack.c.h.b16 %v104
  %v197 = vunpack.c.l.b16 %v105
  %v198 = vunpack.c.l.b16 %v106
  %v199 = vunpack.c.h.b16 %v106
  %v200 = vunpack.c.l.b16 %v107
  %v201 = vunpack.c.l.b16 %v108
  %v202 = vunpack.c.h.b16 %v108
  %v203 = vunpack.c.l.b16 %v109
  %v204 = vunpack.c.l.b16 %v110
  %v205 = vunpack.c.h.b16 %v110
  %v206 = vunpack.c.l.b16 %v111
  %v207 = vunpack.c.l.b16 %v112
  %v208 = vunpack.c.h.b16 %v112
  %v209 = vunpack.c.l.b16 %v113
  %v210 = vunpack.c.l.b16 %v114
  %v211 = vunpack.c.h.b16 %v114
  %v212 = vunpack.c.l.b16 %v115
  %v213 = vunpack.c.l.b16 %v116
  %v214 = vunpack.c.h.b16 %v116
  %v215 = vunpack.c.l.b16 %v117
  %v216 = vunpack.c.l.b16 %v118
  %v217 = vunpack.c.h.b16 %v118
  %v218 = vunpack.c.l.b16 %v119
  %v219 = vunpack.c.l.b16 %v120
  %v220 = vunpack.c.h.b16 %v120
  %v221 = vunpack.c.l.b16 %v121
  %v222 = vunpack.c.l.b16 %v122
  %v223 = vunpack.c.h.b16 %v122
  %v224 = vunpack.c.l.b16 %v123
  %v225 = vunpack.c.l.b16 %v124
  %v226 = vunpack.c.h.b16 %v124
  %v227 = vunpack.c.l.b16 %v125
  %v228 = vunpack.c.l.b16 %v126
  %v229 = vunpack.c.h.b16 %v126
  %v230 = vunpack.c.l.b16 %v127
  %v231 = vpack.c.b16 %v186, %v183
  %v232 = vpack.c.b16 %v187, %v184
  %v233 = vpack.c.b16 %v188, %v185
  %v234 = vpack.c.b16 %v192, %v189
  %v235 = vpack.c.b16 %v193, %v190
  %v236 = vpack.c.b16 %v194, %v191
  %v237 = vpack.c.b16 %v198, %v195
  %v238 = vpack.c.b16 %v199, %v196
  %v239 = vpack.c.b16 %v200, %v197
  %v240 = vpack.c.b16 %v204, %v201
  %v241 = vpack.c.b16 %v205, %v202
  %v242 = vpack.c.b16 %v206, %v203
  %v243 = vpack.c.b16 %v210, %v207
  %v244 = vpack.c.b16 %v211, %v208
  %v245 = vpack.c.b16 %v212, %v209
  %v246 = vpack.c.b16 %v216, %v213
  %v247 = vpack.c.b16 %v217, %v214
  %v248 = vpack.c.b16 %v218, %v215
  %v249 = vpack.c.b16 %v222, %v219
  %v250 = vpack.c.b16 %v223, %v220
  %v251 = vpack.c.b16 %v224, %v221
  %v252 = vpack.c.b16 %v228, %v225
  %v253 = vpack.c.b16 %v229, %v226
  %v254 = vpack.c.b16 %v230, %v227
  %279 = vmatprep.subr.bf16.mxu0 %v253
  %280 = vmatpush1.bf16.msra.mxu0 %v252
  %281 = vmatprep.subr.bf16.mxu0 %v250
  %282 = vmatpush1.bf16.msra.mxu0 %v249
  %283 = vmatprep.subr.bf16.mxu0 %v247
  %284 = vmatpush1.bf16.msra.mxu0 %v246
  %285 = vmatprep.subr.bf16.mxu0 %v244
  %286 = vmatpush1.bf16.msra.mxu0 %v243
  %287 = vmatprep.subr.bf16.mxu0 %v241
  %288 = vmatpush1.bf16.msra.mxu0 %v240
  %289 = vmatprep.subr.bf16.mxu0 %v238
  %290 = vmatpush1.bf16.msra.mxu0 %v237
  %291 = vmatprep.subr.bf16.mxu0 %v235
  %292 = vmatpush1.bf16.msra.mxu0 %v234
  %293 = vmatprep.subr.bf16.mxu0 %v232
  %294 = vmatpush1.bf16.msra.mxu0 %v231
  %295 = vmatprep.subr.bf16.mxu0 0
  %296 = vmatpush2.bf16.msra.mxu0 0
  %297 = vmatprep.subr.bf16.mxu0 0
  %298 = vmatpush2.bf16.msra.mxu0 0
  %299 = vmatprep.subr.bf16.mxu0 0
  %300 = vmatpush2.bf16.msra.mxu0 0
  %301 = vmatprep.subr.bf16.mxu0 0
  %302 = vmatpush2.bf16.msra.mxu0 0
  %303 = vmatprep.subr.bf16.mxu0 0
  %304 = vmatpush2.bf16.msra.mxu0 0
  %305 = vmatprep.subr.bf16.mxu0 0
  %306 = vmatpush2.bf16.msra.mxu0 0
  %307 = vmatprep.subr.bf16.mxu0 0
  %308 = vmatpush2.bf16.msra.mxu0 0
  %309 = vmatprep.subr.bf16.mxu0 0
  %310 = vmatpush2.bf16.msra.mxu0 0
  %311 = vmatprep.mubr.bf16.mxu0 0
  %312 = vmatmul.mubr.bf16.gmra.mxu0 %v149
  %v313 = vpop.f32.mrf.mxu0
  %v314 = vadd.f32 %v133, %v313
  %v315 = vpop.f32.mrf.mxu0
  %v316 = vadd.f32 %v137, %v315
  %v317 = vpop.f32.mrf.mxu0
  %v318 = vadd.f32 %v133, %v317
  %v319 = vpop.f32.mrf.mxu0
  %v320 = vadd.f32 %v137, %v319
  %321 = vdwg.mxu0
  %322 = vmatprep.subr.bf16.mxu0 0
  %323 = vmatpush1.bf16.msra.mxu0 %v254
  %324 = vmatprep.subr.bf16.mxu0 0
  %325 = vmatpush1.bf16.msra.mxu0 %v251
  %326 = vmatprep.subr.bf16.mxu0 0
  %327 = vmatpush1.bf16.msra.mxu0 %v248
  %328 = vmatprep.subr.bf16.mxu0 0
  %329 = vmatpush1.bf16.msra.mxu0 %v245
  %330 = vmatprep.subr.bf16.mxu0 0
  %331 = vmatpush1.bf16.msra.mxu0 %v242
  %332 = vmatprep.subr.bf16.mxu0 0
  %333 = vmatpush1.bf16.msra.mxu0 %v239
  %334 = vmatprep.subr.bf16.mxu0 0
  %335 = vmatpush1.bf16.msra.mxu0 %v236
  %336 = vmatprep.subr.bf16.mxu0 0
  %337 = vmatpush1.bf16.msra.mxu0 %v233
  %338 = vmatprep.subr.bf16.mxu0 0
  %339 = vmatpush2.bf16.msra.mxu0 0
  %340 = vmatprep.subr.bf16.mxu0 0
  %341 = vmatpush2.bf16.msra.mxu0 0
  %342 = vmatprep.subr.bf16.mxu0 0
  %343 = vmatpush2.bf16.msra.mxu0 0
  %344 = vmatprep.subr.bf16.mxu0 0
  %345 = vmatpush2.bf16.msra.mxu0 0
  %346 = vmatprep.subr.bf16.mxu0 0
  %347 = vmatpush2.bf16.msra.mxu0 0
  %348 = vmatprep.subr.bf16.mxu0 0
  %349 = vmatpush2.bf16.msra.mxu0 0
  %350 = vmatprep.subr.bf16.mxu0 0
  %351 = vmatpush2.bf16.msra.mxu0 0
  %352 = vmatprep.subr.bf16.mxu0 0
  %353 = vmatpush2.bf16.msra.mxu0 0
  %354 = vmatprep.mubr.bf16.mxu0 0
  %355 = vmatmul.mubr.bf16.gmra.mxu0 %v149
  %v356 = vpop.f32.mrf.mxu0
  %v357 = vadd.f32 %v141, %v356
  %v358 = vpop.f32.mrf.mxu0
  %v359 = vpop.f32.mrf.mxu0
  %v360 = vadd.f32 %v141, %v359
  %v361 = vpop.f32.mrf.mxu0
  %362 = vdwg.mxu0
  %v363 = vpack.c.bf16 %v318, %v314
  %v364 = vpack.c.bf16 %v320, %v316
  %v365 = vpack.c.bf16 %v360, %v357
  %v369 = vunpack.c.l.b16 %v363
  %v370 = vunpack.c.l.b16 %v364
  %v371 = vunpack.c.l.b16 %v365
  %v372 = vunpack.c.h.b16 %v363
  %v373 = vunpack.c.h.b16 %v364
  %v374 = vunpack.c.h.b16 %v365
  %v375 = vpack.c.b16 %v370, %v369
  %v376 = vpack.c.b16 %v371, %v371
  %v377 = vpack.c.b16 %v373, %v372
  %v378 = vpack.c.b16 %v374, %v374
  %383 = vst [vmem:[%s5] sm:$0xff] %v375
  %384 = vst [vmem:[%s5 + $0x8] sm:$0xf] %v376
  %385 = vst [vmem:[%s5 + $0xc] sm:$0xff] %v377
  %386 = vst [vmem:[%s5 + $0x14] sm:$0xf] %v378
  // Predicated region
  $region26: #{transformer_forward.16} parent=0 // pred_check
    _
  $region27: #{transformer_forward.16} parent=0 // pred_check_branch
    %388 = sbr.rel (0) target = $region29
  $region28: #{transformer_forward.16} parent=0 // pred_region
    _
  $region29: #{transformer_forward.16} parent=0 // pred_fallthru
    _
  // Predicated region
  $region30: #{transformer_forward.16} parent=0 // pred_check
    _
  $region31: #{transformer_forward.16} parent=0 // pred_check_branch
    %390 = sbr.rel (0) target = $region33
  $region32: #{transformer_forward.16} parent=0 // pred_region
    _
  $region33: #{transformer_forward.16} parent=0 // pred_fallthru
    _

</llo_original>
